<compile_context>
chip_gen: v7x
topology: tpu7x:2x2x1
jax: 0.10.0
libtpu: 0.0.40
codegen_flags: <defaults>
</compile_context>

<pallas_src>
import numpy as np

import jax
import jax.numpy as jnp
from jax.experimental import pallas as pl
from jax.experimental.pallas import tpu as pltpu

_SSIM_C1 = 0.01 ** 2
_SSIM_C2 = 0.03 ** 2


# ----------------------------------------------------------------------------- kernel

def _fusion_loss_kernel(gt1_ref, gt2_ref, gt3_ref, fu_ref,
                        sx_l_ref, sy_l_ref, sx_r_ref, sy_r_ref,
                        g_l_ref, g_r_ref, out_ref):
    a = gt1_ref[0].astype(jnp.float32)      # (H, W)
    b = gt2_ref[0].astype(jnp.float32)
    c = gt3_ref[0].astype(jnp.float32)
    f = fu_ref[0].astype(jnp.float32)

    sx_l = sx_l_ref[...]                    # (H, H) band [1,2,1]
    sy_l = sy_l_ref[...]                    # (H, H) band [1,0,-1]
    sx_r = sx_r_ref[...]                    # (W, W) band [-1,0,1]^T
    sy_r = sy_r_ref[...]                    # (W, W) band [1,2,1]^T
    g_l = g_l_ref[...]                      # (H, H) gaussian band
    g_r = g_r_ref[...]                      # (W, W) gaussian band^T

    def sep(left, x, right):
        # zero-padded separable 2-D correlation as two MXU matmuls
        t = jnp.dot(x, right, preferred_element_type=jnp.float32)
        return jnp.dot(left, t, preferred_element_type=jnp.float32)

    def sobel_mag(x):
        return jnp.abs(sep(sx_l, x, sx_r)) + jnp.abs(sep(sy_l, x, sy_r))

    def blur(x):
        return sep(g_l, x, g_r)

    # --- gradient + intensity terms ---------------------------------------------
    joint = jnp.maximum(jnp.maximum(a, b), c)
    grad_f = sobel_mag(f)
    s_grad = jnp.sum(jnp.abs(grad_f - joint))
    s_int = jnp.sum(jnp.abs(f - joint))

    # --- SSIM weight terms (mean sobel magnitude of each source) -----------------
    s_ga = jnp.sum(sobel_mag(a))
    s_gb = jnp.sum(sobel_mag(b))
    s_gc = jnp.sum(sobel_mag(c))

    # --- SSIM(GT_i, fused): gaussian-window statistics ---------------------------
    mu_f = blur(f)
    mu_f2 = mu_f * mu_f
    sig_f = blur(f * f) - mu_f2

    def ssim_sum(x):
        mu_x = blur(x)
        mu_x2 = mu_x * mu_x
        mu_xf = mu_x * mu_f
        sig_x = blur(x * x) - mu_x2
        sig_xf = blur(x * f) - mu_xf
        num = (2.0 * mu_xf + _SSIM_C1) * (2.0 * sig_xf + _SSIM_C2)
        den = (mu_x2 + mu_f2 + _SSIM_C1) * (sig_x + sig_f + _SSIM_C2)
        return jnp.sum(num / den)

    s_sa = ssim_sum(a)
    s_sb = ssim_sum(b)
    s_sc = ssim_sum(c)

    # Single full-block store of the 8 per-batch partial sums (no shared accumulator,
    # no pl.when init/finalize -> grid axis can be "parallel").
    lane = jax.lax.broadcasted_iota(jnp.int32, (1, 1, 8), 2)
    row = jnp.zeros((1, 1, 8), jnp.float32)
    for k, v in enumerate((s_grad, s_int, s_ga, s_gb, s_gc, s_sa, s_sb, s_sc)):
        row = row + jnp.where(lane == k, v, 0.0)
    out_ref[...] = row


# ----------------------------------------------------------------------- host helpers

def _band_matrix(size, taps):
    """M[i, k] = taps[k - i + r] for |k - i| <= r else 0.

    Used as (M @ x) for a zero-padded 1-D correlation along axis 0, and as
    (x @ M.T) for the same along axis 1.
    """
    taps = np.asarray(taps, np.float32)
    r = (len(taps) - 1) // 2
    idx = np.arange(size)
    diff = idx[None, :] - idx[:, None]          # diff[i, k] = k - i
    m = np.zeros((size, size), np.float32)
    for d in range(-r, r + 1):
        m += np.where(diff == d, taps[d + r], 0.0).astype(np.float32)
    return jnp.asarray(m)


def _gaussian_taps(window_size=11, sigma=1.5):
    x = np.arange(window_size, dtype=np.float64)
    g = np.exp(-((x - window_size // 2) ** 2) / (2.0 * sigma ** 2))
    g = g / g.sum()
    return g.astype(np.float32)


# ----------------------------------------------------------------------------- wrapper

def fusion_loss_vif_3(image_A, image_B, image_fused, GT, GT_2, GT_3):
    """Returns (fusion_loss, loss_gradient, loss_l1, loss_SSIM)."""
    del image_A, image_B  # unused by the original forward
    N, C, H, W = image_fused.shape
    assert C == 1, "Sobelxy conv weight is (1,1,3,3); inputs must have 1 channel"
    assert GT.shape == GT_2.shape == GT_3.shape == image_fused.shape

    gt1 = GT.reshape(N, H, W)
    gt2 = GT_2.reshape(N, H, W)
    gt3 = GT_3.reshape(N, H, W)
    fused = image_fused.reshape(N, H, W)     # native dtype; cast to f32 inside kernel

    # Zero-padded separable conv operators as small banded matrices (built once).
    # sobel_x = band_H([1,2,1]) @ x @ band_W([-1,0,1]).T
    # sobel_y = band_H([1,0,-1]) @ x @ band_W([1,2,1]).T
    # blur    = band_H(g11)     @ x @ band_W(g11).T
    sx_l = _band_matrix(H, [1.0, 2.0, 1.0])
    sy_l = _band_matrix(H, [1.0, 0.0, -1.0])
    sx_r = _band_matrix(W, [-1.0, 0.0, 1.0]).T
    sy_r = _band_matrix(W, [1.0, 2.0, 1.0]).T
    g = _gaussian_taps(11, 1.5)
    g_l = _band_matrix(H, g)
    g_r = _band_matrix(W, g).T

    img_spec = pl.BlockSpec((1, H, W), lambda n: (n, 0, 0))
    mh_spec = pl.BlockSpec((H, H), lambda n: (0, 0))
    mw_spec = pl.BlockSpec((W, W), lambda n: (0, 0))
    out_spec = pl.BlockSpec((1, 1, 8), lambda n: (n, 0, 0))

    partial = pl.pallas_call(
        _fusion_loss_kernel,
        out_shape=jax.ShapeDtypeStruct((N, 1, 8), jnp.float32),
        grid_spec=pltpu.PrefetchScalarGridSpec(
            num_scalar_prefetch=0,
            grid=(N,),
            in_specs=[img_spec, img_spec, img_spec, img_spec,
                      mh_spec, mh_spec, mw_spec, mw_spec, mh_spec, mw_spec],
            out_specs=out_spec,
        ),
        compiler_params=pltpu.CompilerParams(
            dimension_semantics=("parallel",),
            vmem_limit_bytes=48 * 1024 * 1024,
        ),
    )(gt1, gt2, gt3, fused, sx_l, sy_l, sx_r, sy_r, g_l, g_r)

    # Final reduction / loss combination on tiny (N, 8) partials.
    sums = jnp.sum(partial.reshape(N, 8).astype(jnp.float32), axis=0)
    inv = 1.0 / float(N * C * H * W)

    loss_grad_raw = sums[0] * inv
    loss_int_raw = sums[1] * inv
    mga, mgb, mgc = sums[2] * inv, sums[3] * inv, sums[4] * inv
    ssim_a, ssim_b, ssim_c = sums[5] * inv, sums[6] * inv, sums[7] * inv

    w_a = mga / (mga + mgb) + mgc            # exact (odd) formula from the module
    w_b = mgb / (mga + mgb) + mgc
    w_c = mgc / (mga + mgb) + mgc
    ssim_w = w_a * ssim_a + w_b * ssim_b + w_c * ssim_c

    loss_l1 = 20.0 * loss_int_raw
    loss_gradient = 20.0 * loss_grad_raw
    loss_SSIM = 10.0 * (1.0 - ssim_w)
    fusion_loss = loss_l1 + loss_gradient + loss_SSIM
    return fusion_loss, loss_gradient, loss_l1, loss_SSIM


# --------------------------------------------------------------------- pure-JAX ref

def _conv2d_same(x_nchw, k2d, pad):
    k = k2d[None, None, :, :].astype(jnp.float32)
    return jax.lax.conv_general_dilated(
        x_nchw.astype(jnp.float32), k, window_strides=(1, 1),
        padding=((pad, pad), (pad, pad)),
        dimension_numbers=("NCHW", "OIHW", "NCHW"))


def _fusion_loss_ref(image_A, image_B, image_fused, GT, GT_2, GT_3):
    del image_A, image_B
    a = GT.astype(jnp.float32)
    b = GT_2.astype(jnp.float32)
    c = GT_3.astype(jnp.float32)
    f = image_fused.astype(jnp.float32)

    kx = jnp.array([[-1., 0., 1.], [-2., 0., 2.], [-1., 0., 1.]], jnp.float32)
    ky = jnp.array([[1., 2., 1.], [0., 0., 0.], [-1., -2., -1.]], jnp.float32)

    def sobel(x):
        return jnp.abs(_conv2d_same(x, kx, 1)) + jnp.abs(_conv2d_same(x, ky, 1))

    joint = jnp.maximum(jnp.maximum(a, b), c)
    loss_grad_raw = jnp.mean(jnp.abs(sobel(f) - joint))
    loss_int_raw = jnp.mean(jnp.abs(f - joint))

    g1 = jnp.asarray(_gaussian_taps(11, 1.5))
    g2 = jnp.outer(g1, g1)

    def blur(x):
        return _conv2d_same(x, g2, 5)

    def ssim(x, y):
        mu_x, mu_y = blur(x), blur(y)
        sig_x = blur(x * x) - mu_x * mu_x
        sig_y = blur(y * y) - mu_y * mu_y
        sig_xy = blur(x * y) - mu_x * mu_y
        m = ((2.0 * mu_x * mu_y + _SSIM_C1) * (2.0 * sig_xy + _SSIM_C2)) / (
            (mu_x * mu_x + mu_y * mu_y + _SSIM_C1) * (sig_x + sig_y + _SSIM_C2))
        return jnp.mean(m)

    mga, mgb, mgc = jnp.mean(sobel(a)), jnp.mean(sobel(b)), jnp.mean(sobel(c))
    w_a = mga / (mga + mgb) + mgc
    w_b = mgb / (mga + mgb) + mgc
    w_c = mgc / (mga + mgb) + mgc
    ssim_w = w_a * ssim(a, f) + w_b * ssim(b, f) + w_c * ssim(c, f)

    loss_l1 = 20.0 * loss_int_raw
    loss_gradient = 20.0 * loss_grad_raw
    loss_SSIM = 10.0 * (1.0 - ssim_w)
    return loss_l1 + loss_gradient + loss_SSIM, loss_gradient, loss_l1, loss_SSIM


if __name__ == "__main__":
    key = jax.random.PRNGKey(0)
    N, C, H, W = 2, 1, 16, 16
    keys = jax.random.split(key, 6)
    image_A, image_B, image_fused, GT, GT_2, GT_3 = [
        jax.random.uniform(k, (N, C, H, W), dtype=jnp.float32) for k in keys]

    out = fusion_loss_vif_3(image_A, image_B, image_fused, GT, GT_2, GT_3)
    out = jax.block_until_ready(out)

    ref = _fusion_loss_ref(image_A, image_B, image_fused, GT, GT_2, GT_3)
    for got, want in zip(out, ref):
        assert jnp.allclose(got, want, atol=1e-4, rtol=1e-4), (got, want)

    print("KERNEL_OK")
</pallas_src>

<mosaic_0001>
module attributes {stable_mosaic.version = 11 : i64} {
  func.func @_fusion_loss_kernel(%arg0: i32, %arg1: memref<1x16x16xf32, #tpu.memory_space<vmem>>, %arg2: memref<1x16x16xf32, #tpu.memory_space<vmem>>, %arg3: memref<1x16x16xf32, #tpu.memory_space<vmem>>, %arg4: memref<1x16x16xf32, #tpu.memory_space<vmem>>, %arg5: memref<16x16xf32, #tpu.memory_space<vmem>>, %arg6: memref<16x16xf32, #tpu.memory_space<vmem>>, %arg7: memref<16x16xf32, #tpu.memory_space<vmem>>, %arg8: memref<16x16xf32, #tpu.memory_space<vmem>>, %arg9: memref<16x16xf32, #tpu.memory_space<vmem>>, %arg10: memref<16x16xf32, #tpu.memory_space<vmem>>, %arg11: memref<1x1x8xf32, #tpu.memory_space<vmem>>) attributes {dimension_semantics = [#tpu.dimension_semantics<parallel>], iteration_bounds = array<i64: 2>, scalar_prefetch = 0 : i64, scratch_operands = 0 : i64, tpu.core_type = #tpu.core_type<tc>, window_params = [{transform_indices = @transform_0, window_bounds = array<i64: 1, 16, 16>}, {transform_indices = @transform_1, window_bounds = array<i64: 1, 16, 16>}, {transform_indices = @transform_2, window_bounds = array<i64: 1, 16, 16>}, {transform_indices = @transform_3, window_bounds = array<i64: 1, 16, 16>}, {pipeline_mode = #tpu.pipeline_mode<synchronous>, transform_indices = @transform_4, window_bounds = array<i64: 16, 16>}, {pipeline_mode = #tpu.pipeline_mode<synchronous>, transform_indices = @transform_5, window_bounds = array<i64: 16, 16>}, {pipeline_mode = #tpu.pipeline_mode<synchronous>, transform_indices = @transform_6, window_bounds = array<i64: 16, 16>}, {pipeline_mode = #tpu.pipeline_mode<synchronous>, transform_indices = @transform_7, window_bounds = array<i64: 16, 16>}, {pipeline_mode = #tpu.pipeline_mode<synchronous>, transform_indices = @transform_8, window_bounds = array<i64: 16, 16>}, {pipeline_mode = #tpu.pipeline_mode<synchronous>, transform_indices = @transform_9, window_bounds = array<i64: 16, 16>}, {transform_indices = @transform_10, window_bounds = array<i64: 1, 1, 8>}]} {
    %c0 = arith.constant 0 : index
    %c0_0 = arith.constant 0 : index
    %c0_1 = arith.constant 0 : index
    %0 = vector.load %arg1[%c0, %c0_0, %c0_1] : memref<1x16x16xf32, #tpu.memory_space<vmem>>, vector<1x16x16xf32>
    %1 = vector.shape_cast %0 : vector<1x16x16xf32> to vector<16x16xf32>
    %c0_2 = arith.constant 0 : index
    %c0_3 = arith.constant 0 : index
    %c0_4 = arith.constant 0 : index
    %2 = vector.load %arg2[%c0_2, %c0_3, %c0_4] : memref<1x16x16xf32, #tpu.memory_space<vmem>>, vector<1x16x16xf32>
    %3 = vector.shape_cast %2 : vector<1x16x16xf32> to vector<16x16xf32>
    %c0_5 = arith.constant 0 : index
    %c0_6 = arith.constant 0 : index
    %c0_7 = arith.constant 0 : index
    %4 = vector.load %arg3[%c0_5, %c0_6, %c0_7] : memref<1x16x16xf32, #tpu.memory_space<vmem>>, vector<1x16x16xf32>
    %5 = vector.shape_cast %4 : vector<1x16x16xf32> to vector<16x16xf32>
    %c0_8 = arith.constant 0 : index
    %c0_9 = arith.constant 0 : index
    %c0_10 = arith.constant 0 : index
    %6 = vector.load %arg4[%c0_8, %c0_9, %c0_10] : memref<1x16x16xf32, #tpu.memory_space<vmem>>, vector<1x16x16xf32>
    %7 = vector.shape_cast %6 : vector<1x16x16xf32> to vector<16x16xf32>
    %c0_11 = arith.constant 0 : index
    %c0_12 = arith.constant 0 : index
    %8 = vector.load %arg5[%c0_11, %c0_12] : memref<16x16xf32, #tpu.memory_space<vmem>>, vector<16x16xf32>
    %c0_13 = arith.constant 0 : index
    %c0_14 = arith.constant 0 : index
    %9 = vector.load %arg6[%c0_13, %c0_14] : memref<16x16xf32, #tpu.memory_space<vmem>>, vector<16x16xf32>
    %c0_15 = arith.constant 0 : index
    %c0_16 = arith.constant 0 : index
    %10 = vector.load %arg7[%c0_15, %c0_16] : memref<16x16xf32, #tpu.memory_space<vmem>>, vector<16x16xf32>
    %c0_17 = arith.constant 0 : index
    %c0_18 = arith.constant 0 : index
    %11 = vector.load %arg8[%c0_17, %c0_18] : memref<16x16xf32, #tpu.memory_space<vmem>>, vector<16x16xf32>
    %c0_19 = arith.constant 0 : index
    %c0_20 = arith.constant 0 : index
    %12 = vector.load %arg9[%c0_19, %c0_20] : memref<16x16xf32, #tpu.memory_space<vmem>>, vector<16x16xf32>
    %c0_21 = arith.constant 0 : index
    %c0_22 = arith.constant 0 : index
    %13 = vector.load %arg10[%c0_21, %c0_22] : memref<16x16xf32, #tpu.memory_space<vmem>>, vector<16x16xf32>
    %14 = arith.maximumf %1, %3 : vector<16x16xf32>
    %15 = arith.maximumf %14, %5 : vector<16x16xf32>
    %cst = arith.constant dense<0.000000e+00> : vector<16x16xf32>
    %16 = tpu.matmul %7, %10, %cst {dimension_numbers = #tpu.dot_dimension_numbers<[1], [0], [0], [1], [0, 0, 1, 1], [], []>} : vector<16x16xf32>, vector<16x16xf32>, vector<16x16xf32> -> vector<16x16xf32>
    %cst_23 = arith.constant dense<0.000000e+00> : vector<16x16xf32>
    %17 = tpu.matmul %8, %16, %cst_23 {dimension_numbers = #tpu.dot_dimension_numbers<[1], [0], [0], [1], [0, 0, 1, 1], [], []>} : vector<16x16xf32>, vector<16x16xf32>, vector<16x16xf32> -> vector<16x16xf32>
    %18 = math.absf %17 : vector<16x16xf32>
    %cst_24 = arith.constant dense<0.000000e+00> : vector<16x16xf32>
    %19 = tpu.matmul %7, %11, %cst_24 {dimension_numbers = #tpu.dot_dimension_numbers<[1], [0], [0], [1], [0, 0, 1, 1], [], []>} : vector<16x16xf32>, vector<16x16xf32>, vector<16x16xf32> -> vector<16x16xf32>
    %cst_25 = arith.constant dense<0.000000e+00> : vector<16x16xf32>
    %20 = tpu.matmul %9, %19, %cst_25 {dimension_numbers = #tpu.dot_dimension_numbers<[1], [0], [0], [1], [0, 0, 1, 1], [], []>} : vector<16x16xf32>, vector<16x16xf32>, vector<16x16xf32> -> vector<16x16xf32>
    %21 = math.absf %20 : vector<16x16xf32>
    %22 = arith.addf %18, %21 : vector<16x16xf32>
    %23 = arith.subf %22, %15 : vector<16x16xf32>
    %24 = math.absf %23 : vector<16x16xf32>
    %25 = vector.shape_cast %24 : vector<16x16xf32> to vector<1x16x16xf32>
    %cst_26 = arith.constant dense<0.000000e+00> : vector<1xf32>
    %26 = vector.multi_reduction <add>, %25, %cst_26 [1, 2] : vector<1x16x16xf32> to vector<1xf32>
    %27 = vector.shape_cast %26 : vector<1xf32> to vector<1x1x1xf32>
    %28 = vector.extract %27[0, 0, 0] : f32 from vector<1x1x1xf32>
    %29 = arith.subf %7, %15 : vector<16x16xf32>
    %30 = math.absf %29 : vector<16x16xf32>
    %31 = vector.shape_cast %30 : vector<16x16xf32> to vector<1x16x16xf32>
    %cst_27 = arith.constant dense<0.000000e+00> : vector<1xf32>
    %32 = vector.multi_reduction <add>, %31, %cst_27 [1, 2] : vector<1x16x16xf32> to vector<1xf32>
    %33 = vector.shape_cast %32 : vector<1xf32> to vector<1x1x1xf32>
    %34 = vector.extract %33[0, 0, 0] : f32 from vector<1x1x1xf32>
    %cst_28 = arith.constant dense<0.000000e+00> : vector<16x16xf32>
    %35 = tpu.matmul %1, %10, %cst_28 {dimension_numbers = #tpu.dot_dimension_numbers<[1], [0], [0], [1], [0, 0, 1, 1], [], []>} : vector<16x16xf32>, vector<16x16xf32>, vector<16x16xf32> -> vector<16x16xf32>
    %cst_29 = arith.constant dense<0.000000e+00> : vector<16x16xf32>
    %36 = tpu.matmul %8, %35, %cst_29 {dimension_numbers = #tpu.dot_dimension_numbers<[1], [0], [0], [1], [0, 0, 1, 1], [], []>} : vector<16x16xf32>, vector<16x16xf32>, vector<16x16xf32> -> vector<16x16xf32>
    %37 = math.absf %36 : vector<16x16xf32>
    %cst_30 = arith.constant dense<0.000000e+00> : vector<16x16xf32>
    %38 = tpu.matmul %1, %11, %cst_30 {dimension_numbers = #tpu.dot_dimension_numbers<[1], [0], [0], [1], [0, 0, 1, 1], [], []>} : vector<16x16xf32>, vector<16x16xf32>, vector<16x16xf32> -> vector<16x16xf32>
    %cst_31 = arith.constant dense<0.000000e+00> : vector<16x16xf32>
    %39 = tpu.matmul %9, %38, %cst_31 {dimension_numbers = #tpu.dot_dimension_numbers<[1], [0], [0], [1], [0, 0, 1, 1], [], []>} : vector<16x16xf32>, vector<16x16xf32>, vector<16x16xf32> -> vector<16x16xf32>
    %40 = math.absf %39 : vector<16x16xf32>
    %41 = arith.addf %37, %40 : vector<16x16xf32>
    %42 = vector.shape_cast %41 : vector<16x16xf32> to vector<1x16x16xf32>
    %cst_32 = arith.constant dense<0.000000e+00> : vector<1xf32>
    %43 = vector.multi_reduction <add>, %42, %cst_32 [1, 2] : vector<1x16x16xf32> to vector<1xf32>
    %44 = vector.shape_cast %43 : vector<1xf32> to vector<1x1x1xf32>
    %45 = vector.extract %44[0, 0, 0] : f32 from vector<1x1x1xf32>
    %cst_33 = arith.constant dense<0.000000e+00> : vector<16x16xf32>
    %46 = tpu.matmul %3, %10, %cst_33 {dimension_numbers = #tpu.dot_dimension_numbers<[1], [0], [0], [1], [0, 0, 1, 1], [], []>} : vector<16x16xf32>, vector<16x16xf32>, vector<16x16xf32> -> vector<16x16xf32>
    %cst_34 = arith.constant dense<0.000000e+00> : vector<16x16xf32>
    %47 = tpu.matmul %8, %46, %cst_34 {dimension_numbers = #tpu.dot_dimension_numbers<[1], [0], [0], [1], [0, 0, 1, 1], [], []>} : vector<16x16xf32>, vector<16x16xf32>, vector<16x16xf32> -> vector<16x16xf32>
    %48 = math.absf %47 : vector<16x16xf32>
    %cst_35 = arith.constant dense<0.000000e+00> : vector<16x16xf32>
    %49 = tpu.matmul %3, %11, %cst_35 {dimension_numbers = #tpu.dot_dimension_numbers<[1], [0], [0], [1], [0, 0, 1, 1], [], []>} : vector<16x16xf32>, vector<16x16xf32>, vector<16x16xf32> -> vector<16x16xf32>
    %cst_36 = arith.constant dense<0.000000e+00> : vector<16x16xf32>
    %50 = tpu.matmul %9, %49, %cst_36 {dimension_numbers = #tpu.dot_dimension_numbers<[1], [0], [0], [1], [0, 0, 1, 1], [], []>} : vector<16x16xf32>, vector<16x16xf32>, vector<16x16xf32> -> vector<16x16xf32>
    %51 = math.absf %50 : vector<16x16xf32>
    %52 = arith.addf %48, %51 : vector<16x16xf32>
    %53 = vector.shape_cast %52 : vector<16x16xf32> to vector<1x16x16xf32>
    %cst_37 = arith.constant dense<0.000000e+00> : vector<1xf32>
    %54 = vector.multi_reduction <add>, %53, %cst_37 [1, 2] : vector<1x16x16xf32> to vector<1xf32>
    %55 = vector.shape_cast %54 : vector<1xf32> to vector<1x1x1xf32>
    %56 = vector.extract %55[0, 0, 0] : f32 from vector<1x1x1xf32>
    %cst_38 = arith.constant dense<0.000000e+00> : vector<16x16xf32>
    %57 = tpu.matmul %5, %10, %cst_38 {dimension_numbers = #tpu.dot_dimension_numbers<[1], [0], [0], [1], [0, 0, 1, 1], [], []>} : vector<16x16xf32>, vector<16x16xf32>, vector<16x16xf32> -> vector<16x16xf32>
    %cst_39 = arith.constant dense<0.000000e+00> : vector<16x16xf32>
    %58 = tpu.matmul %8, %57, %cst_39 {dimension_numbers = #tpu.dot_dimension_numbers<[1], [0], [0], [1], [0, 0, 1, 1], [], []>} : vector<16x16xf32>, vector<16x16xf32>, vector<16x16xf32> -> vector<16x16xf32>
    %59 = math.absf %58 : vector<16x16xf32>
    %cst_40 = arith.constant dense<0.000000e+00> : vector<16x16xf32>
    %60 = tpu.matmul %5, %11, %cst_40 {dimension_numbers = #tpu.dot_dimension_numbers<[1], [0], [0], [1], [0, 0, 1, 1], [], []>} : vector<16x16xf32>, vector<16x16xf32>, vector<16x16xf32> -> vector<16x16xf32>
    %cst_41 = arith.constant dense<0.000000e+00> : vector<16x16xf32>
    %61 = tpu.matmul %9, %60, %cst_41 {dimension_numbers = #tpu.dot_dimension_numbers<[1], [0], [0], [1], [0, 0, 1, 1], [], []>} : vector<16x16xf32>, vector<16x16xf32>, vector<16x16xf32> -> vector<16x16xf32>
    %62 = math.absf %61 : vector<16x16xf32>
    %63 = arith.addf %59, %62 : vector<16x16xf32>
    %64 = vector.shape_cast %63 : vector<16x16xf32> to vector<1x16x16xf32>
    %cst_42 = arith.constant dense<0.000000e+00> : vector<1xf32>
    %65 = vector.multi_reduction <add>, %64, %cst_42 [1, 2] : vector<1x16x16xf32> to vector<1xf32>
    %66 = vector.shape_cast %65 : vector<1xf32> to vector<1x1x1xf32>
    %67 = vector.extract %66[0, 0, 0] : f32 from vector<1x1x1xf32>
    %cst_43 = arith.constant dense<0.000000e+00> : vector<16x16xf32>
    %68 = tpu.matmul %7, %13, %cst_43 {dimension_numbers = #tpu.dot_dimension_numbers<[1], [0], [0], [1], [0, 0, 1, 1], [], []>} : vector<16x16xf32>, vector<16x16xf32>, vector<16x16xf32> -> vector<16x16xf32>
    %cst_44 = arith.constant dense<0.000000e+00> : vector<16x16xf32>
    %69 = tpu.matmul %12, %68, %cst_44 {dimension_numbers = #tpu.dot_dimension_numbers<[1], [0], [0], [1], [0, 0, 1, 1], [], []>} : vector<16x16xf32>, vector<16x16xf32>, vector<16x16xf32> -> vector<16x16xf32>
    %70 = arith.mulf %69, %69 : vector<16x16xf32>
    %71 = arith.mulf %7, %7 : vector<16x16xf32>
    %cst_45 = arith.constant dense<0.000000e+00> : vector<16x16xf32>
    %72 = tpu.matmul %71, %13, %cst_45 {dimension_numbers = #tpu.dot_dimension_numbers<[1], [0], [0], [1], [0, 0, 1, 1], [], []>} : vector<16x16xf32>, vector<16x16xf32>, vector<16x16xf32> -> vector<16x16xf32>
    %cst_46 = arith.constant dense<0.000000e+00> : vector<16x16xf32>
    %73 = tpu.matmul %12, %72, %cst_46 {dimension_numbers = #tpu.dot_dimension_numbers<[1], [0], [0], [1], [0, 0, 1, 1], [], []>} : vector<16x16xf32>, vector<16x16xf32>, vector<16x16xf32> -> vector<16x16xf32>
    %74 = arith.subf %73, %70 : vector<16x16xf32>
    %cst_47 = arith.constant dense<0.000000e+00> : vector<16x16xf32>
    %75 = tpu.matmul %1, %13, %cst_47 {dimension_numbers = #tpu.dot_dimension_numbers<[1], [0], [0], [1], [0, 0, 1, 1], [], []>} : vector<16x16xf32>, vector<16x16xf32>, vector<16x16xf32> -> vector<16x16xf32>
    %cst_48 = arith.constant dense<0.000000e+00> : vector<16x16xf32>
    %76 = tpu.matmul %12, %75, %cst_48 {dimension_numbers = #tpu.dot_dimension_numbers<[1], [0], [0], [1], [0, 0, 1, 1], [], []>} : vector<16x16xf32>, vector<16x16xf32>, vector<16x16xf32> -> vector<16x16xf32>
    %77 = arith.mulf %76, %76 : vector<16x16xf32>
    %78 = arith.mulf %76, %69 : vector<16x16xf32>
    %79 = arith.mulf %1, %1 : vector<16x16xf32>
    %cst_49 = arith.constant dense<0.000000e+00> : vector<16x16xf32>
    %80 = tpu.matmul %79, %13, %cst_49 {dimension_numbers = #tpu.dot_dimension_numbers<[1], [0], [0], [1], [0, 0, 1, 1], [], []>} : vector<16x16xf32>, vector<16x16xf32>, vector<16x16xf32> -> vector<16x16xf32>
    %cst_50 = arith.constant dense<0.000000e+00> : vector<16x16xf32>
    %81 = tpu.matmul %12, %80, %cst_50 {dimension_numbers = #tpu.dot_dimension_numbers<[1], [0], [0], [1], [0, 0, 1, 1], [], []>} : vector<16x16xf32>, vector<16x16xf32>, vector<16x16xf32> -> vector<16x16xf32>
    %82 = arith.subf %81, %77 : vector<16x16xf32>
    %83 = arith.mulf %1, %7 : vector<16x16xf32>
    %cst_51 = arith.constant dense<0.000000e+00> : vector<16x16xf32>
    %84 = tpu.matmul %83, %13, %cst_51 {dimension_numbers = #tpu.dot_dimension_numbers<[1], [0], [0], [1], [0, 0, 1, 1], [], []>} : vector<16x16xf32>, vector<16x16xf32>, vector<16x16xf32> -> vector<16x16xf32>
    %cst_52 = arith.constant dense<0.000000e+00> : vector<16x16xf32>
    %85 = tpu.matmul %12, %84, %cst_52 {dimension_numbers = #tpu.dot_dimension_numbers<[1], [0], [0], [1], [0, 0, 1, 1], [], []>} : vector<16x16xf32>, vector<16x16xf32>, vector<16x16xf32> -> vector<16x16xf32>
    %86 = arith.subf %85, %78 : vector<16x16xf32>
    %cst_53 = arith.constant 2.000000e+00 : f32
    %87 = vector.broadcast %cst_53 : f32 to vector<16x16xf32>
    %88 = arith.mulf %87, %78 : vector<16x16xf32>
    %cst_54 = arith.constant 9.99999974E-5 : f32
    %89 = vector.broadcast %cst_54 : f32 to vector<16x16xf32>
    %90 = arith.addf %88, %89 : vector<16x16xf32>
    %cst_55 = arith.constant 2.000000e+00 : f32
    %91 = vector.broadcast %cst_55 : f32 to vector<16x16xf32>
    %92 = arith.mulf %91, %86 : vector<16x16xf32>
    %cst_56 = arith.constant 8.99999984E-4 : f32
    %93 = vector.broadcast %cst_56 : f32 to vector<16x16xf32>
    %94 = arith.addf %92, %93 : vector<16x16xf32>
    %95 = arith.mulf %90, %94 : vector<16x16xf32>
    %96 = arith.addf %77, %70 : vector<16x16xf32>
    %cst_57 = arith.constant 9.99999974E-5 : f32
    %97 = vector.broadcast %cst_57 : f32 to vector<16x16xf32>
    %98 = arith.addf %96, %97 : vector<16x16xf32>
    %99 = arith.addf %82, %74 : vector<16x16xf32>
    %cst_58 = arith.constant 8.99999984E-4 : f32
    %100 = vector.broadcast %cst_58 : f32 to vector<16x16xf32>
    %101 = arith.addf %99, %100 : vector<16x16xf32>
    %102 = arith.mulf %98, %101 : vector<16x16xf32>
    %103 = arith.divf %95, %102 : vector<16x16xf32>
    %104 = vector.shape_cast %103 : vector<16x16xf32> to vector<1x16x16xf32>
    %cst_59 = arith.constant dense<0.000000e+00> : vector<1xf32>
    %105 = vector.multi_reduction <add>, %104, %cst_59 [1, 2] : vector<1x16x16xf32> to vector<1xf32>
    %106 = vector.shape_cast %105 : vector<1xf32> to vector<1x1x1xf32>
    %107 = vector.extract %106[0, 0, 0] : f32 from vector<1x1x1xf32>
    %cst_60 = arith.constant dense<0.000000e+00> : vector<16x16xf32>
    %108 = tpu.matmul %3, %13, %cst_60 {dimension_numbers = #tpu.dot_dimension_numbers<[1], [0], [0], [1], [0, 0, 1, 1], [], []>} : vector<16x16xf32>, vector<16x16xf32>, vector<16x16xf32> -> vector<16x16xf32>
    %cst_61 = arith.constant dense<0.000000e+00> : vector<16x16xf32>
    %109 = tpu.matmul %12, %108, %cst_61 {dimension_numbers = #tpu.dot_dimension_numbers<[1], [0], [0], [1], [0, 0, 1, 1], [], []>} : vector<16x16xf32>, vector<16x16xf32>, vector<16x16xf32> -> vector<16x16xf32>
    %110 = arith.mulf %109, %109 : vector<16x16xf32>
    %111 = arith.mulf %109, %69 : vector<16x16xf32>
    %112 = arith.mulf %3, %3 : vector<16x16xf32>
    %cst_62 = arith.constant dense<0.000000e+00> : vector<16x16xf32>
    %113 = tpu.matmul %112, %13, %cst_62 {dimension_numbers = #tpu.dot_dimension_numbers<[1], [0], [0], [1], [0, 0, 1, 1], [], []>} : vector<16x16xf32>, vector<16x16xf32>, vector<16x16xf32> -> vector<16x16xf32>
    %cst_63 = arith.constant dense<0.000000e+00> : vector<16x16xf32>
    %114 = tpu.matmul %12, %113, %cst_63 {dimension_numbers = #tpu.dot_dimension_numbers<[1], [0], [0], [1], [0, 0, 1, 1], [], []>} : vector<16x16xf32>, vector<16x16xf32>, vector<16x16xf32> -> vector<16x16xf32>
    %115 = arith.subf %114, %110 : vector<16x16xf32>
    %116 = arith.mulf %3, %7 : vector<16x16xf32>
    %cst_64 = arith.constant dense<0.000000e+00> : vector<16x16xf32>
    %117 = tpu.matmul %116, %13, %cst_64 {dimension_numbers = #tpu.dot_dimension_numbers<[1], [0], [0], [1], [0, 0, 1, 1], [], []>} : vector<16x16xf32>, vector<16x16xf32>, vector<16x16xf32> -> vector<16x16xf32>
    %cst_65 = arith.constant dense<0.000000e+00> : vector<16x16xf32>
    %118 = tpu.matmul %12, %117, %cst_65 {dimension_numbers = #tpu.dot_dimension_numbers<[1], [0], [0], [1], [0, 0, 1, 1], [], []>} : vector<16x16xf32>, vector<16x16xf32>, vector<16x16xf32> -> vector<16x16xf32>
    %119 = arith.subf %118, %111 : vector<16x16xf32>
    %cst_66 = arith.constant 2.000000e+00 : f32
    %120 = vector.broadcast %cst_66 : f32 to vector<16x16xf32>
    %121 = arith.mulf %120, %111 : vector<16x16xf32>
    %cst_67 = arith.constant 9.99999974E-5 : f32
    %122 = vector.broadcast %cst_67 : f32 to vector<16x16xf32>
    %123 = arith.addf %121, %122 : vector<16x16xf32>
    %cst_68 = arith.constant 2.000000e+00 : f32
    %124 = vector.broadcast %cst_68 : f32 to vector<16x16xf32>
    %125 = arith.mulf %124, %119 : vector<16x16xf32>
    %cst_69 = arith.constant 8.99999984E-4 : f32
    %126 = vector.broadcast %cst_69 : f32 to vector<16x16xf32>
    %127 = arith.addf %125, %126 : vector<16x16xf32>
    %128 = arith.mulf %123, %127 : vector<16x16xf32>
    %129 = arith.addf %110, %70 : vector<16x16xf32>
    %cst_70 = arith.constant 9.99999974E-5 : f32
    %130 = vector.broadcast %cst_70 : f32 to vector<16x16xf32>
    %131 = arith.addf %129, %130 : vector<16x16xf32>
    %132 = arith.addf %115, %74 : vector<16x16xf32>
    %cst_71 = arith.constant 8.99999984E-4 : f32
    %133 = vector.broadcast %cst_71 : f32 to vector<16x16xf32>
    %134 = arith.addf %132, %133 : vector<16x16xf32>
    %135 = arith.mulf %131, %134 : vector<16x16xf32>
    %136 = arith.divf %128, %135 : vector<16x16xf32>
    %137 = vector.shape_cast %136 : vector<16x16xf32> to vector<1x16x16xf32>
    %cst_72 = arith.constant dense<0.000000e+00> : vector<1xf32>
    %138 = vector.multi_reduction <add>, %137, %cst_72 [1, 2] : vector<1x16x16xf32> to vector<1xf32>
    %139 = vector.shape_cast %138 : vector<1xf32> to vector<1x1x1xf32>
    %140 = vector.extract %139[0, 0, 0] : f32 from vector<1x1x1xf32>
    %cst_73 = arith.constant dense<0.000000e+00> : vector<16x16xf32>
    %141 = tpu.matmul %5, %13, %cst_73 {dimension_numbers = #tpu.dot_dimension_numbers<[1], [0], [0], [1], [0, 0, 1, 1], [], []>} : vector<16x16xf32>, vector<16x16xf32>, vector<16x16xf32> -> vector<16x16xf32>
    %cst_74 = arith.constant dense<0.000000e+00> : vector<16x16xf32>
    %142 = tpu.matmul %12, %141, %cst_74 {dimension_numbers = #tpu.dot_dimension_numbers<[1], [0], [0], [1], [0, 0, 1, 1], [], []>} : vector<16x16xf32>, vector<16x16xf32>, vector<16x16xf32> -> vector<16x16xf32>
    %143 = arith.mulf %142, %142 : vector<16x16xf32>
    %144 = arith.mulf %142, %69 : vector<16x16xf32>
    %145 = arith.mulf %5, %5 : vector<16x16xf32>
    %cst_75 = arith.constant dense<0.000000e+00> : vector<16x16xf32>
    %146 = tpu.matmul %145, %13, %cst_75 {dimension_numbers = #tpu.dot_dimension_numbers<[1], [0], [0], [1], [0, 0, 1, 1], [], []>} : vector<16x16xf32>, vector<16x16xf32>, vector<16x16xf32> -> vector<16x16xf32>
    %cst_76 = arith.constant dense<0.000000e+00> : vector<16x16xf32>
    %147 = tpu.matmul %12, %146, %cst_76 {dimension_numbers = #tpu.dot_dimension_numbers<[1], [0], [0], [1], [0, 0, 1, 1], [], []>} : vector<16x16xf32>, vector<16x16xf32>, vector<16x16xf32> -> vector<16x16xf32>
    %148 = arith.subf %147, %143 : vector<16x16xf32>
    %149 = arith.mulf %5, %7 : vector<16x16xf32>
    %cst_77 = arith.constant dense<0.000000e+00> : vector<16x16xf32>
    %150 = tpu.matmul %149, %13, %cst_77 {dimension_numbers = #tpu.dot_dimension_numbers<[1], [0], [0], [1], [0, 0, 1, 1], [], []>} : vector<16x16xf32>, vector<16x16xf32>, vector<16x16xf32> -> vector<16x16xf32>
    %cst_78 = arith.constant dense<0.000000e+00> : vector<16x16xf32>
    %151 = tpu.matmul %12, %150, %cst_78 {dimension_numbers = #tpu.dot_dimension_numbers<[1], [0], [0], [1], [0, 0, 1, 1], [], []>} : vector<16x16xf32>, vector<16x16xf32>, vector<16x16xf32> -> vector<16x16xf32>
    %152 = arith.subf %151, %144 : vector<16x16xf32>
    %cst_79 = arith.constant 2.000000e+00 : f32
    %153 = vector.broadcast %cst_79 : f32 to vector<16x16xf32>
    %154 = arith.mulf %153, %144 : vector<16x16xf32>
    %cst_80 = arith.constant 9.99999974E-5 : f32
    %155 = vector.broadcast %cst_80 : f32 to vector<16x16xf32>
    %156 = arith.addf %154, %155 : vector<16x16xf32>
    %cst_81 = arith.constant 2.000000e+00 : f32
    %157 = vector.broadcast %cst_81 : f32 to vector<16x16xf32>
    %158 = arith.mulf %157, %152 : vector<16x16xf32>
    %cst_82 = arith.constant 8.99999984E-4 : f32
    %159 = vector.broadcast %cst_82 : f32 to vector<16x16xf32>
    %160 = arith.addf %158, %159 : vector<16x16xf32>
    %161 = arith.mulf %156, %160 : vector<16x16xf32>
    %162 = arith.addf %143, %70 : vector<16x16xf32>
    %cst_83 = arith.constant 9.99999974E-5 : f32
    %163 = vector.broadcast %cst_83 : f32 to vector<16x16xf32>
    %164 = arith.addf %162, %163 : vector<16x16xf32>
    %165 = arith.addf %148, %74 : vector<16x16xf32>
    %cst_84 = arith.constant 8.99999984E-4 : f32
    %166 = vector.broadcast %cst_84 : f32 to vector<16x16xf32>
    %167 = arith.addf %165, %166 : vector<16x16xf32>
    %168 = arith.mulf %164, %167 : vector<16x16xf32>
    %169 = arith.divf %161, %168 : vector<16x16xf32>
    %170 = vector.shape_cast %169 : vector<16x16xf32> to vector<1x16x16xf32>
    %cst_85 = arith.constant dense<0.000000e+00> : vector<1xf32>
    %171 = vector.multi_reduction <add>, %170, %cst_85 [1, 2] : vector<1x16x16xf32> to vector<1xf32>
    %172 = vector.shape_cast %171 : vector<1xf32> to vector<1x1x1xf32>
    %173 = vector.extract %172[0, 0, 0] : f32 from vector<1x1x1xf32>
    %174 = tpu.iota {dimensions = array<i32: 2>} : vector<1x1x8xi32>
    %cst_86 = arith.constant 0.000000e+00 : f32
    %175 = vector.broadcast %cst_86 : f32 to vector<1x1x8xf32>
    %c0_i32 = arith.constant 0 : i32
    %176 = vector.broadcast %c0_i32 : i32 to vector<1x1x8xi32>
    %177 = arith.cmpi eq, %174, %176 : vector<1x1x8xi32>
    %cst_87 = arith.constant 0.000000e+00 : f32
    %178 = vector.broadcast %28 : f32 to vector<1x1x8xf32>
    %179 = vector.broadcast %cst_87 : f32 to vector<1x1x8xf32>
    %180 = arith.select %177, %178, %179 : vector<1x1x8xi1>, vector<1x1x8xf32>
    %181 = arith.addf %175, %180 : vector<1x1x8xf32>
    %c1_i32 = arith.constant 1 : i32
    %182 = vector.broadcast %c1_i32 : i32 to vector<1x1x8xi32>
    %183 = arith.cmpi eq, %174, %182 : vector<1x1x8xi32>
    %cst_88 = arith.constant 0.000000e+00 : f32
    %184 = vector.broadcast %34 : f32 to vector<1x1x8xf32>
    %185 = vector.broadcast %cst_88 : f32 to vector<1x1x8xf32>
    %186 = arith.select %183, %184, %185 : vector<1x1x8xi1>, vector<1x1x8xf32>
    %187 = arith.addf %181, %186 : vector<1x1x8xf32>
    %c2_i32 = arith.constant 2 : i32
    %188 = vector.broadcast %c2_i32 : i32 to vector<1x1x8xi32>
    %189 = arith.cmpi eq, %174, %188 : vector<1x1x8xi32>
    %cst_89 = arith.constant 0.000000e+00 : f32
    %190 = vector.broadcast %45 : f32 to vector<1x1x8xf32>
    %191 = vector.broadcast %cst_89 : f32 to vector<1x1x8xf32>
    %192 = arith.select %189, %190, %191 : vector<1x1x8xi1>, vector<1x1x8xf32>
    %193 = arith.addf %187, %192 : vector<1x1x8xf32>
    %c3_i32 = arith.constant 3 : i32
    %194 = vector.broadcast %c3_i32 : i32 to vector<1x1x8xi32>
    %195 = arith.cmpi eq, %174, %194 : vector<1x1x8xi32>
    %cst_90 = arith.constant 0.000000e+00 : f32
    %196 = vector.broadcast %56 : f32 to vector<1x1x8xf32>
    %197 = vector.broadcast %cst_90 : f32 to vector<1x1x8xf32>
    %198 = arith.select %195, %196, %197 : vector<1x1x8xi1>, vector<1x1x8xf32>
    %199 = arith.addf %193, %198 : vector<1x1x8xf32>
    %c4_i32 = arith.constant 4 : i32
    %200 = vector.broadcast %c4_i32 : i32 to vector<1x1x8xi32>
    %201 = arith.cmpi eq, %174, %200 : vector<1x1x8xi32>
    %cst_91 = arith.constant 0.000000e+00 : f32
    %202 = vector.broadcast %67 : f32 to vector<1x1x8xf32>
    %203 = vector.broadcast %cst_91 : f32 to vector<1x1x8xf32>
    %204 = arith.select %201, %202, %203 : vector<1x1x8xi1>, vector<1x1x8xf32>
    %205 = arith.addf %199, %204 : vector<1x1x8xf32>
    %c5_i32 = arith.constant 5 : i32
    %206 = vector.broadcast %c5_i32 : i32 to vector<1x1x8xi32>
    %207 = arith.cmpi eq, %174, %206 : vector<1x1x8xi32>
    %cst_92 = arith.constant 0.000000e+00 : f32
    %208 = vector.broadcast %107 : f32 to vector<1x1x8xf32>
    %209 = vector.broadcast %cst_92 : f32 to vector<1x1x8xf32>
    %210 = arith.select %207, %208, %209 : vector<1x1x8xi1>, vector<1x1x8xf32>
    %211 = arith.addf %205, %210 : vector<1x1x8xf32>
    %c6_i32 = arith.constant 6 : i32
    %212 = vector.broadcast %c6_i32 : i32 to vector<1x1x8xi32>
    %213 = arith.cmpi eq, %174, %212 : vector<1x1x8xi32>
    %cst_93 = arith.constant 0.000000e+00 : f32
    %214 = vector.broadcast %140 : f32 to vector<1x1x8xf32>
    %215 = vector.broadcast %cst_93 : f32 to vector<1x1x8xf32>
    %216 = arith.select %213, %214, %215 : vector<1x1x8xi1>, vector<1x1x8xf32>
    %217 = arith.addf %211, %216 : vector<1x1x8xf32>
    %c7_i32 = arith.constant 7 : i32
    %218 = vector.broadcast %c7_i32 : i32 to vector<1x1x8xi32>
    %219 = arith.cmpi eq, %174, %218 : vector<1x1x8xi32>
    %cst_94 = arith.constant 0.000000e+00 : f32
    %220 = vector.broadcast %173 : f32 to vector<1x1x8xf32>
    %221 = vector.broadcast %cst_94 : f32 to vector<1x1x8xf32>
    %222 = arith.select %219, %220, %221 : vector<1x1x8xi1>, vector<1x1x8xf32>
    %223 = arith.addf %217, %222 : vector<1x1x8xf32>
    %c0_95 = arith.constant 0 : index
    %c0_96 = arith.constant 0 : index
    %c0_97 = arith.constant 0 : index
    %224 = vector.load %arg11[%c0_95, %c0_96, %c0_97] : memref<1x1x8xf32, #tpu.memory_space<vmem>>, vector<1x1x8xf32>
    tpu.vector_store %arg11[%c0_95, %c0_96, %c0_97], %223 {strides = array<i32>} : memref<1x1x8xf32, #tpu.memory_space<vmem>>, vector<1x1x8xf32>,
    return
  }
  func.func @transform_0(%arg0: i32) -> (i32, i32, i32) {
    %c0_i32 = arith.constant 0 : i32
    %c0_i32_0 = arith.constant 0 : i32
    %c0_i32_1 = arith.constant 0 : i32
    return %arg0, %c0_i32, %c0_i32_0 : i32, i32, i32
  }
  func.func @transform_1(%arg0: i32) -> (i32, i32, i32) {
    %c0_i32 = arith.constant 0 : i32
    %c0_i32_0 = arith.constant 0 : i32
    %c0_i32_1 = arith.constant 0 : i32
    return %arg0, %c0_i32, %c0_i32_0 : i32, i32, i32
  }
  func.func @transform_2(%arg0: i32) -> (i32, i32, i32) {
    %c0_i32 = arith.constant 0 : i32
    %c0_i32_0 = arith.constant 0 : i32
    %c0_i32_1 = arith.constant 0 : i32
    return %arg0, %c0_i32, %c0_i32_0 : i32, i32, i32
  }
  func.func @transform_3(%arg0: i32) -> (i32, i32, i32) {
    %c0_i32 = arith.constant 0 : i32
    %c0_i32_0 = arith.constant 0 : i32
    %c0_i32_1 = arith.constant 0 : i32
    return %arg0, %c0_i32, %c0_i32_0 : i32, i32, i32
  }
  func.func @transform_4(%arg0: i32) -> (i32, i32) {
    %c0_i32 = arith.constant 0 : i32
    %c0_i32_0 = arith.constant 0 : i32
    %c0_i32_1 = arith.constant 0 : i32
    return %c0_i32, %c0_i32_0 : i32, i32
  }
  func.func @transform_5(%arg0: i32) -> (i32, i32) {
    %c0_i32 = arith.constant 0 : i32
    %c0_i32_0 = arith.constant 0 : i32
    %c0_i32_1 = arith.constant 0 : i32
    return %c0_i32, %c0_i32_0 : i32, i32
  }
  func.func @transform_6(%arg0: i32) -> (i32, i32) {
    %c0_i32 = arith.constant 0 : i32
    %c0_i32_0 = arith.constant 0 : i32
    %c0_i32_1 = arith.constant 0 : i32
    return %c0_i32, %c0_i32_0 : i32, i32
  }
  func.func @transform_7(%arg0: i32) -> (i32, i32) {
    %c0_i32 = arith.constant 0 : i32
    %c0_i32_0 = arith.constant 0 : i32
    %c0_i32_1 = arith.constant 0 : i32
    return %c0_i32, %c0_i32_0 : i32, i32
  }
  func.func @transform_8(%arg0: i32) -> (i32, i32) {
    %c0_i32 = arith.constant 0 : i32
    %c0_i32_0 = arith.constant 0 : i32
    %c0_i32_1 = arith.constant 0 : i32
    return %c0_i32, %c0_i32_0 : i32, i32
  }
  func.func @transform_9(%arg0: i32) -> (i32, i32) {
    %c0_i32 = arith.constant 0 : i32
    %c0_i32_0 = arith.constant 0 : i32
    %c0_i32_1 = arith.constant 0 : i32
    return %c0_i32, %c0_i32_0 : i32, i32
  }
  func.func @transform_10(%arg0: i32) -> (i32, i32, i32) {
    %c0_i32 = arith.constant 0 : i32
    %c0_i32_0 = arith.constant 0 : i32
    %c0_i32_1 = arith.constant 0 : i32
    return %arg0, %c0_i32, %c0_i32_0 : i32, i32, i32
  }
}

</mosaic_0001>

<llo_original>
// kernel: tpu_custom_call.1
$region0: #{tpu_custom_call.1}
  #allocation0 [shape = 'u32[]', space=smem, size = 0x4, offset = 0x4, fixed_abs, tag = 'smem constant byte address 0x4 - core index']
  #allocation1 [shape = 'u32[144,128]{1,0:T(1,128)}', space=vmem, size = 0x12000, scoped, tag = 'internal scratch']
  %s0 = inlined_call_operand.hbm [shape: f32[2,16,16], index: 0, kind: input, shape index: {}]
  %s1 = inlined_call_operand.hbm [shape: f32[2,16,16], index: 1, kind: input, shape index: {}]
  %s2 = inlined_call_operand.hbm [shape: f32[2,16,16], index: 2, kind: input, shape index: {}]
  %s3 = inlined_call_operand.hbm [shape: f32[2,16,16], index: 3, kind: input, shape index: {}]
  %s4 = inlined_call_operand.hbm [shape: f32[16,16], index: 4, kind: input, shape index: {}]
  %s5 = inlined_call_operand.vmem [shape: f32[16,16], index: 5, kind: input, shape index: {}]
  %s6 = inlined_call_operand.hbm [shape: f32[16,16], index: 6, kind: input, shape index: {}]
  %s7 = inlined_call_operand.hbm [shape: f32[16,16], index: 7, kind: input, shape index: {}]
  %s8 = inlined_call_operand.hbm [shape: f32[16,16], index: 8, kind: input, shape index: {}]
  %s9 = inlined_call_operand.vmem [shape: f32[16,16], index: 9, kind: input, shape index: {}]
  %s10 = inlined_call_operand.hbm [shape: f32[2,1,8], index: 10, kind: output, shape index: {}]
  %s11 = sld [smem:[#allocation0]]
  $region105: #{tpu_custom_call.1} parent=0
    _
  %s13 = ssub.s32 1, %s11
  %s14 = scalar_select 0, %s13, %s11
  $region1: #{tpu_custom_call.1} parent=0
    #allocation2 [shape = 'u8[16384]{0}', space=vmem, size = 0x4000, scoped, tag = 'input window, operand 0']
    #allocation3 [shape = 's32[2]{0}', space=sflag, size = 0x8, scoped, tag = 'scoped memory for tpu_custom_call.1']
    #allocation4 [shape = 's32[2]{0}', space=sflag, size = 0x8, scoped, tag = 'scoped memory for tpu_custom_call.1']
    #allocation5 [shape = 'u8[16384]{0}', space=vmem, size = 0x4000, scoped, tag = 'input window, operand 1']
    #allocation6 [shape = 's32[2]{0}', space=sflag, size = 0x8, scoped, tag = 'scoped memory for tpu_custom_call.1']
    #allocation7 [shape = 'u8[16384]{0}', space=vmem, size = 0x4000, scoped, tag = 'input window, operand 2']
    #allocation8 [shape = 'u8[16384]{0}', space=vmem, size = 0x4000, scoped, tag = 'input window, operand 3']
    #allocation9 [shape = 's32[2]{0}', space=sflag, size = 0x8, scoped, tag = 'scoped memory for tpu_custom_call.1']
    #allocation10 [shape = 'u8[8192]{0}', space=vmem, size = 0x2000, scoped, tag = 'input window, operand 4, single buffered']
    #allocation11 [shape = 'u8[8192]{0}', space=vmem, size = 0x2000, scoped, tag = 'input window, operand 6, single buffered']
    #allocation12 [shape = 's32[1]{0}', space=sflag, size = 0x4, scoped, tag = 'scoped memory for tpu_custom_call.1']
    #allocation13 [shape = 'u8[8192]{0}', space=vmem, size = 0x2000, scoped, tag = 'input window, operand 7, single buffered']
    #allocation14 [shape = 'u8[8192]{0}', space=vmem, size = 0x2000, scoped, tag = 'input window, operand 8, single buffered']
    #allocation15 [shape = 's32[1]{0}', space=sflag, size = 0x4, scoped, tag = 'scoped memory for tpu_custom_call.1']
    #allocation16 [shape = 'u8[1024]{0}', space=vmem, size = 0x400, scoped, tag = 'output window, operand 0']
    %15 = vsyncpa [#allocation3], 0
    %s16 = scalar_lea.sflag [#allocation3], 1
    %17 = vsyncpa %s16, 0
    %18 = vsyncpa [#allocation6], 0
    %s19 = scalar_lea.sflag [#allocation6], 1
    %20 = vsyncpa %s19, 0
    %21 = vsyncpa [#allocation9], 0
    %s22 = scalar_lea.sflag [#allocation9], 1
    %23 = vsyncpa %s22, 0
    %24 = vsyncpa [#allocation12], 0
    %25 = vsyncpa [#allocation15], 0
    %26 = vsyncpa [#allocation4], 0
    %s27 = scalar_lea.sflag [#allocation4], 1
    %28 = vsyncpa %s27, 0
    loop: start=0, step=1, limit=4
    $region2: #{tpu_custom_call.1} parent=1 // loop_pre_header
      _
    $region3: #{tpu_custom_call.1} parent=1 // loop_header
      %s30 = sphi 0, %s34
      %p31 = scmp.ge.s32.totalorder %s30, 4
      %s40 = sphi 0, %s42
      %s43 = sphi 0, %s40
      %s44 = sphi 0, %s43
      %s60 = sphi 0, %s44
      %s66 = sphi 0, %s68
      %s69 = sphi 0, %s66
      %s70 = sphi 0, %s69
      %s86 = sphi 0, %s70
      %s92 = sphi 0, %s94
      %s95 = sphi 0, %s92
      %s96 = sphi 0, %s95
      %s112 = sphi 0, %s96
      %s118 = sphi 0, %s120
      %s121 = sphi 0, %s118
      %s122 = sphi 0, %s121
      %s138 = sphi 0, %s122
      %s142 = sphi 0, %s142
      %s144 = sphi 0, %s142
      %s145 = sphi 0, %s144
      %s159 = sphi 0, %s145
      %s163 = sphi 0, %s163
      %s165 = sphi 0, %s163
      %s166 = sphi 0, %s165
      %s180 = sphi 0, %s166
      %s184 = sphi 0, %s184
      %s186 = sphi 0, %s184
      %s187 = sphi 0, %s186
      %s201 = sphi 0, %s187
      %s205 = sphi 0, %s205
      %s207 = sphi 0, %s205
      %s208 = sphi 0, %s207
      %s222 = sphi 0, %s208
      %s226 = sphi 0, %s226
      %s228 = sphi 0, %s226
      %s229 = sphi 0, %s228
      %s243 = sphi 0, %s229
      %s247 = sphi 0, %s247
      %s249 = sphi 0, %s247
      %s250 = sphi 0, %s249
      %s264 = sphi 0, %s250
      %s270 = sphi 0, %s272
      %s273 = sphi 0, %s270
      %s274 = sphi 0, %s273
      %s290 = sphi 0, %s274
    $region4: #{tpu_custom_call.1} parent=1 // loop_header_branch
      %33 = sbr.rel (%p31) target = $region8
    $region5: #{tpu_custom_call.1} parent=1 // loop_body
      %s35 = ssub.s32 %s30, 1
      %s36 = ssub.s32 %s30, 2
      %s37 = sadd.s32 %s30, 1
      %s38 = ssub.s32 %s30, %s37
      %p39 = scmp.eq.s32.totalorder %s38, 0
      %s41 = sadd.s32 %s40, 1
      %s42 = scalar_select %p39, %s40, %s41
      %p45 = pneg %p39
      %p46 = scmp.eq.s32.totalorder %s30, 1
      %p47 = por %p45, %p46
      %p48 = scmp.ne.s32.totalorder %s40, %s43
      %p49 = scmp.eq.s32.totalorder %s30, 0
      %p50 = por %p48, %p49
      %p51 = scmp.ne.s32.totalorder %s40, %s43
      %p52 = scmp.eq.s32.totalorder %s35, 1
      %p53 = por %p51, %p52
      %p54 = scmp.ne.s32.totalorder %s43, %s44
      %p55 = scmp.eq.s32.totalorder %s35, 0
      %p56 = por %p54, %p55
      %p57 = scmp.ne.s32.totalorder %s43, %s44
      %p58 = scmp.eq.s32.totalorder %s36, 1
      %p59 = por %p57, %p58
      %p61 = scmp.ne.s32.totalorder %s44, %s60
      %p62 = scmp.eq.s32.totalorder %s36, 0
      %p63 = por %p61, %p62
      %s64 = ssub.s32 %s30, %s37
      %p65 = scmp.eq.s32.totalorder %s64, 0
      %s67 = sadd.s32 %s66, 1
      %s68 = scalar_select %p65, %s66, %s67
      %p71 = pneg %p65
      %p72 = scmp.eq.s32.totalorder %s30, 1
      %p73 = por %p71, %p72
      %p74 = scmp.ne.s32.totalorder %s66, %s69
      %p75 = scmp.eq.s32.totalorder %s30, 0
      %p76 = por %p74, %p75
      %p77 = scmp.ne.s32.totalorder %s66, %s69
      %p78 = scmp.eq.s32.totalorder %s35, 1
      %p79 = por %p77, %p78
      %p80 = scmp.ne.s32.totalorder %s69, %s70
      %p81 = scmp.eq.s32.totalorder %s35, 0
      %p82 = por %p80, %p81
      %p83 = scmp.ne.s32.totalorder %s69, %s70
      %p84 = scmp.eq.s32.totalorder %s36, 1
      %p85 = por %p83, %p84
      %p87 = scmp.ne.s32.totalorder %s70, %s86
      %p88 = scmp.eq.s32.totalorder %s36, 0
      %p89 = por %p87, %p88
      %s90 = ssub.s32 %s30, %s37
      %p91 = scmp.eq.s32.totalorder %s90, 0
      %s93 = sadd.s32 %s92, 1
      %s94 = scalar_select %p91, %s92, %s93
      %p97 = pneg %p91
      %p98 = scmp.eq.s32.totalorder %s30, 1
      %p99 = por %p97, %p98
      %p100 = scmp.ne.s32.totalorder %s92, %s95
      %p101 = scmp.eq.s32.totalorder %s30, 0
      %p102 = por %p100, %p101
      %p103 = scmp.ne.s32.totalorder %s92, %s95
      %p104 = scmp.eq.s32.totalorder %s35, 1
      %p105 = por %p103, %p104
      %p106 = scmp.ne.s32.totalorder %s95, %s96
      %p107 = scmp.eq.s32.totalorder %s35, 0
      %p108 = por %p106, %p107
      %p109 = scmp.ne.s32.totalorder %s95, %s96
      %p110 = scmp.eq.s32.totalorder %s36, 1
      %p111 = por %p109, %p110
      %p113 = scmp.ne.s32.totalorder %s96, %s112
      %p114 = scmp.eq.s32.totalorder %s36, 0
      %p115 = por %p113, %p114
      %s116 = ssub.s32 %s30, %s37
      %p117 = scmp.eq.s32.totalorder %s116, 0
      %s119 = sadd.s32 %s118, 1
      %s120 = scalar_select %p117, %s118, %s119
      %p123 = pneg %p117
      %p124 = scmp.eq.s32.totalorder %s30, 1
      %p125 = por %p123, %p124
      %p126 = scmp.ne.s32.totalorder %s118, %s121
      %p127 = scmp.eq.s32.totalorder %s30, 0
      %p128 = por %p126, %p127
      %p129 = scmp.ne.s32.totalorder %s118, %s121
      %p130 = scmp.eq.s32.totalorder %s35, 1
      %p131 = por %p129, %p130
      %p132 = scmp.ne.s32.totalorder %s121, %s122
      %p133 = scmp.eq.s32.totalorder %s35, 0
      %p134 = por %p132, %p133
      %p135 = scmp.ne.s32.totalorder %s121, %s122
      %p136 = scmp.eq.s32.totalorder %s36, 1
      %p137 = por %p135, %p136
      %p139 = scmp.ne.s32.totalorder %s122, %s138
      %p140 = scmp.eq.s32.totalorder %s36, 0
      %p141 = por %p139, %p140
      %s143 = sadd.s32 %s142, 1
      %p146 = scmp.eq.s32.totalorder %s30, 1
      %p147 = scmp.ne.s32.totalorder %s142, %s144
      %p148 = scmp.eq.s32.totalorder %s30, 0
      %p149 = por %p147, %p148
      %p150 = scmp.ne.s32.totalorder %s142, %s144
      %p151 = scmp.eq.s32.totalorder %s35, 1
      %p152 = por %p150, %p151
      %p153 = scmp.ne.s32.totalorder %s144, %s145
      %p154 = scmp.eq.s32.totalorder %s35, 0
      %p155 = por %p153, %p154
      %p156 = scmp.ne.s32.totalorder %s144, %s145
      %p157 = scmp.eq.s32.totalorder %s36, 1
      %p158 = por %p156, %p157
      %p160 = scmp.ne.s32.totalorder %s145, %s159
      %p161 = scmp.eq.s32.totalorder %s36, 0
      %p162 = por %p160, %p161
      %s164 = sadd.s32 %s163, 1
      %p167 = scmp.eq.s32.totalorder %s30, 1
      %p168 = scmp.ne.s32.totalorder %s163, %s165
      %p169 = scmp.eq.s32.totalorder %s30, 0
      %p170 = por %p168, %p169
      %p171 = scmp.ne.s32.totalorder %s163, %s165
      %p172 = scmp.eq.s32.totalorder %s35, 1
      %p173 = por %p171, %p172
      %p174 = scmp.ne.s32.totalorder %s165, %s166
      %p175 = scmp.eq.s32.totalorder %s35, 0
      %p176 = por %p174, %p175
      %p177 = scmp.ne.s32.totalorder %s165, %s166
      %p178 = scmp.eq.s32.totalorder %s36, 1
      %p179 = por %p177, %p178
      %p181 = scmp.ne.s32.totalorder %s166, %s180
      %p182 = scmp.eq.s32.totalorder %s36, 0
      %p183 = por %p181, %p182
      %s185 = sadd.s32 %s184, 1
      %p188 = scmp.eq.s32.totalorder %s30, 1
      %p189 = scmp.ne.s32.totalorder %s184, %s186
      %p190 = scmp.eq.s32.totalorder %s30, 0
      %p191 = por %p189, %p190
      %p192 = scmp.ne.s32.totalorder %s184, %s186
      %p193 = scmp.eq.s32.totalorder %s35, 1
      %p194 = por %p192, %p193
      %p195 = scmp.ne.s32.totalorder %s186, %s187
      %p196 = scmp.eq.s32.totalorder %s35, 0
      %p197 = por %p195, %p196
      %p198 = scmp.ne.s32.totalorder %s186, %s187
      %p199 = scmp.eq.s32.totalorder %s36, 1
      %p200 = por %p198, %p199
      %p202 = scmp.ne.s32.totalorder %s187, %s201
      %p203 = scmp.eq.s32.totalorder %s36, 0
      %p204 = por %p202, %p203
      %s206 = sadd.s32 %s205, 1
      %p209 = scmp.eq.s32.totalorder %s30, 1
      %p210 = scmp.ne.s32.totalorder %s205, %s207
      %p211 = scmp.eq.s32.totalorder %s30, 0
      %p212 = por %p210, %p211
      %p213 = scmp.ne.s32.totalorder %s205, %s207
      %p214 = scmp.eq.s32.totalorder %s35, 1
      %p215 = por %p213, %p214
      %p216 = scmp.ne.s32.totalorder %s207, %s208
      %p217 = scmp.eq.s32.totalorder %s35, 0
      %p218 = por %p216, %p217
      %p219 = scmp.ne.s32.totalorder %s207, %s208
      %p220 = scmp.eq.s32.totalorder %s36, 1
      %p221 = por %p219, %p220
      %p223 = scmp.ne.s32.totalorder %s208, %s222
      %p224 = scmp.eq.s32.totalorder %s36, 0
      %p225 = por %p223, %p224
      %s227 = sadd.s32 %s226, 1
      %p230 = scmp.eq.s32.totalorder %s30, 1
      %p231 = scmp.ne.s32.totalorder %s226, %s228
      %p232 = scmp.eq.s32.totalorder %s30, 0
      %p233 = por %p231, %p232
      %p234 = scmp.ne.s32.totalorder %s226, %s228
      %p235 = scmp.eq.s32.totalorder %s35, 1
      %p236 = por %p234, %p235
      %p237 = scmp.ne.s32.totalorder %s228, %s229
      %p238 = scmp.eq.s32.totalorder %s35, 0
      %p239 = por %p237, %p238
      %p240 = scmp.ne.s32.totalorder %s228, %s229
      %p241 = scmp.eq.s32.totalorder %s36, 1
      %p242 = por %p240, %p241
      %p244 = scmp.ne.s32.totalorder %s229, %s243
      %p245 = scmp.eq.s32.totalorder %s36, 0
      %p246 = por %p244, %p245
      %s248 = sadd.s32 %s247, 1
      %p251 = scmp.eq.s32.totalorder %s30, 1
      %p252 = scmp.ne.s32.totalorder %s247, %s249
      %p253 = scmp.eq.s32.totalorder %s30, 0
      %p254 = por %p252, %p253
      %p255 = scmp.ne.s32.totalorder %s247, %s249
      %p256 = scmp.eq.s32.totalorder %s35, 1
      %p257 = por %p255, %p256
      %p258 = scmp.ne.s32.totalorder %s249, %s250
      %p259 = scmp.eq.s32.totalorder %s35, 0
      %p260 = por %p258, %p259
      %p261 = scmp.ne.s32.totalorder %s249, %s250
      %p262 = scmp.eq.s32.totalorder %s36, 1
      %p263 = por %p261, %p262
      %p265 = scmp.ne.s32.totalorder %s250, %s264
      %p266 = scmp.eq.s32.totalorder %s36, 0
      %p267 = por %p265, %p266
      %s268 = ssub.s32 %s30, %s37
      %p269 = scmp.eq.s32.totalorder %s268, 0
      %s271 = sadd.s32 %s270, 1
      %s272 = scalar_select %p269, %s270, %s271
      %p275 = pneg %p269
      %p276 = scmp.eq.s32.totalorder %s30, 1
      %p277 = por %p275, %p276
      %p278 = scmp.ne.s32.totalorder %s270, %s273
      %p279 = scmp.eq.s32.totalorder %s30, 0
      %p280 = por %p278, %p279
      %p281 = scmp.ne.s32.totalorder %s270, %s273
      %p282 = scmp.eq.s32.totalorder %s35, 1
      %p283 = por %p281, %p282
      %p284 = scmp.ne.s32.totalorder %s273, %s274
      %p285 = scmp.eq.s32.totalorder %s35, 0
      %p286 = por %p284, %p285
      %p287 = scmp.ne.s32.totalorder %s273, %s274
      %p288 = scmp.eq.s32.totalorder %s36, 1
      %p289 = por %p287, %p288
      %p291 = scmp.ne.s32.totalorder %s274, %s290
      %p292 = scmp.eq.s32.totalorder %s36, 0
      %p293 = por %p291, %p292
      %p294 = scmp.le.s32.totalorder 1, %s30
      %p295 = scmp.lt.s32.totalorder %s30, 3
      %p296 = pnand %p294, %p295
      %p297 = pneg %p296
      // Predicated region
      $region9: #{tpu_custom_call.1} parent=5 // pred_check
        _
      $region10: #{tpu_custom_call.1} parent=5 // pred_check_branch
        %299 = sbr.rel (%p296) target = $region12
      $region11: #{tpu_custom_call.1} parent=5 // pred_region
        %s300 = ssub.s32 %s30, 1
        // Predicated region
        $region13: #{tpu_custom_call.1} parent=11 // pred_check
          %p301 = pneg %p155
        $region14: #{tpu_custom_call.1} parent=11 // pred_check_branch
          %303 = sbr.rel (%p301) target = $region16
        $region15: #{tpu_custom_call.1} parent=11 // pred_region
          %s305 = ssub.s32 256, 256
          %306 = vsyncadd [#allocation9], %s305
          %s307 = sshll.u32 [#allocation10], 4
          %s308 = int_to_ptr.vmem [resolvable:$true] %s307
          %313 = dma.hbm_to_vmem [thread:$0]  %s4, 256, %s308, [#allocation9], 128, 128, 8
        $region16: #{tpu_custom_call.1} parent=11 // pred_fallthru
          _
        // Predicated region
        $region17: #{tpu_custom_call.1} parent=11 // pred_check
          %p314 = pneg %p176
        $region18: #{tpu_custom_call.1} parent=11 // pred_check_branch
          %316 = sbr.rel (%p314) target = $region20
        $region19: #{tpu_custom_call.1} parent=11 // pred_region
          _
        $region20: #{tpu_custom_call.1} parent=11 // pred_fallthru
          _
        // Predicated region
        $region21: #{tpu_custom_call.1} parent=11 // pred_check
          %p317 = pneg %p197
        $region22: #{tpu_custom_call.1} parent=11 // pred_check_branch
          %319 = sbr.rel (%p317) target = $region24
        $region23: #{tpu_custom_call.1} parent=11 // pred_region
          %s321 = ssub.s32 256, 256
          %322 = vsyncadd [#allocation12], %s321
          %s323 = sshll.u32 [#allocation11], 4
          %s324 = int_to_ptr.vmem [resolvable:$true] %s323
          %329 = dma.hbm_to_vmem [thread:$0]  %s6, 256, %s324, [#allocation12], 128, 128, 8
        $region24: #{tpu_custom_call.1} parent=11 // pred_fallthru
          _
        // Predicated region
        $region25: #{tpu_custom_call.1} parent=11 // pred_check
          %p330 = pneg %p218
        $region26: #{tpu_custom_call.1} parent=11 // pred_check_branch
          %332 = sbr.rel (%p330) target = $region28
        $region27: #{tpu_custom_call.1} parent=11 // pred_region
          %s334 = ssub.s32 256, 256
          %335 = vsyncadd [#allocation12], %s334
          %s336 = sshll.u32 [#allocation13], 4
          %s337 = int_to_ptr.vmem [resolvable:$true] %s336
          %342 = dma.hbm_to_vmem [thread:$0]  %s7, 256, %s337, [#allocation12], 128, 128, 8
        $region28: #{tpu_custom_call.1} parent=11 // pred_fallthru
          _
        // Predicated region
        $region29: #{tpu_custom_call.1} parent=11 // pred_check
          %p343 = pneg %p239
        $region30: #{tpu_custom_call.1} parent=11 // pred_check_branch
          %345 = sbr.rel (%p343) target = $region32
        $region31: #{tpu_custom_call.1} parent=11 // pred_region
          %s347 = ssub.s32 256, 256
          %348 = vsyncadd [#allocation15], %s347
          %s349 = sshll.u32 [#allocation14], 4
          %s350 = int_to_ptr.vmem [resolvable:$true] %s349
          %355 = dma.hbm_to_vmem [thread:$0]  %s8, 256, %s350, [#allocation15], 128, 128, 8
        $region32: #{tpu_custom_call.1} parent=11 // pred_fallthru
          _
        // Predicated region
        $region33: #{tpu_custom_call.1} parent=11 // pred_check
          %p356 = pneg %p260
        $region34: #{tpu_custom_call.1} parent=11 // pred_check_branch
          %358 = sbr.rel (%p356) target = $region36
        $region35: #{tpu_custom_call.1} parent=11 // pred_region
          _
        $region36: #{tpu_custom_call.1} parent=11 // pred_fallthru
          _
      $region12: #{tpu_custom_call.1} parent=5 // pred_fallthru
        _
      %p359 = scmp.lt.s32.totalorder %s30, 2
      // Predicated region
      $region37: #{tpu_custom_call.1} parent=5 // pred_check
        %p360 = pneg %p359
      $region38: #{tpu_custom_call.1} parent=5 // pred_check_branch
        %362 = sbr.rel (%p360) target = $region40
      $region39: #{tpu_custom_call.1} parent=5 // pred_region
        // Predicated region
        $region41: #{tpu_custom_call.1} parent=39 // pred_check
          %p363 = pneg %p50
        $region42: #{tpu_custom_call.1} parent=39 // pred_check_branch
          %365 = sbr.rel (%p363) target = $region44
        $region43: #{tpu_custom_call.1} parent=39 // pred_region
          %s366 = sand.u32 %s40, 1
          %s367 = scalar_lea.sflag [#allocation3], %s366
          %s368 = sand.u32 %s40, 1
          %s369 = smul.addr %s368, 16
          %s370 = scalar_lea.vmem [#allocation2], %s369
          %s372 = ssub.s32 256, 256
          %373 = vsyncadd %s367, %s372
          %s374 = smul.addr %s30, 2
          %s375 = smul.addr %s374, 128
          %s376 = scalar_lea.hbm %s0, %s375
          %s377 = sshll.u32 %s370, 4
          %s378 = int_to_ptr.vmem [resolvable:$true] %s377
          %383 = dma.hbm_to_vmem [thread:$0]  %s376, 256, %s378, %s367, 128, 128, 8
        $region44: #{tpu_custom_call.1} parent=39 // pred_fallthru
          _
        // Predicated region
        $region45: #{tpu_custom_call.1} parent=39 // pred_check
          %p384 = pneg %p76
        $region46: #{tpu_custom_call.1} parent=39 // pred_check_branch
          %386 = sbr.rel (%p384) target = $region48
        $region47: #{tpu_custom_call.1} parent=39 // pred_region
          %s387 = sand.u32 %s30, 1
          %s388 = scalar_lea.sflag [#allocation6], %s387
          %s389 = sand.u32 %s66, 1
          %s390 = smul.addr %s389, 16
          %s391 = scalar_lea.vmem [#allocation5], %s390
          %s393 = ssub.s32 256, 256
          %394 = vsyncadd %s388, %s393
          %s395 = smul.addr %s30, 2
          %s396 = smul.addr %s395, 128
          %s397 = scalar_lea.hbm %s1, %s396
          %s398 = sshll.u32 %s391, 4
          %s399 = int_to_ptr.vmem [resolvable:$true] %s398
          %404 = dma.hbm_to_vmem [thread:$0]  %s397, 256, %s399, %s388, 128, 128, 8
        $region48: #{tpu_custom_call.1} parent=39 // pred_fallthru
          _
        // Predicated region
        $region49: #{tpu_custom_call.1} parent=39 // pred_check
          %p405 = pneg %p102
        $region50: #{tpu_custom_call.1} parent=39 // pred_check_branch
          %407 = sbr.rel (%p405) target = $region52
        $region51: #{tpu_custom_call.1} parent=39 // pred_region
          %s408 = sand.u32 %s30, 1
          %s409 = scalar_lea.sflag [#allocation6], %s408
          %s410 = sand.u32 %s92, 1
          %s411 = smul.addr %s410, 16
          %s412 = scalar_lea.vmem [#allocation7], %s411
          %s414 = ssub.s32 256, 256
          %415 = vsyncadd %s409, %s414
          %s416 = smul.addr %s30, 2
          %s417 = smul.addr %s416, 128
          %s418 = scalar_lea.hbm %s2, %s417
          %s419 = sshll.u32 %s412, 4
          %s420 = int_to_ptr.vmem [resolvable:$true] %s419
          %425 = dma.hbm_to_vmem [thread:$0]  %s418, 256, %s420, %s409, 128, 128, 8
        $region52: #{tpu_custom_call.1} parent=39 // pred_fallthru
          _
        // Predicated region
        $region53: #{tpu_custom_call.1} parent=39 // pred_check
          %p426 = pneg %p128
        $region54: #{tpu_custom_call.1} parent=39 // pred_check_branch
          %428 = sbr.rel (%p426) target = $region56
        $region55: #{tpu_custom_call.1} parent=39 // pred_region
          %s429 = sand.u32 %s30, 1
          %s430 = scalar_lea.sflag [#allocation9], %s429
          %s431 = sand.u32 %s118, 1
          %s432 = smul.addr %s431, 16
          %s433 = scalar_lea.vmem [#allocation8], %s432
          %s435 = ssub.s32 256, 256
          %436 = vsyncadd %s430, %s435
          %s437 = smul.addr %s30, 2
          %s438 = smul.addr %s437, 128
          %s439 = scalar_lea.hbm %s3, %s438
          %s440 = sshll.u32 %s433, 4
          %s441 = int_to_ptr.vmem [resolvable:$true] %s440
          %446 = dma.hbm_to_vmem [thread:$0]  %s439, 256, %s441, %s430, 128, 128, 8
        $region56: #{tpu_custom_call.1} parent=39 // pred_fallthru
          _
      $region40: #{tpu_custom_call.1} parent=5 // pred_fallthru
        _
      %p447 = scmp.le.s32.totalorder 1, %s30
      %p448 = scmp.lt.s32.totalorder %s30, 3
      %p449 = pnand %p447, %p448
      %p450 = pneg %p449
      // Predicated region
      $region57: #{tpu_custom_call.1} parent=5 // pred_check
        _
      $region58: #{tpu_custom_call.1} parent=5 // pred_check_branch
        %452 = sbr.rel (%p449) target = $region60
      $region59: #{tpu_custom_call.1} parent=5 // pred_region
        %s453 = ssub.s32 %s30, 1
        %s454 = sand.u32 %s43, 1
        %s455 = scalar_lea.sflag [#allocation3], %s454
        %s456 = sand.u32 %s43, 1
        %s457 = smul.addr %s456, 16
        %s458 = scalar_lea.vmem [#allocation2], %s457
        // Predicated region
        $region61: #{tpu_custom_call.1} parent=59 // pred_check
          %p459 = pneg %p56
        $region62: #{tpu_custom_call.1} parent=59 // pred_check_branch
          %461 = sbr.rel (%p459) target = $region64
        $region63: #{tpu_custom_call.1} parent=59 // pred_region
          %462 = dma.done %s455, 256
        $region64: #{tpu_custom_call.1} parent=59 // pred_fallthru
          _
        %s463 = sand.u32 %s35, 1
        %s464 = scalar_lea.sflag [#allocation6], %s463
        %s465 = sand.u32 %s69, 1
        %s466 = smul.addr %s465, 16
        %s467 = scalar_lea.vmem [#allocation5], %s466
        // Predicated region
        $region65: #{tpu_custom_call.1} parent=59 // pred_check
          %p468 = pneg %p82
        $region66: #{tpu_custom_call.1} parent=59 // pred_check_branch
          %470 = sbr.rel (%p468) target = $region68
        $region67: #{tpu_custom_call.1} parent=59 // pred_region
          %471 = dma.done %s464, 256
        $region68: #{tpu_custom_call.1} parent=59 // pred_fallthru
          _
        %s472 = sand.u32 %s35, 1
        %s473 = scalar_lea.sflag [#allocation6], %s472
        %s474 = sand.u32 %s95, 1
        %s475 = smul.addr %s474, 16
        %s476 = scalar_lea.vmem [#allocation7], %s475
        // Predicated region
        $region69: #{tpu_custom_call.1} parent=59 // pred_check
          %p477 = pneg %p108
        $region70: #{tpu_custom_call.1} parent=59 // pred_check_branch
          %479 = sbr.rel (%p477) target = $region72
        $region71: #{tpu_custom_call.1} parent=59 // pred_region
          %480 = dma.done %s473, 256
        $region72: #{tpu_custom_call.1} parent=59 // pred_fallthru
          _
        %s481 = sand.u32 %s35, 1
        %s482 = scalar_lea.sflag [#allocation9], %s481
        %s483 = sand.u32 %s121, 1
        %s484 = smul.addr %s483, 16
        %s485 = scalar_lea.vmem [#allocation8], %s484
        // Predicated region
        $region73: #{tpu_custom_call.1} parent=59 // pred_check
          %p486 = pneg %p134
        $region74: #{tpu_custom_call.1} parent=59 // pred_check_branch
          %488 = sbr.rel (%p486) target = $region76
        $region75: #{tpu_custom_call.1} parent=59 // pred_region
          %489 = dma.done %s482, 256
        $region76: #{tpu_custom_call.1} parent=59 // pred_fallthru
          _
        // Predicated region
        $region77: #{tpu_custom_call.1} parent=59 // pred_check
          %p490 = pneg %p155
        $region78: #{tpu_custom_call.1} parent=59 // pred_check_branch
          %492 = sbr.rel (%p490) target = $region80
        $region79: #{tpu_custom_call.1} parent=59 // pred_region
          %493 = dma.done [#allocation9], 256
        $region80: #{tpu_custom_call.1} parent=59 // pred_fallthru
          _
        // Predicated region
        $region81: #{tpu_custom_call.1} parent=59 // pred_check
          %p494 = pneg %p197
        $region82: #{tpu_custom_call.1} parent=59 // pred_check_branch
          %496 = sbr.rel (%p494) target = $region84
        $region83: #{tpu_custom_call.1} parent=59 // pred_region
          %497 = dma.done [#allocation12], 256
        $region84: #{tpu_custom_call.1} parent=59 // pred_fallthru
          _
        // Predicated region
        $region85: #{tpu_custom_call.1} parent=59 // pred_check
          %p498 = pneg %p218
        $region86: #{tpu_custom_call.1} parent=59 // pred_check_branch
          %500 = sbr.rel (%p498) target = $region88
        $region87: #{tpu_custom_call.1} parent=59 // pred_region
          %501 = dma.done [#allocation12], 256
        $region88: #{tpu_custom_call.1} parent=59 // pred_fallthru
          _
        // Predicated region
        $region89: #{tpu_custom_call.1} parent=59 // pred_check
          %p502 = pneg %p239
        $region90: #{tpu_custom_call.1} parent=59 // pred_check_branch
          %504 = sbr.rel (%p502) target = $region92
        $region91: #{tpu_custom_call.1} parent=59 // pred_region
          %505 = dma.done [#allocation15], 256
        $region92: #{tpu_custom_call.1} parent=59 // pred_fallthru
          _
        %s506 = sand.u32 %s43, 1
        %s507 = scalar_lea.sflag [#allocation3], %s506
        %s508 = sand.u32 %s43, 1
        %s509 = smul.addr %s508, 16
        %s510 = scalar_lea.vmem [#allocation2], %s509
        %p511 = pneg %p56
        %p512 = pneg %p53
        %s513 = sand.u32 %s35, 1
        %s514 = scalar_lea.sflag [#allocation6], %s513
        %s515 = sand.u32 %s69, 1
        %s516 = smul.addr %s515, 16
        %s517 = scalar_lea.vmem [#allocation5], %s516
        %p518 = pneg %p82
        %p519 = pneg %p79
        %s520 = sand.u32 %s35, 1
        %s521 = scalar_lea.sflag [#allocation6], %s520
        %s522 = sand.u32 %s95, 1
        %s523 = smul.addr %s522, 16
        %s524 = scalar_lea.vmem [#allocation7], %s523
        %p525 = pneg %p108
        %p526 = pneg %p105
        %s527 = sand.u32 %s35, 1
        %s528 = scalar_lea.sflag [#allocation9], %s527
        %s529 = sand.u32 %s121, 1
        %s530 = smul.addr %s529, 16
        %s531 = scalar_lea.vmem [#allocation8], %s530
        %p532 = pneg %p134
        %p533 = pneg %p131
        %p534 = pneg %p155
        %p535 = pneg %p152
        %p536 = pneg %p176
        %p537 = pneg %p173
        %p538 = pneg %p197
        %p539 = pneg %p194
        %p540 = pneg %p218
        %p541 = pneg %p215
        %p542 = pneg %p239
        %p543 = pneg %p236
        %p544 = pneg %p260
        %p545 = pneg %p257
        %p546 = pneg %p286
        %p547 = pneg %p283
        %s548 = sand.u32 %s273, 1
        %s549 = scalar_lea.sflag [#allocation4], %s548
        %s550 = sand.u32 %s273, 1
        %s551 = scalar_lea.vmem [#allocation16], %s550
        %v552 = vld [vmem:[%s458] sm:$0xff]
        %v553 = vld [vmem:[%s458 + $0x8] sm:$0xff]
        %v554 = vld [vmem:[%s467] sm:$0xff]
        %v555 = vld [vmem:[%s467 + $0x8] sm:$0xff]
        %v556 = vld [vmem:[%s476] sm:$0xff]
        %v557 = vld [vmem:[%s476 + $0x8] sm:$0xff]
        %v558 = vld [vmem:[%s485] sm:$0xff]
        %v559 = vld [vmem:[%s485 + $0x8] sm:$0xff]
        %v560 = vld [vmem:[#allocation10] sm:$0xff]
        %v561 = vld [vmem:[#allocation10 + $0x8] sm:$0xff]
        %v562 = vld [vmem:[%s5] sm:$0xff]
        %v563 = vld [vmem:[%s5 + $0x8] sm:$0xff]
        %v564 = vld [vmem:[#allocation11] sm:$0xff]
        %v565 = vld [vmem:[#allocation11 + $0x8] sm:$0xff]
        %v566 = vld [vmem:[#allocation13] sm:$0xff]
        %v567 = vld [vmem:[#allocation13 + $0x8] sm:$0xff]
        %v568 = vld [vmem:[#allocation14] sm:$0xff]
        %v569 = vld [vmem:[#allocation14 + $0x8] sm:$0xff]
        %v570 = vld [vmem:[%s9] sm:$0xff]
        %v571 = vld [vmem:[%s9 + $0x8] sm:$0xff]
        %v572 = vmax.f32 %v552, %v554
        %v573 = vmax.f32 %v553, %v555
        %v574 = vmax.f32 %v572, %v556
        %v575 = vmax.f32 %v573, %v557
        %vm576 = vcmask 130048
        %v578 = vsel %vm576, %v558, 0
        %v581 = vsel %vm576, %v559, 0
        %583 = vmatprep.subr.mxu0 0.0
        %584 = vmatpush1.msra.mxu0 %v564
        %585 = vmatprep.subr.mxu0 0.0
        %586 = vmatpush1.msra.mxu0 %v565
        %587 = vmatprep.subr.mxu0 0.0
        %588 = vmatpush1.msra.mxu0 0.0
        %589 = vmatprep.subr.mxu0 0.0
        %590 = vmatpush1.msra.mxu0 0.0
        %591 = vmatprep.subr.mxu0 0.0
        %592 = vmatpush1.msra.mxu0 0.0
        %593 = vmatprep.subr.mxu0 0.0
        %594 = vmatpush1.msra.mxu0 0.0
        %595 = vmatprep.subr.mxu0 0.0
        %596 = vmatpush1.msra.mxu0 0.0
        %597 = vmatprep.subr.mxu0 0.0
        %598 = vmatpush1.msra.mxu0 0.0
        %599 = vmatprep.subr.mxu0 0.0
        %600 = vmatpush1.msra.mxu0 0.0
        %601 = vmatprep.subr.mxu0 0.0
        %602 = vmatpush1.msra.mxu0 0.0
        %603 = vmatprep.subr.mxu0 0.0
        %604 = vmatpush1.msra.mxu0 0.0
        %605 = vmatprep.subr.mxu0 0.0
        %606 = vmatpush1.msra.mxu0 0.0
        %607 = vmatprep.subr.mxu0 0.0
        %608 = vmatpush1.msra.mxu0 0.0
        %609 = vmatprep.subr.mxu0 0.0
        %610 = vmatpush1.msra.mxu0 0.0
        %611 = vmatprep.subr.mxu0 0.0
        %612 = vmatpush1.msra.mxu0 0.0
        %613 = vmatprep.subr.mxu0 0.0
        %614 = vmatpush1.msra.mxu0 0.0
        %615 = vmatprep.subr.mxu0 0.0
        %616 = vmatpush1.msra.mxu0 0.0
        %617 = vmatprep.subr.mxu0 0.0
        %618 = vmatpush1.msra.mxu0 0.0
        %619 = vmatprep.subr.mxu0 0.0
        %620 = vmatpush1.msra.mxu0 0.0
        %621 = vmatprep.subr.mxu0 0.0
        %622 = vmatpush1.msra.mxu0 0.0
        %623 = vmatprep.subr.mxu0 0.0
        %624 = vmatpush1.msra.mxu0 0.0
        %625 = vmatprep.subr.mxu0 0.0
        %626 = vmatpush1.msra.mxu0 0.0
        %627 = vmatprep.subr.mxu0 0.0
        %628 = vmatpush1.msra.mxu0 0.0
        %629 = vmatprep.subr.mxu0 0.0
        %630 = vmatpush1.msra.mxu0 0.0
        %631 = vmatprep.subr.mxu0 0.0
        %632 = vmatpush1.msra.mxu0 0.0
        %633 = vmatprep.subr.mxu0 0.0
        %634 = vmatpush1.msra.mxu0 0.0
        %635 = vmatprep.subr.mxu0 0.0
        %636 = vmatpush1.msra.mxu0 0.0
        %637 = vmatprep.subr.mxu0 0.0
        %638 = vmatpush1.msra.mxu0 0.0
        %639 = vmatprep.subr.mxu0 0.0
        %640 = vmatpush1.msra.mxu0 0.0
        %641 = vmatprep.subr.mxu0 0.0
        %642 = vmatpush1.msra.mxu0 0.0
        %643 = vmatprep.subr.mxu0 0.0
        %644 = vmatpush1.msra.mxu0 0.0
        %645 = vmatprep.subr.mxu0 0.0
        %646 = vmatpush1.msra.mxu0 0.0
        %647 = vmatprep.mubr.f32.mxu0 0.0
        %648 = vmatmul.mubr.f32.gmra.mrb[0].mxu0 %v578
        %v649 = vpop.f32.mrb[0].mxu0
        %v650 = vadd.f32 0.0, %v649
        %v651 = vpop.f32.mrb[0].mxu0
        %652 = vmatprep.mubr.f32.mxu0 0.0
        %653 = vmatmul.mubr.f32.gmra.mrb[0].mxu0 %v581
        %v654 = vpop.f32.mrb[0].mxu0
        %v655 = vadd.f32 0.0, %v654
        %v656 = vpop.f32.mrb[0].mxu0
        %657 = vdwg.mxu0
        %v659 = vsel %vm576, %v560, 0
        %v662 = vsel %vm576, %v561, 0
        %664 = vmatprep.subr.mxu0 0.0
        %665 = vmatpush1.msra.mxu0 %v650
        %666 = vmatprep.subr.mxu0 0.0
        %667 = vmatpush1.msra.mxu0 %v655
        %668 = vmatprep.subr.mxu0 0.0
        %669 = vmatpush1.msra.mxu0 0.0
        %670 = vmatprep.subr.mxu0 0.0
        %671 = vmatpush1.msra.mxu0 0.0
        %672 = vmatprep.subr.mxu0 0.0
        %673 = vmatpush1.msra.mxu0 0.0
        %674 = vmatprep.subr.mxu0 0.0
        %675 = vmatpush1.msra.mxu0 0.0
        %676 = vmatprep.subr.mxu0 0.0
        %677 = vmatpush1.msra.mxu0 0.0
        %678 = vmatprep.subr.mxu0 0.0
        %679 = vmatpush1.msra.mxu0 0.0
        %680 = vmatprep.subr.mxu0 0.0
        %681 = vmatpush1.msra.mxu0 0.0
        %682 = vmatprep.subr.mxu0 0.0
        %683 = vmatpush1.msra.mxu0 0.0
        %684 = vmatprep.subr.mxu0 0.0
        %685 = vmatpush1.msra.mxu0 0.0
        %686 = vmatprep.subr.mxu0 0.0
        %687 = vmatpush1.msra.mxu0 0.0
        %688 = vmatprep.subr.mxu0 0.0
        %689 = vmatpush1.msra.mxu0 0.0
        %690 = vmatprep.subr.mxu0 0.0
        %691 = vmatpush1.msra.mxu0 0.0
        %692 = vmatprep.subr.mxu0 0.0
        %693 = vmatpush1.msra.mxu0 0.0
        %694 = vmatprep.subr.mxu0 0.0
        %695 = vmatpush1.msra.mxu0 0.0
        %696 = vmatprep.subr.mxu0 0.0
        %697 = vmatpush1.msra.mxu0 0.0
        %698 = vmatprep.subr.mxu0 0.0
        %699 = vmatpush1.msra.mxu0 0.0
        %700 = vmatprep.subr.mxu0 0.0
        %701 = vmatpush1.msra.mxu0 0.0
        %702 = vmatprep.subr.mxu0 0.0
        %703 = vmatpush1.msra.mxu0 0.0
        %704 = vmatprep.subr.mxu0 0.0
        %705 = vmatpush1.msra.mxu0 0.0
        %706 = vmatprep.subr.mxu0 0.0
        %707 = vmatpush1.msra.mxu0 0.0
        %708 = vmatprep.subr.mxu0 0.0
        %709 = vmatpush1.msra.mxu0 0.0
        %710 = vmatprep.subr.mxu0 0.0
        %711 = vmatpush1.msra.mxu0 0.0
        %712 = vmatprep.subr.mxu0 0.0
        %713 = vmatpush1.msra.mxu0 0.0
        %714 = vmatprep.subr.mxu0 0.0
        %715 = vmatpush1.msra.mxu0 0.0
        %716 = vmatprep.subr.mxu0 0.0
        %717 = vmatpush1.msra.mxu0 0.0
        %718 = vmatprep.subr.mxu0 0.0
        %719 = vmatpush1.msra.mxu0 0.0
        %720 = vmatprep.subr.mxu0 0.0
        %721 = vmatpush1.msra.mxu0 0.0
        %722 = vmatprep.subr.mxu0 0.0
        %723 = vmatpush1.msra.mxu0 0.0
        %724 = vmatprep.subr.mxu0 0.0
        %725 = vmatpush1.msra.mxu0 0.0
        %726 = vmatprep.subr.mxu0 0.0
        %727 = vmatpush1.msra.mxu0 0.0
        %728 = vmatprep.mubr.f32.mxu0 0.0
        %729 = vmatmul.mubr.f32.gmra.mrb[0].mxu0 %v659
        %v730 = vpop.f32.mrb[0].mxu0
        %v731 = vadd.f32 0.0, %v730
        %v732 = vpop.f32.mrb[0].mxu0
        %733 = vmatprep.mubr.f32.mxu0 0.0
        %734 = vmatmul.mubr.f32.gmra.mrb[0].mxu0 %v662
        %v735 = vpop.f32.mrb[0].mxu0
        %v736 = vadd.f32 0.0, %v735
        %v737 = vpop.f32.mrb[0].mxu0
        %738 = vdwg.mxu0
        %v739 = vand.u32 2147483647, %v731
        %v740 = vand.u32 2147483647, %v736
        %741 = vmatprep.subr.mxu0 0.0
        %742 = vmatpush1.msra.mxu0 %v566
        %743 = vmatprep.subr.mxu0 0.0
        %744 = vmatpush1.msra.mxu0 %v567
        %745 = vmatprep.subr.mxu0 0.0
        %746 = vmatpush1.msra.mxu0 0.0
        %747 = vmatprep.subr.mxu0 0.0
        %748 = vmatpush1.msra.mxu0 0.0
        %749 = vmatprep.subr.mxu0 0.0
        %750 = vmatpush1.msra.mxu0 0.0
        %751 = vmatprep.subr.mxu0 0.0
        %752 = vmatpush1.msra.mxu0 0.0
        %753 = vmatprep.subr.mxu0 0.0
        %754 = vmatpush1.msra.mxu0 0.0
        %755 = vmatprep.subr.mxu0 0.0
        %756 = vmatpush1.msra.mxu0 0.0
        %757 = vmatprep.subr.mxu0 0.0
        %758 = vmatpush1.msra.mxu0 0.0
        %759 = vmatprep.subr.mxu0 0.0
        %760 = vmatpush1.msra.mxu0 0.0
        %761 = vmatprep.subr.mxu0 0.0
        %762 = vmatpush1.msra.mxu0 0.0
        %763 = vmatprep.subr.mxu0 0.0
        %764 = vmatpush1.msra.mxu0 0.0
        %765 = vmatprep.subr.mxu0 0.0
        %766 = vmatpush1.msra.mxu0 0.0
        %767 = vmatprep.subr.mxu0 0.0
        %768 = vmatpush1.msra.mxu0 0.0
        %769 = vmatprep.subr.mxu0 0.0
        %770 = vmatpush1.msra.mxu0 0.0
        %771 = vmatprep.subr.mxu0 0.0
        %772 = vmatpush1.msra.mxu0 0.0
        %773 = vmatprep.subr.mxu0 0.0
        %774 = vmatpush1.msra.mxu0 0.0
        %775 = vmatprep.subr.mxu0 0.0
        %776 = vmatpush1.msra.mxu0 0.0
        %777 = vmatprep.subr.mxu0 0.0
        %778 = vmatpush1.msra.mxu0 0.0
        %779 = vmatprep.subr.mxu0 0.0
        %780 = vmatpush1.msra.mxu0 0.0
        %781 = vmatprep.subr.mxu0 0.0
        %782 = vmatpush1.msra.mxu0 0.0
        %783 = vmatprep.subr.mxu0 0.0
        %784 = vmatpush1.msra.mxu0 0.0
        %785 = vmatprep.subr.mxu0 0.0
        %786 = vmatpush1.msra.mxu0 0.0
        %787 = vmatprep.subr.mxu0 0.0
        %788 = vmatpush1.msra.mxu0 0.0
        %789 = vmatprep.subr.mxu0 0.0
        %790 = vmatpush1.msra.mxu0 0.0
        %791 = vmatprep.subr.mxu0 0.0
        %792 = vmatpush1.msra.mxu0 0.0
        %793 = vmatprep.subr.mxu0 0.0
        %794 = vmatpush1.msra.mxu0 0.0
        %795 = vmatprep.subr.mxu0 0.0
        %796 = vmatpush1.msra.mxu0 0.0
        %797 = vmatprep.subr.mxu0 0.0
        %798 = vmatpush1.msra.mxu0 0.0
        %799 = vmatprep.subr.mxu0 0.0
        %800 = vmatpush1.msra.mxu0 0.0
        %801 = vmatprep.subr.mxu0 0.0
        %802 = vmatpush1.msra.mxu0 0.0
        %803 = vmatprep.subr.mxu0 0.0
        %804 = vmatpush1.msra.mxu0 0.0
        %805 = vmatprep.mubr.f32.mxu0 0.0
        %806 = vmatmul.mubr.f32.gmra.mrb[0].mxu0 %v578
        %v807 = vpop.f32.mrb[0].mxu0
        %v808 = vadd.f32 0.0, %v807
        %v809 = vpop.f32.mrb[0].mxu0
        %810 = vmatprep.mubr.f32.mxu0 0.0
        %811 = vmatmul.mubr.f32.gmra.mrb[0].mxu0 %v581
        %v812 = vpop.f32.mrb[0].mxu0
        %v813 = vadd.f32 0.0, %v812
        %v814 = vpop.f32.mrb[0].mxu0
        %815 = vdwg.mxu0
        %v817 = vsel %vm576, %v562, 0
        %v820 = vsel %vm576, %v563, 0
        %822 = vmatprep.subr.mxu0 0.0
        %823 = vmatpush1.msra.mxu0 %v808
        %824 = vmatprep.subr.mxu0 0.0
        %825 = vmatpush1.msra.mxu0 %v813
        %826 = vmatprep.subr.mxu0 0.0
        %827 = vmatpush1.msra.mxu0 0.0
        %828 = vmatprep.subr.mxu0 0.0
        %829 = vmatpush1.msra.mxu0 0.0
        %830 = vmatprep.subr.mxu0 0.0
        %831 = vmatpush1.msra.mxu0 0.0
        %832 = vmatprep.subr.mxu0 0.0
        %833 = vmatpush1.msra.mxu0 0.0
        %834 = vmatprep.subr.mxu0 0.0
        %835 = vmatpush1.msra.mxu0 0.0
        %836 = vmatprep.subr.mxu0 0.0
        %837 = vmatpush1.msra.mxu0 0.0
        %838 = vmatprep.subr.mxu0 0.0
        %839 = vmatpush1.msra.mxu0 0.0
        %840 = vmatprep.subr.mxu0 0.0
        %841 = vmatpush1.msra.mxu0 0.0
        %842 = vmatprep.subr.mxu0 0.0
        %843 = vmatpush1.msra.mxu0 0.0
        %844 = vmatprep.subr.mxu0 0.0
        %845 = vmatpush1.msra.mxu0 0.0
        %846 = vmatprep.subr.mxu0 0.0
        %847 = vmatpush1.msra.mxu0 0.0
        %848 = vmatprep.subr.mxu0 0.0
        %849 = vmatpush1.msra.mxu0 0.0
        %850 = vmatprep.subr.mxu0 0.0
        %851 = vmatpush1.msra.mxu0 0.0
        %852 = vmatprep.subr.mxu0 0.0
        %853 = vmatpush1.msra.mxu0 0.0
        %854 = vmatprep.subr.mxu0 0.0
        %855 = vmatpush1.msra.mxu0 0.0
        %856 = vmatprep.subr.mxu0 0.0
        %857 = vmatpush1.msra.mxu0 0.0
        %858 = vmatprep.subr.mxu0 0.0
        %859 = vmatpush1.msra.mxu0 0.0
        %860 = vmatprep.subr.mxu0 0.0
        %861 = vmatpush1.msra.mxu0 0.0
        %862 = vmatprep.subr.mxu0 0.0
        %863 = vmatpush1.msra.mxu0 0.0
        %864 = vmatprep.subr.mxu0 0.0
        %865 = vmatpush1.msra.mxu0 0.0
        %866 = vmatprep.subr.mxu0 0.0
        %867 = vmatpush1.msra.mxu0 0.0
        %868 = vmatprep.subr.mxu0 0.0
        %869 = vmatpush1.msra.mxu0 0.0
        %870 = vmatprep.subr.mxu0 0.0
        %871 = vmatpush1.msra.mxu0 0.0
        %872 = vmatprep.subr.mxu0 0.0
        %873 = vmatpush1.msra.mxu0 0.0
        %874 = vmatprep.subr.mxu0 0.0
        %875 = vmatpush1.msra.mxu0 0.0
        %876 = vmatprep.subr.mxu0 0.0
        %877 = vmatpush1.msra.mxu0 0.0
        %878 = vmatprep.subr.mxu0 0.0
        %879 = vmatpush1.msra.mxu0 0.0
        %880 = vmatprep.subr.mxu0 0.0
        %881 = vmatpush1.msra.mxu0 0.0
        %882 = vmatprep.subr.mxu0 0.0
        %883 = vmatpush1.msra.mxu0 0.0
        %884 = vmatprep.subr.mxu0 0.0
        %885 = vmatpush1.msra.mxu0 0.0
        %886 = vmatprep.mubr.f32.mxu0 0.0
        %887 = vmatmul.mubr.f32.gmra.mrb[0].mxu0 %v817
        %v888 = vpop.f32.mrb[0].mxu0
        %v889 = vadd.f32 0.0, %v888
        %v890 = vpop.f32.mrb[0].mxu0
        %891 = vmatprep.mubr.f32.mxu0 0.0
        %892 = vmatmul.mubr.f32.gmra.mrb[0].mxu0 %v820
        %v893 = vpop.f32.mrb[0].mxu0
        %v894 = vadd.f32 0.0, %v893
        %v895 = vpop.f32.mrb[0].mxu0
        %896 = vdwg.mxu0
        %v897 = vand.u32 2147483647, %v889
        %v898 = vand.u32 2147483647, %v894
        %v899 = vadd.f32 %v739, %v897
        %v900 = vadd.f32 %v740, %v898
        %v901 = vsub.f32 %v899, %v574
        %v902 = vsub.f32 %v900, %v575
        %v903 = vand.u32 2147483647, %v901
        %v904 = vand.u32 2147483647, %v902
        %v905 = vsel %vm576, %v903, 0.0
        %v906 = vsel %vm576, %v904, 0.0
        %v907 = vadd.f32 %v905, %v906
        %908 = vadd.xlane.f32.xlu0 %v907
        %v909 = vpop.xlane.xlu0 %908
        %v910 = vrot.slane %v909, 4
        %v911 = vadd.f32 %v909, %v910
        %v912 = vrot.slane %v911, 2
        %v913 = vadd.f32 %v911, %v912
        %v914 = vrot.slane %v913, 1
        %v915 = vadd.f32 %v913, %v914
        %s916 = vtos %v915
        %v917 = vsub.f32 %v558, %v574
        %v918 = vsub.f32 %v559, %v575
        %v919 = vand.u32 2147483647, %v917
        %v920 = vand.u32 2147483647, %v918
        %v921 = vsel %vm576, %v919, 0.0
        %v922 = vsel %vm576, %v920, 0.0
        %v923 = vadd.f32 %v921, %v922
        %924 = vadd.xlane.f32.xlu0 %v923
        %v925 = vpop.xlane.xlu0 %924
        %v926 = vrot.slane %v925, 4
        %v927 = vadd.f32 %v925, %v926
        %v928 = vrot.slane %v927, 2
        %v929 = vadd.f32 %v927, %v928
        %v930 = vrot.slane %v929, 1
        %v931 = vadd.f32 %v929, %v930
        %s932 = vtos %v931
        %v934 = vsel %vm576, %v552, 0
        %v937 = vsel %vm576, %v553, 0
        %939 = vmatprep.subr.mxu0 0.0
        %940 = vmatpush1.msra.mxu0 %v564
        %941 = vmatprep.subr.mxu0 0.0
        %942 = vmatpush1.msra.mxu0 %v565
        %943 = vmatprep.subr.mxu0 0.0
        %944 = vmatpush1.msra.mxu0 0.0
        %945 = vmatprep.subr.mxu0 0.0
        %946 = vmatpush1.msra.mxu0 0.0
        %947 = vmatprep.subr.mxu0 0.0
        %948 = vmatpush1.msra.mxu0 0.0
        %949 = vmatprep.subr.mxu0 0.0
        %950 = vmatpush1.msra.mxu0 0.0
        %951 = vmatprep.subr.mxu0 0.0
        %952 = vmatpush1.msra.mxu0 0.0
        %953 = vmatprep.subr.mxu0 0.0
        %954 = vmatpush1.msra.mxu0 0.0
        %955 = vmatprep.subr.mxu0 0.0
        %956 = vmatpush1.msra.mxu0 0.0
        %957 = vmatprep.subr.mxu0 0.0
        %958 = vmatpush1.msra.mxu0 0.0
        %959 = vmatprep.subr.mxu0 0.0
        %960 = vmatpush1.msra.mxu0 0.0
        %961 = vmatprep.subr.mxu0 0.0
        %962 = vmatpush1.msra.mxu0 0.0
        %963 = vmatprep.subr.mxu0 0.0
        %964 = vmatpush1.msra.mxu0 0.0
        %965 = vmatprep.subr.mxu0 0.0
        %966 = vmatpush1.msra.mxu0 0.0
        %967 = vmatprep.subr.mxu0 0.0
        %968 = vmatpush1.msra.mxu0 0.0
        %969 = vmatprep.subr.mxu0 0.0
        %970 = vmatpush1.msra.mxu0 0.0
        %971 = vmatprep.subr.mxu0 0.0
        %972 = vmatpush1.msra.mxu0 0.0
        %973 = vmatprep.subr.mxu0 0.0
        %974 = vmatpush1.msra.mxu0 0.0
        %975 = vmatprep.subr.mxu0 0.0
        %976 = vmatpush1.msra.mxu0 0.0
        %977 = vmatprep.subr.mxu0 0.0
        %978 = vmatpush1.msra.mxu0 0.0
        %979 = vmatprep.subr.mxu0 0.0
        %980 = vmatpush1.msra.mxu0 0.0
        %981 = vmatprep.subr.mxu0 0.0
        %982 = vmatpush1.msra.mxu0 0.0
        %983 = vmatprep.subr.mxu0 0.0
        %984 = vmatpush1.msra.mxu0 0.0
        %985 = vmatprep.subr.mxu0 0.0
        %986 = vmatpush1.msra.mxu0 0.0
        %987 = vmatprep.subr.mxu0 0.0
        %988 = vmatpush1.msra.mxu0 0.0
        %989 = vmatprep.subr.mxu0 0.0
        %990 = vmatpush1.msra.mxu0 0.0
        %991 = vmatprep.subr.mxu0 0.0
        %992 = vmatpush1.msra.mxu0 0.0
        %993 = vmatprep.subr.mxu0 0.0
        %994 = vmatpush1.msra.mxu0 0.0
        %995 = vmatprep.subr.mxu0 0.0
        %996 = vmatpush1.msra.mxu0 0.0
        %997 = vmatprep.subr.mxu0 0.0
        %998 = vmatpush1.msra.mxu0 0.0
        %999 = vmatprep.subr.mxu0 0.0
        %1000 = vmatpush1.msra.mxu0 0.0
        %1001 = vmatprep.subr.mxu0 0.0
        %1002 = vmatpush1.msra.mxu0 0.0
        %1003 = vmatprep.mubr.f32.mxu0 0.0
        %1004 = vmatmul.mubr.f32.gmra.mrb[0].mxu0 %v934
        %v1005 = vpop.f32.mrb[0].mxu0
        %v1006 = vadd.f32 0.0, %v1005
        %v1007 = vpop.f32.mrb[0].mxu0
        %1008 = vmatprep.mubr.f32.mxu0 0.0
        %1009 = vmatmul.mubr.f32.gmra.mrb[0].mxu0 %v937
        %v1010 = vpop.f32.mrb[0].mxu0
        %v1011 = vadd.f32 0.0, %v1010
        %v1012 = vpop.f32.mrb[0].mxu0
        %1013 = vdwg.mxu0
        %1014 = vmatprep.subr.mxu0 0.0
        %1015 = vmatpush1.msra.mxu0 %v1006
        %1016 = vmatprep.subr.mxu0 0.0
        %1017 = vmatpush1.msra.mxu0 %v1011
        %1018 = vmatprep.subr.mxu0 0.0
        %1019 = vmatpush1.msra.mxu0 0.0
        %1020 = vmatprep.subr.mxu0 0.0
        %1021 = vmatpush1.msra.mxu0 0.0
        %1022 = vmatprep.subr.mxu0 0.0
        %1023 = vmatpush1.msra.mxu0 0.0
        %1024 = vmatprep.subr.mxu0 0.0
        %1025 = vmatpush1.msra.mxu0 0.0
        %1026 = vmatprep.subr.mxu0 0.0
        %1027 = vmatpush1.msra.mxu0 0.0
        %1028 = vmatprep.subr.mxu0 0.0
        %1029 = vmatpush1.msra.mxu0 0.0
        %1030 = vmatprep.subr.mxu0 0.0
        %1031 = vmatpush1.msra.mxu0 0.0
        %1032 = vmatprep.subr.mxu0 0.0
        %1033 = vmatpush1.msra.mxu0 0.0
        %1034 = vmatprep.subr.mxu0 0.0
        %1035 = vmatpush1.msra.mxu0 0.0
        %1036 = vmatprep.subr.mxu0 0.0
        %1037 = vmatpush1.msra.mxu0 0.0
        %1038 = vmatprep.subr.mxu0 0.0
        %1039 = vmatpush1.msra.mxu0 0.0
        %1040 = vmatprep.subr.mxu0 0.0
        %1041 = vmatpush1.msra.mxu0 0.0
        %1042 = vmatprep.subr.mxu0 0.0
        %1043 = vmatpush1.msra.mxu0 0.0
        %1044 = vmatprep.subr.mxu0 0.0
        %1045 = vmatpush1.msra.mxu0 0.0
        %1046 = vmatprep.subr.mxu0 0.0
        %1047 = vmatpush1.msra.mxu0 0.0
        %1048 = vmatprep.subr.mxu0 0.0
        %1049 = vmatpush1.msra.mxu0 0.0
        %1050 = vmatprep.subr.mxu0 0.0
        %1051 = vmatpush1.msra.mxu0 0.0
        %1052 = vmatprep.subr.mxu0 0.0
        %1053 = vmatpush1.msra.mxu0 0.0
        %1054 = vmatprep.subr.mxu0 0.0
        %1055 = vmatpush1.msra.mxu0 0.0
        %1056 = vmatprep.subr.mxu0 0.0
        %1057 = vmatpush1.msra.mxu0 0.0
        %1058 = vmatprep.subr.mxu0 0.0
        %1059 = vmatpush1.msra.mxu0 0.0
        %1060 = vmatprep.subr.mxu0 0.0
        %1061 = vmatpush1.msra.mxu0 0.0
        %1062 = vmatprep.subr.mxu0 0.0
        %1063 = vmatpush1.msra.mxu0 0.0
        %1064 = vmatprep.subr.mxu0 0.0
        %1065 = vmatpush1.msra.mxu0 0.0
        %1066 = vmatprep.subr.mxu0 0.0
        %1067 = vmatpush1.msra.mxu0 0.0
        %1068 = vmatprep.subr.mxu0 0.0
        %1069 = vmatpush1.msra.mxu0 0.0
        %1070 = vmatprep.subr.mxu0 0.0
        %1071 = vmatpush1.msra.mxu0 0.0
        %1072 = vmatprep.subr.mxu0 0.0
        %1073 = vmatpush1.msra.mxu0 0.0
        %1074 = vmatprep.subr.mxu0 0.0
        %1075 = vmatpush1.msra.mxu0 0.0
        %1076 = vmatprep.subr.mxu0 0.0
        %1077 = vmatpush1.msra.mxu0 0.0
        %1078 = vmatprep.mubr.f32.mxu0 0.0
        %1079 = vmatmul.mubr.f32.gmra.mrb[0].mxu0 %v659
        %v1080 = vpop.f32.mrb[0].mxu0
        %v1081 = vadd.f32 0.0, %v1080
        %v1082 = vpop.f32.mrb[0].mxu0
        %1083 = vmatprep.mubr.f32.mxu0 0.0
        %1084 = vmatmul.mubr.f32.gmra.mrb[0].mxu0 %v662
        %v1085 = vpop.f32.mrb[0].mxu0
        %v1086 = vadd.f32 0.0, %v1085
        %v1087 = vpop.f32.mrb[0].mxu0
        %1088 = vdwg.mxu0
        %v1089 = vand.u32 2147483647, %v1081
        %v1090 = vand.u32 2147483647, %v1086
        %1091 = vmatprep.subr.mxu0 0.0
        %1092 = vmatpush1.msra.mxu0 %v566
        %1093 = vmatprep.subr.mxu0 0.0
        %1094 = vmatpush1.msra.mxu0 %v567
        %1095 = vmatprep.subr.mxu0 0.0
        %1096 = vmatpush1.msra.mxu0 0.0
        %1097 = vmatprep.subr.mxu0 0.0
        %1098 = vmatpush1.msra.mxu0 0.0
        %1099 = vmatprep.subr.mxu0 0.0
        %1100 = vmatpush1.msra.mxu0 0.0
        %1101 = vmatprep.subr.mxu0 0.0
        %1102 = vmatpush1.msra.mxu0 0.0
        %1103 = vmatprep.subr.mxu0 0.0
        %1104 = vmatpush1.msra.mxu0 0.0
        %1105 = vmatprep.subr.mxu0 0.0
        %1106 = vmatpush1.msra.mxu0 0.0
        %1107 = vmatprep.subr.mxu0 0.0
        %1108 = vmatpush1.msra.mxu0 0.0
        %1109 = vmatprep.subr.mxu0 0.0
        %1110 = vmatpush1.msra.mxu0 0.0
        %1111 = vmatprep.subr.mxu0 0.0
        %1112 = vmatpush1.msra.mxu0 0.0
        %1113 = vmatprep.subr.mxu0 0.0
        %1114 = vmatpush1.msra.mxu0 0.0
        %1115 = vmatprep.subr.mxu0 0.0
        %1116 = vmatpush1.msra.mxu0 0.0
        %1117 = vmatprep.subr.mxu0 0.0
        %1118 = vmatpush1.msra.mxu0 0.0
        %1119 = vmatprep.subr.mxu0 0.0
        %1120 = vmatpush1.msra.mxu0 0.0
        %1121 = vmatprep.subr.mxu0 0.0
        %1122 = vmatpush1.msra.mxu0 0.0
        %1123 = vmatprep.subr.mxu0 0.0
        %1124 = vmatpush1.msra.mxu0 0.0
        %1125 = vmatprep.subr.mxu0 0.0
        %1126 = vmatpush1.msra.mxu0 0.0
        %1127 = vmatprep.subr.mxu0 0.0
        %1128 = vmatpush1.msra.mxu0 0.0
        %1129 = vmatprep.subr.mxu0 0.0
        %1130 = vmatpush1.msra.mxu0 0.0
        %1131 = vmatprep.subr.mxu0 0.0
        %1132 = vmatpush1.msra.mxu0 0.0
        %1133 = vmatprep.subr.mxu0 0.0
        %1134 = vmatpush1.msra.mxu0 0.0
        %1135 = vmatprep.subr.mxu0 0.0
        %1136 = vmatpush1.msra.mxu0 0.0
        %1137 = vmatprep.subr.mxu0 0.0
        %1138 = vmatpush1.msra.mxu0 0.0
        %1139 = vmatprep.subr.mxu0 0.0
        %1140 = vmatpush1.msra.mxu0 0.0
        %1141 = vmatprep.subr.mxu0 0.0
        %1142 = vmatpush1.msra.mxu0 0.0
        %1143 = vmatprep.subr.mxu0 0.0
        %1144 = vmatpush1.msra.mxu0 0.0
        %1145 = vmatprep.subr.mxu0 0.0
        %1146 = vmatpush1.msra.mxu0 0.0
        %1147 = vmatprep.subr.mxu0 0.0
        %1148 = vmatpush1.msra.mxu0 0.0
        %1149 = vmatprep.subr.mxu0 0.0
        %1150 = vmatpush1.msra.mxu0 0.0
        %1151 = vmatprep.subr.mxu0 0.0
        %1152 = vmatpush1.msra.mxu0 0.0
        %1153 = vmatprep.subr.mxu0 0.0
        %1154 = vmatpush1.msra.mxu0 0.0
        %1155 = vmatprep.mubr.f32.mxu0 0.0
        %1156 = vmatmul.mubr.f32.gmra.mrb[0].mxu0 %v934
        %v1157 = vpop.f32.mrb[0].mxu0
        %v1158 = vadd.f32 0.0, %v1157
        %v1159 = vpop.f32.mrb[0].mxu0
        %1160 = vmatprep.mubr.f32.mxu0 0.0
        %1161 = vmatmul.mubr.f32.gmra.mrb[0].mxu0 %v937
        %v1162 = vpop.f32.mrb[0].mxu0
        %v1163 = vadd.f32 0.0, %v1162
        %v1164 = vpop.f32.mrb[0].mxu0
        %1165 = vdwg.mxu0
        %1166 = vmatprep.subr.mxu0 0.0
        %1167 = vmatpush1.msra.mxu0 %v1158
        %1168 = vmatprep.subr.mxu0 0.0
        %1169 = vmatpush1.msra.mxu0 %v1163
        %1170 = vmatprep.subr.mxu0 0.0
        %1171 = vmatpush1.msra.mxu0 0.0
        %1172 = vmatprep.subr.mxu0 0.0
        %1173 = vmatpush1.msra.mxu0 0.0
        %1174 = vmatprep.subr.mxu0 0.0
        %1175 = vmatpush1.msra.mxu0 0.0
        %1176 = vmatprep.subr.mxu0 0.0
        %1177 = vmatpush1.msra.mxu0 0.0
        %1178 = vmatprep.subr.mxu0 0.0
        %1179 = vmatpush1.msra.mxu0 0.0
        %1180 = vmatprep.subr.mxu0 0.0
        %1181 = vmatpush1.msra.mxu0 0.0
        %1182 = vmatprep.subr.mxu0 0.0
        %1183 = vmatpush1.msra.mxu0 0.0
        %1184 = vmatprep.subr.mxu0 0.0
        %1185 = vmatpush1.msra.mxu0 0.0
        %1186 = vmatprep.subr.mxu0 0.0
        %1187 = vmatpush1.msra.mxu0 0.0
        %1188 = vmatprep.subr.mxu0 0.0
        %1189 = vmatpush1.msra.mxu0 0.0
        %1190 = vmatprep.subr.mxu0 0.0
        %1191 = vmatpush1.msra.mxu0 0.0
        %1192 = vmatprep.subr.mxu0 0.0
        %1193 = vmatpush1.msra.mxu0 0.0
        %1194 = vmatprep.subr.mxu0 0.0
        %1195 = vmatpush1.msra.mxu0 0.0
        %1196 = vmatprep.subr.mxu0 0.0
        %1197 = vmatpush1.msra.mxu0 0.0
        %1198 = vmatprep.subr.mxu0 0.0
        %1199 = vmatpush1.msra.mxu0 0.0
        %1200 = vmatprep.subr.mxu0 0.0
        %1201 = vmatpush1.msra.mxu0 0.0
        %1202 = vmatprep.subr.mxu0 0.0
        %1203 = vmatpush1.msra.mxu0 0.0
        %1204 = vmatprep.subr.mxu0 0.0
        %1205 = vmatpush1.msra.mxu0 0.0
        %1206 = vmatprep.subr.mxu0 0.0
        %1207 = vmatpush1.msra.mxu0 0.0
        %1208 = vmatprep.subr.mxu0 0.0
        %1209 = vmatpush1.msra.mxu0 0.0
        %1210 = vmatprep.subr.mxu0 0.0
        %1211 = vmatpush1.msra.mxu0 0.0
        %1212 = vmatprep.subr.mxu0 0.0
        %1213 = vmatpush1.msra.mxu0 0.0
        %1214 = vmatprep.subr.mxu0 0.0
        %1215 = vmatpush1.msra.mxu0 0.0
        %1216 = vmatprep.subr.mxu0 0.0
        %1217 = vmatpush1.msra.mxu0 0.0
        %1218 = vmatprep.subr.mxu0 0.0
        %1219 = vmatpush1.msra.mxu0 0.0
        %1220 = vmatprep.subr.mxu0 0.0
        %1221 = vmatpush1.msra.mxu0 0.0
        %1222 = vmatprep.subr.mxu0 0.0
        %1223 = vmatpush1.msra.mxu0 0.0
        %1224 = vmatprep.subr.mxu0 0.0
        %1225 = vmatpush1.msra.mxu0 0.0
        %1226 = vmatprep.subr.mxu0 0.0
        %1227 = vmatpush1.msra.mxu0 0.0
        %1228 = vmatprep.subr.mxu0 0.0
        %1229 = vmatpush1.msra.mxu0 0.0
        %1230 = vmatprep.mubr.f32.mxu0 0.0
        %1231 = vmatmul.mubr.f32.gmra.mrb[0].mxu0 %v817
        %v1232 = vpop.f32.mrb[0].mxu0
        %v1233 = vadd.f32 0.0, %v1232
        %v1234 = vpop.f32.mrb[0].mxu0
        %1235 = vmatprep.mubr.f32.mxu0 0.0
        %1236 = vmatmul.mubr.f32.gmra.mrb[0].mxu0 %v820
        %v1237 = vpop.f32.mrb[0].mxu0
        %v1238 = vadd.f32 0.0, %v1237
        %v1239 = vpop.f32.mrb[0].mxu0
        %1240 = vdwg.mxu0
        %v1241 = vand.u32 2147483647, %v1233
        %v1242 = vand.u32 2147483647, %v1238
        %v1243 = vadd.f32 %v1089, %v1241
        %v1244 = vadd.f32 %v1090, %v1242
        %v1245 = vsel %vm576, %v1243, 0.0
        %v1246 = vsel %vm576, %v1244, 0.0
        %v1247 = vadd.f32 %v1245, %v1246
        %1248 = vadd.xlane.f32.xlu0 %v1247
        %v1249 = vpop.xlane.xlu0 %1248
        %v1250 = vrot.slane %v1249, 4
        %v1251 = vadd.f32 %v1249, %v1250
        %v1252 = vrot.slane %v1251, 2
        %v1253 = vadd.f32 %v1251, %v1252
        %v1254 = vrot.slane %v1253, 1
        %v1255 = vadd.f32 %v1253, %v1254
        %s1256 = vtos %v1255
        %v1258 = vsel %vm576, %v554, 0
        %v1261 = vsel %vm576, %v555, 0
        %1263 = vmatprep.subr.mxu0 0.0
        %1264 = vmatpush1.msra.mxu0 %v564
        %1265 = vmatprep.subr.mxu0 0.0
        %1266 = vmatpush1.msra.mxu0 %v565
        %1267 = vmatprep.subr.mxu0 0.0
        %1268 = vmatpush1.msra.mxu0 0.0
        %1269 = vmatprep.subr.mxu0 0.0
        %1270 = vmatpush1.msra.mxu0 0.0
        %1271 = vmatprep.subr.mxu0 0.0
        %1272 = vmatpush1.msra.mxu0 0.0
        %1273 = vmatprep.subr.mxu0 0.0
        %1274 = vmatpush1.msra.mxu0 0.0
        %1275 = vmatprep.subr.mxu0 0.0
        %1276 = vmatpush1.msra.mxu0 0.0
        %1277 = vmatprep.subr.mxu0 0.0
        %1278 = vmatpush1.msra.mxu0 0.0
        %1279 = vmatprep.subr.mxu0 0.0
        %1280 = vmatpush1.msra.mxu0 0.0
        %1281 = vmatprep.subr.mxu0 0.0
        %1282 = vmatpush1.msra.mxu0 0.0
        %1283 = vmatprep.subr.mxu0 0.0
        %1284 = vmatpush1.msra.mxu0 0.0
        %1285 = vmatprep.subr.mxu0 0.0
        %1286 = vmatpush1.msra.mxu0 0.0
        %1287 = vmatprep.subr.mxu0 0.0
        %1288 = vmatpush1.msra.mxu0 0.0
        %1289 = vmatprep.subr.mxu0 0.0
        %1290 = vmatpush1.msra.mxu0 0.0
        %1291 = vmatprep.subr.mxu0 0.0
        %1292 = vmatpush1.msra.mxu0 0.0
        %1293 = vmatprep.subr.mxu0 0.0
        %1294 = vmatpush1.msra.mxu0 0.0
        %1295 = vmatprep.subr.mxu0 0.0
        %1296 = vmatpush1.msra.mxu0 0.0
        %1297 = vmatprep.subr.mxu0 0.0
        %1298 = vmatpush1.msra.mxu0 0.0
        %1299 = vmatprep.subr.mxu0 0.0
        %1300 = vmatpush1.msra.mxu0 0.0
        %1301 = vmatprep.subr.mxu0 0.0
        %1302 = vmatpush1.msra.mxu0 0.0
        %1303 = vmatprep.subr.mxu0 0.0
        %1304 = vmatpush1.msra.mxu0 0.0
        %1305 = vmatprep.subr.mxu0 0.0
        %1306 = vmatpush1.msra.mxu0 0.0
        %1307 = vmatprep.subr.mxu0 0.0
        %1308 = vmatpush1.msra.mxu0 0.0
        %1309 = vmatprep.subr.mxu0 0.0
        %1310 = vmatpush1.msra.mxu0 0.0
        %1311 = vmatprep.subr.mxu0 0.0
        %1312 = vmatpush1.msra.mxu0 0.0
        %1313 = vmatprep.subr.mxu0 0.0
        %1314 = vmatpush1.msra.mxu0 0.0
        %1315 = vmatprep.subr.mxu0 0.0
        %1316 = vmatpush1.msra.mxu0 0.0
        %1317 = vmatprep.subr.mxu0 0.0
        %1318 = vmatpush1.msra.mxu0 0.0
        %1319 = vmatprep.subr.mxu0 0.0
        %1320 = vmatpush1.msra.mxu0 0.0
        %1321 = vmatprep.subr.mxu0 0.0
        %1322 = vmatpush1.msra.mxu0 0.0
        %1323 = vmatprep.subr.mxu0 0.0
        %1324 = vmatpush1.msra.mxu0 0.0
        %1325 = vmatprep.subr.mxu0 0.0
        %1326 = vmatpush1.msra.mxu0 0.0
        %1327 = vmatprep.mubr.f32.mxu0 0.0
        %1328 = vmatmul.mubr.f32.gmra.mrb[0].mxu0 %v1258
        %v1329 = vpop.f32.mrb[0].mxu0
        %v1330 = vadd.f32 0.0, %v1329
        %v1331 = vpop.f32.mrb[0].mxu0
        %1332 = vmatprep.mubr.f32.mxu0 0.0
        %1333 = vmatmul.mubr.f32.gmra.mrb[0].mxu0 %v1261
        %v1334 = vpop.f32.mrb[0].mxu0
        %v1335 = vadd.f32 0.0, %v1334
        %v1336 = vpop.f32.mrb[0].mxu0
        %1337 = vdwg.mxu0
        %1338 = vmatprep.subr.mxu0 0.0
        %1339 = vmatpush1.msra.mxu0 %v1330
        %1340 = vmatprep.subr.mxu0 0.0
        %1341 = vmatpush1.msra.mxu0 %v1335
        %1342 = vmatprep.subr.mxu0 0.0
        %1343 = vmatpush1.msra.mxu0 0.0
        %1344 = vmatprep.subr.mxu0 0.0
        %1345 = vmatpush1.msra.mxu0 0.0
        %1346 = vmatprep.subr.mxu0 0.0
        %1347 = vmatpush1.msra.mxu0 0.0
        %1348 = vmatprep.subr.mxu0 0.0
        %1349 = vmatpush1.msra.mxu0 0.0
        %1350 = vmatprep.subr.mxu0 0.0
        %1351 = vmatpush1.msra.mxu0 0.0
        %1352 = vmatprep.subr.mxu0 0.0
        %1353 = vmatpush1.msra.mxu0 0.0
        %1354 = vmatprep.subr.mxu0 0.0
        %1355 = vmatpush1.msra.mxu0 0.0
        %1356 = vmatprep.subr.mxu0 0.0
        %1357 = vmatpush1.msra.mxu0 0.0
        %1358 = vmatprep.subr.mxu0 0.0
        %1359 = vmatpush1.msra.mxu0 0.0
        %1360 = vmatprep.subr.mxu0 0.0
        %1361 = vmatpush1.msra.mxu0 0.0
        %1362 = vmatprep.subr.mxu0 0.0
        %1363 = vmatpush1.msra.mxu0 0.0
        %1364 = vmatprep.subr.mxu0 0.0
        %1365 = vmatpush1.msra.mxu0 0.0
        %1366 = vmatprep.subr.mxu0 0.0
        %1367 = vmatpush1.msra.mxu0 0.0
        %1368 = vmatprep.subr.mxu0 0.0
        %1369 = vmatpush1.msra.mxu0 0.0
        %1370 = vmatprep.subr.mxu0 0.0
        %1371 = vmatpush1.msra.mxu0 0.0
        %1372 = vmatprep.subr.mxu0 0.0
        %1373 = vmatpush1.msra.mxu0 0.0
        %1374 = vmatprep.subr.mxu0 0.0
        %1375 = vmatpush1.msra.mxu0 0.0
        %1376 = vmatprep.subr.mxu0 0.0
        %1377 = vmatpush1.msra.mxu0 0.0
        %1378 = vmatprep.subr.mxu0 0.0
        %1379 = vmatpush1.msra.mxu0 0.0
        %1380 = vmatprep.subr.mxu0 0.0
        %1381 = vmatpush1.msra.mxu0 0.0
        %1382 = vmatprep.subr.mxu0 0.0
        %1383 = vmatpush1.msra.mxu0 0.0
        %1384 = vmatprep.subr.mxu0 0.0
        %1385 = vmatpush1.msra.mxu0 0.0
        %1386 = vmatprep.subr.mxu0 0.0
        %1387 = vmatpush1.msra.mxu0 0.0
        %1388 = vmatprep.subr.mxu0 0.0
        %1389 = vmatpush1.msra.mxu0 0.0
        %1390 = vmatprep.subr.mxu0 0.0
        %1391 = vmatpush1.msra.mxu0 0.0
        %1392 = vmatprep.subr.mxu0 0.0
        %1393 = vmatpush1.msra.mxu0 0.0
        %1394 = vmatprep.subr.mxu0 0.0
        %1395 = vmatpush1.msra.mxu0 0.0
        %1396 = vmatprep.subr.mxu0 0.0
        %1397 = vmatpush1.msra.mxu0 0.0
        %1398 = vmatprep.subr.mxu0 0.0
        %1399 = vmatpush1.msra.mxu0 0.0
        %1400 = vmatprep.subr.mxu0 0.0
        %1401 = vmatpush1.msra.mxu0 0.0
        %1402 = vmatprep.mubr.f32.mxu0 0.0
        %1403 = vmatmul.mubr.f32.gmra.mrb[0].mxu0 %v659
        %v1404 = vpop.f32.mrb[0].mxu0
        %v1405 = vadd.f32 0.0, %v1404
        %v1406 = vpop.f32.mrb[0].mxu0
        %1407 = vmatprep.mubr.f32.mxu0 0.0
        %1408 = vmatmul.mubr.f32.gmra.mrb[0].mxu0 %v662
        %v1409 = vpop.f32.mrb[0].mxu0
        %v1410 = vadd.f32 0.0, %v1409
        %v1411 = vpop.f32.mrb[0].mxu0
        %1412 = vdwg.mxu0
        %v1413 = vand.u32 2147483647, %v1405
        %v1414 = vand.u32 2147483647, %v1410
        %1415 = vmatprep.subr.mxu0 0.0
        %1416 = vmatpush1.msra.mxu0 %v566
        %1417 = vmatprep.subr.mxu0 0.0
        %1418 = vmatpush1.msra.mxu0 %v567
        %1419 = vmatprep.subr.mxu0 0.0
        %1420 = vmatpush1.msra.mxu0 0.0
        %1421 = vmatprep.subr.mxu0 0.0
        %1422 = vmatpush1.msra.mxu0 0.0
        %1423 = vmatprep.subr.mxu0 0.0
        %1424 = vmatpush1.msra.mxu0 0.0
        %1425 = vmatprep.subr.mxu0 0.0
        %1426 = vmatpush1.msra.mxu0 0.0
        %1427 = vmatprep.subr.mxu0 0.0
        %1428 = vmatpush1.msra.mxu0 0.0
        %1429 = vmatprep.subr.mxu0 0.0
        %1430 = vmatpush1.msra.mxu0 0.0
        %1431 = vmatprep.subr.mxu0 0.0
        %1432 = vmatpush1.msra.mxu0 0.0
        %1433 = vmatprep.subr.mxu0 0.0
        %1434 = vmatpush1.msra.mxu0 0.0
        %1435 = vmatprep.subr.mxu0 0.0
        %1436 = vmatpush1.msra.mxu0 0.0
        %1437 = vmatprep.subr.mxu0 0.0
        %1438 = vmatpush1.msra.mxu0 0.0
        %1439 = vmatprep.subr.mxu0 0.0
        %1440 = vmatpush1.msra.mxu0 0.0
        %1441 = vmatprep.subr.mxu0 0.0
        %1442 = vmatpush1.msra.mxu0 0.0
        %1443 = vmatprep.subr.mxu0 0.0
        %1444 = vmatpush1.msra.mxu0 0.0
        %1445 = vmatprep.subr.mxu0 0.0
        %1446 = vmatpush1.msra.mxu0 0.0
        %1447 = vmatprep.subr.mxu0 0.0
        %1448 = vmatpush1.msra.mxu0 0.0
        %1449 = vmatprep.subr.mxu0 0.0
        %1450 = vmatpush1.msra.mxu0 0.0
        %1451 = vmatprep.subr.mxu0 0.0
        %1452 = vmatpush1.msra.mxu0 0.0
        %1453 = vmatprep.subr.mxu0 0.0
        %1454 = vmatpush1.msra.mxu0 0.0
        %1455 = vmatprep.subr.mxu0 0.0
        %1456 = vmatpush1.msra.mxu0 0.0
        %1457 = vmatprep.subr.mxu0 0.0
        %1458 = vmatpush1.msra.mxu0 0.0
        %1459 = vmatprep.subr.mxu0 0.0
        %1460 = vmatpush1.msra.mxu0 0.0
        %1461 = vmatprep.subr.mxu0 0.0
        %1462 = vmatpush1.msra.mxu0 0.0
        %1463 = vmatprep.subr.mxu0 0.0
        %1464 = vmatpush1.msra.mxu0 0.0
        %1465 = vmatprep.subr.mxu0 0.0
        %1466 = vmatpush1.msra.mxu0 0.0
        %1467 = vmatprep.subr.mxu0 0.0
        %1468 = vmatpush1.msra.mxu0 0.0
        %1469 = vmatprep.subr.mxu0 0.0
        %1470 = vmatpush1.msra.mxu0 0.0
        %1471 = vmatprep.subr.mxu0 0.0
        %1472 = vmatpush1.msra.mxu0 0.0
        %1473 = vmatprep.subr.mxu0 0.0
        %1474 = vmatpush1.msra.mxu0 0.0
        %1475 = vmatprep.subr.mxu0 0.0
        %1476 = vmatpush1.msra.mxu0 0.0
        %1477 = vmatprep.subr.mxu0 0.0
        %1478 = vmatpush1.msra.mxu0 0.0
        %1479 = vmatprep.mubr.f32.mxu0 0.0
        %1480 = vmatmul.mubr.f32.gmra.mrb[0].mxu0 %v1258
        %v1481 = vpop.f32.mrb[0].mxu0
        %v1482 = vadd.f32 0.0, %v1481
        %v1483 = vpop.f32.mrb[0].mxu0
        %1484 = vmatprep.mubr.f32.mxu0 0.0
        %1485 = vmatmul.mubr.f32.gmra.mrb[0].mxu0 %v1261
        %v1486 = vpop.f32.mrb[0].mxu0
        %v1487 = vadd.f32 0.0, %v1486
        %v1488 = vpop.f32.mrb[0].mxu0
        %1489 = vdwg.mxu0
        %1490 = vmatprep.subr.mxu0 0.0
        %1491 = vmatpush1.msra.mxu0 %v1482
        %1492 = vmatprep.subr.mxu0 0.0
        %1493 = vmatpush1.msra.mxu0 %v1487
        %1494 = vmatprep.subr.mxu0 0.0
        %1495 = vmatpush1.msra.mxu0 0.0
        %1496 = vmatprep.subr.mxu0 0.0
        %1497 = vmatpush1.msra.mxu0 0.0
        %1498 = vmatprep.subr.mxu0 0.0
        %1499 = vmatpush1.msra.mxu0 0.0
        %1500 = vmatprep.subr.mxu0 0.0
        %1501 = vmatpush1.msra.mxu0 0.0
        %1502 = vmatprep.subr.mxu0 0.0
        %1503 = vmatpush1.msra.mxu0 0.0
        %1504 = vmatprep.subr.mxu0 0.0
        %1505 = vmatpush1.msra.mxu0 0.0
        %1506 = vmatprep.subr.mxu0 0.0
        %1507 = vmatpush1.msra.mxu0 0.0
        %1508 = vmatprep.subr.mxu0 0.0
        %1509 = vmatpush1.msra.mxu0 0.0
        %1510 = vmatprep.subr.mxu0 0.0
        %1511 = vmatpush1.msra.mxu0 0.0
        %1512 = vmatprep.subr.mxu0 0.0
        %1513 = vmatpush1.msra.mxu0 0.0
        %1514 = vmatprep.subr.mxu0 0.0
        %1515 = vmatpush1.msra.mxu0 0.0
        %1516 = vmatprep.subr.mxu0 0.0
        %1517 = vmatpush1.msra.mxu0 0.0
        %1518 = vmatprep.subr.mxu0 0.0
        %1519 = vmatpush1.msra.mxu0 0.0
        %1520 = vmatprep.subr.mxu0 0.0
        %1521 = vmatpush1.msra.mxu0 0.0
        %1522 = vmatprep.subr.mxu0 0.0
        %1523 = vmatpush1.msra.mxu0 0.0
        %1524 = vmatprep.subr.mxu0 0.0
        %1525 = vmatpush1.msra.mxu0 0.0
        %1526 = vmatprep.subr.mxu0 0.0
        %1527 = vmatpush1.msra.mxu0 0.0
        %1528 = vmatprep.subr.mxu0 0.0
        %1529 = vmatpush1.msra.mxu0 0.0
        %1530 = vmatprep.subr.mxu0 0.0
        %1531 = vmatpush1.msra.mxu0 0.0
        %1532 = vmatprep.subr.mxu0 0.0
        %1533 = vmatpush1.msra.mxu0 0.0
        %1534 = vmatprep.subr.mxu0 0.0
        %1535 = vmatpush1.msra.mxu0 0.0
        %1536 = vmatprep.subr.mxu0 0.0
        %1537 = vmatpush1.msra.mxu0 0.0
        %1538 = vmatprep.subr.mxu0 0.0
        %1539 = vmatpush1.msra.mxu0 0.0
        %1540 = vmatprep.subr.mxu0 0.0
        %1541 = vmatpush1.msra.mxu0 0.0
        %1542 = vmatprep.subr.mxu0 0.0
        %1543 = vmatpush1.msra.mxu0 0.0
        %1544 = vmatprep.subr.mxu0 0.0
        %1545 = vmatpush1.msra.mxu0 0.0
        %1546 = vmatprep.subr.mxu0 0.0
        %1547 = vmatpush1.msra.mxu0 0.0
        %1548 = vmatprep.subr.mxu0 0.0
        %1549 = vmatpush1.msra.mxu0 0.0
        %1550 = vmatprep.subr.mxu0 0.0
        %1551 = vmatpush1.msra.mxu0 0.0
        %1552 = vmatprep.subr.mxu0 0.0
        %1553 = vmatpush1.msra.mxu0 0.0
        %1554 = vmatprep.mubr.f32.mxu0 0.0
        %1555 = vmatmul.mubr.f32.gmra.mrb[0].mxu0 %v817
        %v1556 = vpop.f32.mrb[0].mxu0
        %v1557 = vadd.f32 0.0, %v1556
        %v1558 = vpop.f32.mrb[0].mxu0
        %1559 = vmatprep.mubr.f32.mxu0 0.0
        %1560 = vmatmul.mubr.f32.gmra.mrb[0].mxu0 %v820
        %v1561 = vpop.f32.mrb[0].mxu0
        %v1562 = vadd.f32 0.0, %v1561
        %v1563 = vpop.f32.mrb[0].mxu0
        %1564 = vdwg.mxu0
        %v1565 = vand.u32 2147483647, %v1557
        %v1566 = vand.u32 2147483647, %v1562
        %v1567 = vadd.f32 %v1413, %v1565
        %v1568 = vadd.f32 %v1414, %v1566
        %v1569 = vsel %vm576, %v1567, 0.0
        %v1570 = vsel %vm576, %v1568, 0.0
        %v1571 = vadd.f32 %v1569, %v1570
        %1572 = vadd.xlane.f32.xlu0 %v1571
        %v1573 = vpop.xlane.xlu0 %1572
        %v1574 = vrot.slane %v1573, 4
        %v1575 = vadd.f32 %v1573, %v1574
        %v1576 = vrot.slane %v1575, 2
        %v1577 = vadd.f32 %v1575, %v1576
        %v1578 = vrot.slane %v1577, 1
        %v1579 = vadd.f32 %v1577, %v1578
        %s1580 = vtos %v1579
        %v1582 = vsel %vm576, %v556, 0
        %v1585 = vsel %vm576, %v557, 0
        %1587 = vmatprep.subr.mxu0 0.0
        %1588 = vmatpush1.msra.mxu0 %v564
        %1589 = vmatprep.subr.mxu0 0.0
        %1590 = vmatpush1.msra.mxu0 %v565
        %1591 = vmatprep.subr.mxu0 0.0
        %1592 = vmatpush1.msra.mxu0 0.0
        %1593 = vmatprep.subr.mxu0 0.0
        %1594 = vmatpush1.msra.mxu0 0.0
        %1595 = vmatprep.subr.mxu0 0.0
        %1596 = vmatpush1.msra.mxu0 0.0
        %1597 = vmatprep.subr.mxu0 0.0
        %1598 = vmatpush1.msra.mxu0 0.0
        %1599 = vmatprep.subr.mxu0 0.0
        %1600 = vmatpush1.msra.mxu0 0.0
        %1601 = vmatprep.subr.mxu0 0.0
        %1602 = vmatpush1.msra.mxu0 0.0
        %1603 = vmatprep.subr.mxu0 0.0
        %1604 = vmatpush1.msra.mxu0 0.0
        %1605 = vmatprep.subr.mxu0 0.0
        %1606 = vmatpush1.msra.mxu0 0.0
        %1607 = vmatprep.subr.mxu0 0.0
        %1608 = vmatpush1.msra.mxu0 0.0
        %1609 = vmatprep.subr.mxu0 0.0
        %1610 = vmatpush1.msra.mxu0 0.0
        %1611 = vmatprep.subr.mxu0 0.0
        %1612 = vmatpush1.msra.mxu0 0.0
        %1613 = vmatprep.subr.mxu0 0.0
        %1614 = vmatpush1.msra.mxu0 0.0
        %1615 = vmatprep.subr.mxu0 0.0
        %1616 = vmatpush1.msra.mxu0 0.0
        %1617 = vmatprep.subr.mxu0 0.0
        %1618 = vmatpush1.msra.mxu0 0.0
        %1619 = vmatprep.subr.mxu0 0.0
        %1620 = vmatpush1.msra.mxu0 0.0
        %1621 = vmatprep.subr.mxu0 0.0
        %1622 = vmatpush1.msra.mxu0 0.0
        %1623 = vmatprep.subr.mxu0 0.0
        %1624 = vmatpush1.msra.mxu0 0.0
        %1625 = vmatprep.subr.mxu0 0.0
        %1626 = vmatpush1.msra.mxu0 0.0
        %1627 = vmatprep.subr.mxu0 0.0
        %1628 = vmatpush1.msra.mxu0 0.0
        %1629 = vmatprep.subr.mxu0 0.0
        %1630 = vmatpush1.msra.mxu0 0.0
        %1631 = vmatprep.subr.mxu0 0.0
        %1632 = vmatpush1.msra.mxu0 0.0
        %1633 = vmatprep.subr.mxu0 0.0
        %1634 = vmatpush1.msra.mxu0 0.0
        %1635 = vmatprep.subr.mxu0 0.0
        %1636 = vmatpush1.msra.mxu0 0.0
        %1637 = vmatprep.subr.mxu0 0.0
        %1638 = vmatpush1.msra.mxu0 0.0
        %1639 = vmatprep.subr.mxu0 0.0
        %1640 = vmatpush1.msra.mxu0 0.0
        %1641 = vmatprep.subr.mxu0 0.0
        %1642 = vmatpush1.msra.mxu0 0.0
        %1643 = vmatprep.subr.mxu0 0.0
        %1644 = vmatpush1.msra.mxu0 0.0
        %1645 = vmatprep.subr.mxu0 0.0
        %1646 = vmatpush1.msra.mxu0 0.0
        %1647 = vmatprep.subr.mxu0 0.0
        %1648 = vmatpush1.msra.mxu0 0.0
        %1649 = vmatprep.subr.mxu0 0.0
        %1650 = vmatpush1.msra.mxu0 0.0
        %1651 = vmatprep.mubr.f32.mxu0 0.0
        %1652 = vmatmul.mubr.f32.gmra.mrb[0].mxu0 %v1582
        %v1653 = vpop.f32.mrb[0].mxu0
        %v1654 = vadd.f32 0.0, %v1653
        %v1655 = vpop.f32.mrb[0].mxu0
        %1656 = vmatprep.mubr.f32.mxu0 0.0
        %1657 = vmatmul.mubr.f32.gmra.mrb[0].mxu0 %v1585
        %v1658 = vpop.f32.mrb[0].mxu0
        %v1659 = vadd.f32 0.0, %v1658
        %v1660 = vpop.f32.mrb[0].mxu0
        %1661 = vdwg.mxu0
        %1662 = vmatprep.subr.mxu0 0.0
        %1663 = vmatpush1.msra.mxu0 %v1654
        %1664 = vmatprep.subr.mxu0 0.0
        %1665 = vmatpush1.msra.mxu0 %v1659
        %1666 = vmatprep.subr.mxu0 0.0
        %1667 = vmatpush1.msra.mxu0 0.0
        %1668 = vmatprep.subr.mxu0 0.0
        %1669 = vmatpush1.msra.mxu0 0.0
        %1670 = vmatprep.subr.mxu0 0.0
        %1671 = vmatpush1.msra.mxu0 0.0
        %1672 = vmatprep.subr.mxu0 0.0
        %1673 = vmatpush1.msra.mxu0 0.0
        %1674 = vmatprep.subr.mxu0 0.0
        %1675 = vmatpush1.msra.mxu0 0.0
        %1676 = vmatprep.subr.mxu0 0.0
        %1677 = vmatpush1.msra.mxu0 0.0
        %1678 = vmatprep.subr.mxu0 0.0
        %1679 = vmatpush1.msra.mxu0 0.0
        %1680 = vmatprep.subr.mxu0 0.0
        %1681 = vmatpush1.msra.mxu0 0.0
        %1682 = vmatprep.subr.mxu0 0.0
        %1683 = vmatpush1.msra.mxu0 0.0
        %1684 = vmatprep.subr.mxu0 0.0
        %1685 = vmatpush1.msra.mxu0 0.0
        %1686 = vmatprep.subr.mxu0 0.0
        %1687 = vmatpush1.msra.mxu0 0.0
        %1688 = vmatprep.subr.mxu0 0.0
        %1689 = vmatpush1.msra.mxu0 0.0
        %1690 = vmatprep.subr.mxu0 0.0
        %1691 = vmatpush1.msra.mxu0 0.0
        %1692 = vmatprep.subr.mxu0 0.0
        %1693 = vmatpush1.msra.mxu0 0.0
        %1694 = vmatprep.subr.mxu0 0.0
        %1695 = vmatpush1.msra.mxu0 0.0
        %1696 = vmatprep.subr.mxu0 0.0
        %1697 = vmatpush1.msra.mxu0 0.0
        %1698 = vmatprep.subr.mxu0 0.0
        %1699 = vmatpush1.msra.mxu0 0.0
        %1700 = vmatprep.subr.mxu0 0.0
        %1701 = vmatpush1.msra.mxu0 0.0
        %1702 = vmatprep.subr.mxu0 0.0
        %1703 = vmatpush1.msra.mxu0 0.0
        %1704 = vmatprep.subr.mxu0 0.0
        %1705 = vmatpush1.msra.mxu0 0.0
        %1706 = vmatprep.subr.mxu0 0.0
        %1707 = vmatpush1.msra.mxu0 0.0
        %1708 = vmatprep.subr.mxu0 0.0
        %1709 = vmatpush1.msra.mxu0 0.0
        %1710 = vmatprep.subr.mxu0 0.0
        %1711 = vmatpush1.msra.mxu0 0.0
        %1712 = vmatprep.subr.mxu0 0.0
        %1713 = vmatpush1.msra.mxu0 0.0
        %1714 = vmatprep.subr.mxu0 0.0
        %1715 = vmatpush1.msra.mxu0 0.0
        %1716 = vmatprep.subr.mxu0 0.0
        %1717 = vmatpush1.msra.mxu0 0.0
        %1718 = vmatprep.subr.mxu0 0.0
        %1719 = vmatpush1.msra.mxu0 0.0
        %1720 = vmatprep.subr.mxu0 0.0
        %1721 = vmatpush1.msra.mxu0 0.0
        %1722 = vmatprep.subr.mxu0 0.0
        %1723 = vmatpush1.msra.mxu0 0.0
        %1724 = vmatprep.subr.mxu0 0.0
        %1725 = vmatpush1.msra.mxu0 0.0
        %1726 = vmatprep.mubr.f32.mxu0 0.0
        %1727 = vmatmul.mubr.f32.gmra.mrb[0].mxu0 %v659
        %v1728 = vpop.f32.mrb[0].mxu0
        %v1729 = vadd.f32 0.0, %v1728
        %v1730 = vpop.f32.mrb[0].mxu0
        %1731 = vmatprep.mubr.f32.mxu0 0.0
        %1732 = vmatmul.mubr.f32.gmra.mrb[0].mxu0 %v662
        %v1733 = vpop.f32.mrb[0].mxu0
        %v1734 = vadd.f32 0.0, %v1733
        %v1735 = vpop.f32.mrb[0].mxu0
        %1736 = vdwg.mxu0
        %v1737 = vand.u32 2147483647, %v1729
        %v1738 = vand.u32 2147483647, %v1734
        %1739 = vmatprep.subr.mxu0 0.0
        %1740 = vmatpush1.msra.mxu0 %v566
        %1741 = vmatprep.subr.mxu0 0.0
        %1742 = vmatpush1.msra.mxu0 %v567
        %1743 = vmatprep.subr.mxu0 0.0
        %1744 = vmatpush1.msra.mxu0 0.0
        %1745 = vmatprep.subr.mxu0 0.0
        %1746 = vmatpush1.msra.mxu0 0.0
        %1747 = vmatprep.subr.mxu0 0.0
        %1748 = vmatpush1.msra.mxu0 0.0
        %1749 = vmatprep.subr.mxu0 0.0
        %1750 = vmatpush1.msra.mxu0 0.0
        %1751 = vmatprep.subr.mxu0 0.0
        %1752 = vmatpush1.msra.mxu0 0.0
        %1753 = vmatprep.subr.mxu0 0.0
        %1754 = vmatpush1.msra.mxu0 0.0
        %1755 = vmatprep.subr.mxu0 0.0
        %1756 = vmatpush1.msra.mxu0 0.0
        %1757 = vmatprep.subr.mxu0 0.0
        %1758 = vmatpush1.msra.mxu0 0.0
        %1759 = vmatprep.subr.mxu0 0.0
        %1760 = vmatpush1.msra.mxu0 0.0
        %1761 = vmatprep.subr.mxu0 0.0
        %1762 = vmatpush1.msra.mxu0 0.0
        %1763 = vmatprep.subr.mxu0 0.0
        %1764 = vmatpush1.msra.mxu0 0.0
        %1765 = vmatprep.subr.mxu0 0.0
        %1766 = vmatpush1.msra.mxu0 0.0
        %1767 = vmatprep.subr.mxu0 0.0
        %1768 = vmatpush1.msra.mxu0 0.0
        %1769 = vmatprep.subr.mxu0 0.0
        %1770 = vmatpush1.msra.mxu0 0.0
        %1771 = vmatprep.subr.mxu0 0.0
        %1772 = vmatpush1.msra.mxu0 0.0
        %1773 = vmatprep.subr.mxu0 0.0
        %1774 = vmatpush1.msra.mxu0 0.0
        %1775 = vmatprep.subr.mxu0 0.0
        %1776 = vmatpush1.msra.mxu0 0.0
        %1777 = vmatprep.subr.mxu0 0.0
        %1778 = vmatpush1.msra.mxu0 0.0
        %1779 = vmatprep.subr.mxu0 0.0
        %1780 = vmatpush1.msra.mxu0 0.0
        %1781 = vmatprep.subr.mxu0 0.0
        %1782 = vmatpush1.msra.mxu0 0.0
        %1783 = vmatprep.subr.mxu0 0.0
        %1784 = vmatpush1.msra.mxu0 0.0
        %1785 = vmatprep.subr.mxu0 0.0
        %1786 = vmatpush1.msra.mxu0 0.0
        %1787 = vmatprep.subr.mxu0 0.0
        %1788 = vmatpush1.msra.mxu0 0.0
        %1789 = vmatprep.subr.mxu0 0.0
        %1790 = vmatpush1.msra.mxu0 0.0
        %1791 = vmatprep.subr.mxu0 0.0
        %1792 = vmatpush1.msra.mxu0 0.0
        %1793 = vmatprep.subr.mxu0 0.0
        %1794 = vmatpush1.msra.mxu0 0.0
        %1795 = vmatprep.subr.mxu0 0.0
        %1796 = vmatpush1.msra.mxu0 0.0
        %1797 = vmatprep.subr.mxu0 0.0
        %1798 = vmatpush1.msra.mxu0 0.0
        %1799 = vmatprep.subr.mxu0 0.0
        %1800 = vmatpush1.msra.mxu0 0.0
        %1801 = vmatprep.subr.mxu0 0.0
        %1802 = vmatpush1.msra.mxu0 0.0
        %1803 = vmatprep.mubr.f32.mxu0 0.0
        %1804 = vmatmul.mubr.f32.gmra.mrb[0].mxu0 %v1582
        %v1805 = vpop.f32.mrb[0].mxu0
        %v1806 = vadd.f32 0.0, %v1805
        %v1807 = vpop.f32.mrb[0].mxu0
        %1808 = vmatprep.mubr.f32.mxu0 0.0
        %1809 = vmatmul.mubr.f32.gmra.mrb[0].mxu0 %v1585
        %v1810 = vpop.f32.mrb[0].mxu0
        %v1811 = vadd.f32 0.0, %v1810
        %v1812 = vpop.f32.mrb[0].mxu0
        %1813 = vdwg.mxu0
        %1814 = vmatprep.subr.mxu0 0.0
        %1815 = vmatpush1.msra.mxu0 %v1806
        %1816 = vmatprep.subr.mxu0 0.0
        %1817 = vmatpush1.msra.mxu0 %v1811
        %1818 = vmatprep.subr.mxu0 0.0
        %1819 = vmatpush1.msra.mxu0 0.0
        %1820 = vmatprep.subr.mxu0 0.0
        %1821 = vmatpush1.msra.mxu0 0.0
        %1822 = vmatprep.subr.mxu0 0.0
        %1823 = vmatpush1.msra.mxu0 0.0
        %1824 = vmatprep.subr.mxu0 0.0
        %1825 = vmatpush1.msra.mxu0 0.0
        %1826 = vmatprep.subr.mxu0 0.0
        %1827 = vmatpush1.msra.mxu0 0.0
        %1828 = vmatprep.subr.mxu0 0.0
        %1829 = vmatpush1.msra.mxu0 0.0
        %1830 = vmatprep.subr.mxu0 0.0
        %1831 = vmatpush1.msra.mxu0 0.0
        %1832 = vmatprep.subr.mxu0 0.0
        %1833 = vmatpush1.msra.mxu0 0.0
        %1834 = vmatprep.subr.mxu0 0.0
        %1835 = vmatpush1.msra.mxu0 0.0
        %1836 = vmatprep.subr.mxu0 0.0
        %1837 = vmatpush1.msra.mxu0 0.0
        %1838 = vmatprep.subr.mxu0 0.0
        %1839 = vmatpush1.msra.mxu0 0.0
        %1840 = vmatprep.subr.mxu0 0.0
        %1841 = vmatpush1.msra.mxu0 0.0
        %1842 = vmatprep.subr.mxu0 0.0
        %1843 = vmatpush1.msra.mxu0 0.0
        %1844 = vmatprep.subr.mxu0 0.0
        %1845 = vmatpush1.msra.mxu0 0.0
        %1846 = vmatprep.subr.mxu0 0.0
        %1847 = vmatpush1.msra.mxu0 0.0
        %1848 = vmatprep.subr.mxu0 0.0
        %1849 = vmatpush1.msra.mxu0 0.0
        %1850 = vmatprep.subr.mxu0 0.0
        %1851 = vmatpush1.msra.mxu0 0.0
        %1852 = vmatprep.subr.mxu0 0.0
        %1853 = vmatpush1.msra.mxu0 0.0
        %1854 = vmatprep.subr.mxu0 0.0
        %1855 = vmatpush1.msra.mxu0 0.0
        %1856 = vmatprep.subr.mxu0 0.0
        %1857 = vmatpush1.msra.mxu0 0.0
        %1858 = vmatprep.subr.mxu0 0.0
        %1859 = vmatpush1.msra.mxu0 0.0
        %1860 = vmatprep.subr.mxu0 0.0
        %1861 = vmatpush1.msra.mxu0 0.0
        %1862 = vmatprep.subr.mxu0 0.0
        %1863 = vmatpush1.msra.mxu0 0.0
        %1864 = vmatprep.subr.mxu0 0.0
        %1865 = vmatpush1.msra.mxu0 0.0
        %1866 = vmatprep.subr.mxu0 0.0
        %1867 = vmatpush1.msra.mxu0 0.0
        %1868 = vmatprep.subr.mxu0 0.0
        %1869 = vmatpush1.msra.mxu0 0.0
        %1870 = vmatprep.subr.mxu0 0.0
        %1871 = vmatpush1.msra.mxu0 0.0
        %1872 = vmatprep.subr.mxu0 0.0
        %1873 = vmatpush1.msra.mxu0 0.0
        %1874 = vmatprep.subr.mxu0 0.0
        %1875 = vmatpush1.msra.mxu0 0.0
        %1876 = vmatprep.subr.mxu0 0.0
        %1877 = vmatpush1.msra.mxu0 0.0
        %1878 = vmatprep.mubr.f32.mxu0 0.0
        %1879 = vmatmul.mubr.f32.gmra.mrb[0].mxu0 %v817
        %v1880 = vpop.f32.mrb[0].mxu0
        %v1881 = vadd.f32 0.0, %v1880
        %v1882 = vpop.f32.mrb[0].mxu0
        %1883 = vmatprep.mubr.f32.mxu0 0.0
        %1884 = vmatmul.mubr.f32.gmra.mrb[0].mxu0 %v820
        %v1885 = vpop.f32.mrb[0].mxu0
        %v1886 = vadd.f32 0.0, %v1885
        %v1887 = vpop.f32.mrb[0].mxu0
        %1888 = vdwg.mxu0
        %v1889 = vand.u32 2147483647, %v1881
        %v1890 = vand.u32 2147483647, %v1886
        %v1891 = vadd.f32 %v1737, %v1889
        %v1892 = vadd.f32 %v1738, %v1890
        %v1893 = vsel %vm576, %v1891, 0.0
        %v1894 = vsel %vm576, %v1892, 0.0
        %v1895 = vadd.f32 %v1893, %v1894
        %1896 = vadd.xlane.f32.xlu0 %v1895
        %v1897 = vpop.xlane.xlu0 %1896
        %v1898 = vrot.slane %v1897, 4
        %v1899 = vadd.f32 %v1897, %v1898
        %v1900 = vrot.slane %v1899, 2
        %v1901 = vadd.f32 %v1899, %v1900
        %v1902 = vrot.slane %v1901, 1
        %v1903 = vadd.f32 %v1901, %v1902
        %s1904 = vtos %v1903
        %1905 = vmatprep.subr.mxu0 0.0
        %1906 = vmatpush1.msra.mxu0 %v570
        %1907 = vmatprep.subr.mxu0 0.0
        %1908 = vmatpush1.msra.mxu0 %v571
        %1909 = vmatprep.subr.mxu0 0.0
        %1910 = vmatpush1.msra.mxu0 0.0
        %1911 = vmatprep.subr.mxu0 0.0
        %1912 = vmatpush1.msra.mxu0 0.0
        %1913 = vmatprep.subr.mxu0 0.0
        %1914 = vmatpush1.msra.mxu0 0.0
        %1915 = vmatprep.subr.mxu0 0.0
        %1916 = vmatpush1.msra.mxu0 0.0
        %1917 = vmatprep.subr.mxu0 0.0
        %1918 = vmatpush1.msra.mxu0 0.0
        %1919 = vmatprep.subr.mxu0 0.0
        %1920 = vmatpush1.msra.mxu0 0.0
        %1921 = vmatprep.subr.mxu0 0.0
        %1922 = vmatpush1.msra.mxu0 0.0
        %1923 = vmatprep.subr.mxu0 0.0
        %1924 = vmatpush1.msra.mxu0 0.0
        %1925 = vmatprep.subr.mxu0 0.0
        %1926 = vmatpush1.msra.mxu0 0.0
        %1927 = vmatprep.subr.mxu0 0.0
        %1928 = vmatpush1.msra.mxu0 0.0
        %1929 = vmatprep.subr.mxu0 0.0
        %1930 = vmatpush1.msra.mxu0 0.0
        %1931 = vmatprep.subr.mxu0 0.0
        %1932 = vmatpush1.msra.mxu0 0.0
        %1933 = vmatprep.subr.mxu0 0.0
        %1934 = vmatpush1.msra.mxu0 0.0
        %1935 = vmatprep.subr.mxu0 0.0
        %1936 = vmatpush1.msra.mxu0 0.0
        %1937 = vmatprep.subr.mxu0 0.0
        %1938 = vmatpush1.msra.mxu0 0.0
        %1939 = vmatprep.subr.mxu0 0.0
        %1940 = vmatpush1.msra.mxu0 0.0
        %1941 = vmatprep.subr.mxu0 0.0
        %1942 = vmatpush1.msra.mxu0 0.0
        %1943 = vmatprep.subr.mxu0 0.0
        %1944 = vmatpush1.msra.mxu0 0.0
        %1945 = vmatprep.subr.mxu0 0.0
        %1946 = vmatpush1.msra.mxu0 0.0
        %1947 = vmatprep.subr.mxu0 0.0
        %1948 = vmatpush1.msra.mxu0 0.0
        %1949 = vmatprep.subr.mxu0 0.0
        %1950 = vmatpush1.msra.mxu0 0.0
        %1951 = vmatprep.subr.mxu0 0.0
        %1952 = vmatpush1.msra.mxu0 0.0
        %1953 = vmatprep.subr.mxu0 0.0
        %1954 = vmatpush1.msra.mxu0 0.0
        %1955 = vmatprep.subr.mxu0 0.0
        %1956 = vmatpush1.msra.mxu0 0.0
        %1957 = vmatprep.subr.mxu0 0.0
        %1958 = vmatpush1.msra.mxu0 0.0
        %1959 = vmatprep.subr.mxu0 0.0
        %1960 = vmatpush1.msra.mxu0 0.0
        %1961 = vmatprep.subr.mxu0 0.0
        %1962 = vmatpush1.msra.mxu0 0.0
        %1963 = vmatprep.subr.mxu0 0.0
        %1964 = vmatpush1.msra.mxu0 0.0
        %1965 = vmatprep.subr.mxu0 0.0
        %1966 = vmatpush1.msra.mxu0 0.0
        %1967 = vmatprep.subr.mxu0 0.0
        %1968 = vmatpush1.msra.mxu0 0.0
        %1969 = vmatprep.mubr.f32.mxu0 0.0
        %1970 = vmatmul.mubr.f32.gmra.mrb[0].mxu0 %v578
        %v1971 = vpop.f32.mrb[0].mxu0
        %v1972 = vadd.f32 0.0, %v1971
        %v1973 = vpop.f32.mrb[0].mxu0
        %1974 = vmatprep.mubr.f32.mxu0 0.0
        %1975 = vmatmul.mubr.f32.gmra.mrb[0].mxu0 %v581
        %v1976 = vpop.f32.mrb[0].mxu0
        %v1977 = vadd.f32 0.0, %v1976
        %v1978 = vpop.f32.mrb[0].mxu0
        %1979 = vdwg.mxu0
        %v1981 = vsel %vm576, %v568, 0
        %v1984 = vsel %vm576, %v569, 0
        %1986 = vmatprep.subr.mxu0 0.0
        %1987 = vmatpush1.msra.mxu0 %v1972
        %1988 = vmatprep.subr.mxu0 0.0
        %1989 = vmatpush1.msra.mxu0 %v1977
        %1990 = vmatprep.subr.mxu0 0.0
        %1991 = vmatpush1.msra.mxu0 0.0
        %1992 = vmatprep.subr.mxu0 0.0
        %1993 = vmatpush1.msra.mxu0 0.0
        %1994 = vmatprep.subr.mxu0 0.0
        %1995 = vmatpush1.msra.mxu0 0.0
        %1996 = vmatprep.subr.mxu0 0.0
        %1997 = vmatpush1.msra.mxu0 0.0
        %1998 = vmatprep.subr.mxu0 0.0
        %1999 = vmatpush1.msra.mxu0 0.0
        %2000 = vmatprep.subr.mxu0 0.0
        %2001 = vmatpush1.msra.mxu0 0.0
        %2002 = vmatprep.subr.mxu0 0.0
        %2003 = vmatpush1.msra.mxu0 0.0
        %2004 = vmatprep.subr.mxu0 0.0
        %2005 = vmatpush1.msra.mxu0 0.0
        %2006 = vmatprep.subr.mxu0 0.0
        %2007 = vmatpush1.msra.mxu0 0.0
        %2008 = vmatprep.subr.mxu0 0.0
        %2009 = vmatpush1.msra.mxu0 0.0
        %2010 = vmatprep.subr.mxu0 0.0
        %2011 = vmatpush1.msra.mxu0 0.0
        %2012 = vmatprep.subr.mxu0 0.0
        %2013 = vmatpush1.msra.mxu0 0.0
        %2014 = vmatprep.subr.mxu0 0.0
        %2015 = vmatpush1.msra.mxu0 0.0
        %2016 = vmatprep.subr.mxu0 0.0
        %2017 = vmatpush1.msra.mxu0 0.0
        %2018 = vmatprep.subr.mxu0 0.0
        %2019 = vmatpush1.msra.mxu0 0.0
        %2020 = vmatprep.subr.mxu0 0.0
        %2021 = vmatpush1.msra.mxu0 0.0
        %2022 = vmatprep.subr.mxu0 0.0
        %2023 = vmatpush1.msra.mxu0 0.0
        %2024 = vmatprep.subr.mxu0 0.0
        %2025 = vmatpush1.msra.mxu0 0.0
        %2026 = vmatprep.subr.mxu0 0.0
        %2027 = vmatpush1.msra.mxu0 0.0
        %2028 = vmatprep.subr.mxu0 0.0
        %2029 = vmatpush1.msra.mxu0 0.0
        %2030 = vmatprep.subr.mxu0 0.0
        %2031 = vmatpush1.msra.mxu0 0.0
        %2032 = vmatprep.subr.mxu0 0.0
        %2033 = vmatpush1.msra.mxu0 0.0
        %2034 = vmatprep.subr.mxu0 0.0
        %2035 = vmatpush1.msra.mxu0 0.0
        %2036 = vmatprep.subr.mxu0 0.0
        %2037 = vmatpush1.msra.mxu0 0.0
        %2038 = vmatprep.subr.mxu0 0.0
        %2039 = vmatpush1.msra.mxu0 0.0
        %2040 = vmatprep.subr.mxu0 0.0
        %2041 = vmatpush1.msra.mxu0 0.0
        %2042 = vmatprep.subr.mxu0 0.0
        %2043 = vmatpush1.msra.mxu0 0.0
        %2044 = vmatprep.subr.mxu0 0.0
        %2045 = vmatpush1.msra.mxu0 0.0
        %2046 = vmatprep.subr.mxu0 0.0
        %2047 = vmatpush1.msra.mxu0 0.0
        %2048 = vmatprep.subr.mxu0 0.0
        %2049 = vmatpush1.msra.mxu0 0.0
        %2050 = vmatprep.mubr.f32.mxu0 0.0
        %2051 = vmatmul.mubr.f32.gmra.mrb[0].mxu0 %v1981
        %v2052 = vpop.f32.mrb[0].mxu0
        %v2053 = vadd.f32 0.0, %v2052
        %v2054 = vpop.f32.mrb[0].mxu0
        %2055 = vmatprep.mubr.f32.mxu0 0.0
        %2056 = vmatmul.mubr.f32.gmra.mrb[0].mxu0 %v1984
        %v2057 = vpop.f32.mrb[0].mxu0
        %v2058 = vadd.f32 0.0, %v2057
        %v2059 = vpop.f32.mrb[0].mxu0
        %2060 = vdwg.mxu0
        %v2061 = vmul.f32 %v2053, %v2053
        %v2062 = vmul.f32 %v2058, %v2058
        %v2063 = vmul.f32 %v558, %v558
        %v2064 = vmul.f32 %v559, %v559
        %v2066 = vsel %vm576, %v2063, 0
        %v2069 = vsel %vm576, %v2064, 0
        %2071 = vmatprep.subr.mxu0 0.0
        %2072 = vmatpush1.msra.mxu0 %v570
        %2073 = vmatprep.subr.mxu0 0.0
        %2074 = vmatpush1.msra.mxu0 %v571
        %2075 = vmatprep.subr.mxu0 0.0
        %2076 = vmatpush1.msra.mxu0 0.0
        %2077 = vmatprep.subr.mxu0 0.0
        %2078 = vmatpush1.msra.mxu0 0.0
        %2079 = vmatprep.subr.mxu0 0.0
        %2080 = vmatpush1.msra.mxu0 0.0
        %2081 = vmatprep.subr.mxu0 0.0
        %2082 = vmatpush1.msra.mxu0 0.0
        %2083 = vmatprep.subr.mxu0 0.0
        %2084 = vmatpush1.msra.mxu0 0.0
        %2085 = vmatprep.subr.mxu0 0.0
        %2086 = vmatpush1.msra.mxu0 0.0
        %2087 = vmatprep.subr.mxu0 0.0
        %2088 = vmatpush1.msra.mxu0 0.0
        %2089 = vmatprep.subr.mxu0 0.0
        %2090 = vmatpush1.msra.mxu0 0.0
        %2091 = vmatprep.subr.mxu0 0.0
        %2092 = vmatpush1.msra.mxu0 0.0
        %2093 = vmatprep.subr.mxu0 0.0
        %2094 = vmatpush1.msra.mxu0 0.0
        %2095 = vmatprep.subr.mxu0 0.0
        %2096 = vmatpush1.msra.mxu0 0.0
        %2097 = vmatprep.subr.mxu0 0.0
        %2098 = vmatpush1.msra.mxu0 0.0
        %2099 = vmatprep.subr.mxu0 0.0
        %2100 = vmatpush1.msra.mxu0 0.0
        %2101 = vmatprep.subr.mxu0 0.0
        %2102 = vmatpush1.msra.mxu0 0.0
        %2103 = vmatprep.subr.mxu0 0.0
        %2104 = vmatpush1.msra.mxu0 0.0
        %2105 = vmatprep.subr.mxu0 0.0
        %2106 = vmatpush1.msra.mxu0 0.0
        %2107 = vmatprep.subr.mxu0 0.0
        %2108 = vmatpush1.msra.mxu0 0.0
        %2109 = vmatprep.subr.mxu0 0.0
        %2110 = vmatpush1.msra.mxu0 0.0
        %2111 = vmatprep.subr.mxu0 0.0
        %2112 = vmatpush1.msra.mxu0 0.0
        %2113 = vmatprep.subr.mxu0 0.0
        %2114 = vmatpush1.msra.mxu0 0.0
        %2115 = vmatprep.subr.mxu0 0.0
        %2116 = vmatpush1.msra.mxu0 0.0
        %2117 = vmatprep.subr.mxu0 0.0
        %2118 = vmatpush1.msra.mxu0 0.0
        %2119 = vmatprep.subr.mxu0 0.0
        %2120 = vmatpush1.msra.mxu0 0.0
        %2121 = vmatprep.subr.mxu0 0.0
        %2122 = vmatpush1.msra.mxu0 0.0
        %2123 = vmatprep.subr.mxu0 0.0
        %2124 = vmatpush1.msra.mxu0 0.0
        %2125 = vmatprep.subr.mxu0 0.0
        %2126 = vmatpush1.msra.mxu0 0.0
        %2127 = vmatprep.subr.mxu0 0.0
        %2128 = vmatpush1.msra.mxu0 0.0
        %2129 = vmatprep.subr.mxu0 0.0
        %2130 = vmatpush1.msra.mxu0 0.0
        %2131 = vmatprep.subr.mxu0 0.0
        %2132 = vmatpush1.msra.mxu0 0.0
        %2133 = vmatprep.subr.mxu0 0.0
        %2134 = vmatpush1.msra.mxu0 0.0
        %2135 = vmatprep.mubr.f32.mxu0 0.0
        %2136 = vmatmul.mubr.f32.gmra.mrb[0].mxu0 %v2066
        %v2137 = vpop.f32.mrb[0].mxu0
        %v2138 = vadd.f32 0.0, %v2137
        %v2139 = vpop.f32.mrb[0].mxu0
        %2140 = vmatprep.mubr.f32.mxu0 0.0
        %2141 = vmatmul.mubr.f32.gmra.mrb[0].mxu0 %v2069
        %v2142 = vpop.f32.mrb[0].mxu0
        %v2143 = vadd.f32 0.0, %v2142
        %v2144 = vpop.f32.mrb[0].mxu0
        %2145 = vdwg.mxu0
        %2146 = vmatprep.subr.mxu0 0.0
        %2147 = vmatpush1.msra.mxu0 %v2138
        %2148 = vmatprep.subr.mxu0 0.0
        %2149 = vmatpush1.msra.mxu0 %v2143
        %2150 = vmatprep.subr.mxu0 0.0
        %2151 = vmatpush1.msra.mxu0 0.0
        %2152 = vmatprep.subr.mxu0 0.0
        %2153 = vmatpush1.msra.mxu0 0.0
        %2154 = vmatprep.subr.mxu0 0.0
        %2155 = vmatpush1.msra.mxu0 0.0
        %2156 = vmatprep.subr.mxu0 0.0
        %2157 = vmatpush1.msra.mxu0 0.0
        %2158 = vmatprep.subr.mxu0 0.0
        %2159 = vmatpush1.msra.mxu0 0.0
        %2160 = vmatprep.subr.mxu0 0.0
        %2161 = vmatpush1.msra.mxu0 0.0
        %2162 = vmatprep.subr.mxu0 0.0
        %2163 = vmatpush1.msra.mxu0 0.0
        %2164 = vmatprep.subr.mxu0 0.0
        %2165 = vmatpush1.msra.mxu0 0.0
        %2166 = vmatprep.subr.mxu0 0.0
        %2167 = vmatpush1.msra.mxu0 0.0
        %2168 = vmatprep.subr.mxu0 0.0
        %2169 = vmatpush1.msra.mxu0 0.0
        %2170 = vmatprep.subr.mxu0 0.0
        %2171 = vmatpush1.msra.mxu0 0.0
        %2172 = vmatprep.subr.mxu0 0.0
        %2173 = vmatpush1.msra.mxu0 0.0
        %2174 = vmatprep.subr.mxu0 0.0
        %2175 = vmatpush1.msra.mxu0 0.0
        %2176 = vmatprep.subr.mxu0 0.0
        %2177 = vmatpush1.msra.mxu0 0.0
        %2178 = vmatprep.subr.mxu0 0.0
        %2179 = vmatpush1.msra.mxu0 0.0
        %2180 = vmatprep.subr.mxu0 0.0
        %2181 = vmatpush1.msra.mxu0 0.0
        %2182 = vmatprep.subr.mxu0 0.0
        %2183 = vmatpush1.msra.mxu0 0.0
        %2184 = vmatprep.subr.mxu0 0.0
        %2185 = vmatpush1.msra.mxu0 0.0
        %2186 = vmatprep.subr.mxu0 0.0
        %2187 = vmatpush1.msra.mxu0 0.0
        %2188 = vmatprep.subr.mxu0 0.0
        %2189 = vmatpush1.msra.mxu0 0.0
        %2190 = vmatprep.subr.mxu0 0.0
        %2191 = vmatpush1.msra.mxu0 0.0
        %2192 = vmatprep.subr.mxu0 0.0
        %2193 = vmatpush1.msra.mxu0 0.0
        %2194 = vmatprep.subr.mxu0 0.0
        %2195 = vmatpush1.msra.mxu0 0.0
        %2196 = vmatprep.subr.mxu0 0.0
        %2197 = vmatpush1.msra.mxu0 0.0
        %2198 = vmatprep.subr.mxu0 0.0
        %2199 = vmatpush1.msra.mxu0 0.0
        %2200 = vmatprep.subr.mxu0 0.0
        %2201 = vmatpush1.msra.mxu0 0.0
        %2202 = vmatprep.subr.mxu0 0.0
        %2203 = vmatpush1.msra.mxu0 0.0
        %2204 = vmatprep.subr.mxu0 0.0
        %2205 = vmatpush1.msra.mxu0 0.0
        %2206 = vmatprep.subr.mxu0 0.0
        %2207 = vmatpush1.msra.mxu0 0.0
        %2208 = vmatprep.subr.mxu0 0.0
        %2209 = vmatpush1.msra.mxu0 0.0
        %2210 = vmatprep.mubr.f32.mxu0 0.0
        %2211 = vmatmul.mubr.f32.gmra.mrb[0].mxu0 %v1981
        %v2212 = vpop.f32.mrb[0].mxu0
        %v2213 = vadd.f32 0.0, %v2212
        %v2214 = vpop.f32.mrb[0].mxu0
        %2215 = vmatprep.mubr.f32.mxu0 0.0
        %2216 = vmatmul.mubr.f32.gmra.mrb[0].mxu0 %v1984
        %v2217 = vpop.f32.mrb[0].mxu0
        %v2218 = vadd.f32 0.0, %v2217
        %v2219 = vpop.f32.mrb[0].mxu0
        %2220 = vdwg.mxu0
        %v2221 = vsub.f32 %v2213, %v2061
        %v2222 = vsub.f32 %v2218, %v2062
        %2223 = vmatprep.subr.mxu0 0.0
        %2224 = vmatpush1.msra.mxu0 %v570
        %2225 = vmatprep.subr.mxu0 0.0
        %2226 = vmatpush1.msra.mxu0 %v571
        %2227 = vmatprep.subr.mxu0 0.0
        %2228 = vmatpush1.msra.mxu0 0.0
        %2229 = vmatprep.subr.mxu0 0.0
        %2230 = vmatpush1.msra.mxu0 0.0
        %2231 = vmatprep.subr.mxu0 0.0
        %2232 = vmatpush1.msra.mxu0 0.0
        %2233 = vmatprep.subr.mxu0 0.0
        %2234 = vmatpush1.msra.mxu0 0.0
        %2235 = vmatprep.subr.mxu0 0.0
        %2236 = vmatpush1.msra.mxu0 0.0
        %2237 = vmatprep.subr.mxu0 0.0
        %2238 = vmatpush1.msra.mxu0 0.0
        %2239 = vmatprep.subr.mxu0 0.0
        %2240 = vmatpush1.msra.mxu0 0.0
        %2241 = vmatprep.subr.mxu0 0.0
        %2242 = vmatpush1.msra.mxu0 0.0
        %2243 = vmatprep.subr.mxu0 0.0
        %2244 = vmatpush1.msra.mxu0 0.0
        %2245 = vmatprep.subr.mxu0 0.0
        %2246 = vmatpush1.msra.mxu0 0.0
        %2247 = vmatprep.subr.mxu0 0.0
        %2248 = vmatpush1.msra.mxu0 0.0
        %2249 = vmatprep.subr.mxu0 0.0
        %2250 = vmatpush1.msra.mxu0 0.0
        %2251 = vmatprep.subr.mxu0 0.0
        %2252 = vmatpush1.msra.mxu0 0.0
        %2253 = vmatprep.subr.mxu0 0.0
        %2254 = vmatpush1.msra.mxu0 0.0
        %2255 = vmatprep.subr.mxu0 0.0
        %2256 = vmatpush1.msra.mxu0 0.0
        %2257 = vmatprep.subr.mxu0 0.0
        %2258 = vmatpush1.msra.mxu0 0.0
        %2259 = vmatprep.subr.mxu0 0.0
        %2260 = vmatpush1.msra.mxu0 0.0
        %2261 = vmatprep.subr.mxu0 0.0
        %2262 = vmatpush1.msra.mxu0 0.0
        %2263 = vmatprep.subr.mxu0 0.0
        %2264 = vmatpush1.msra.mxu0 0.0
        %2265 = vmatprep.subr.mxu0 0.0
        %2266 = vmatpush1.msra.mxu0 0.0
        %2267 = vmatprep.subr.mxu0 0.0
        %2268 = vmatpush1.msra.mxu0 0.0
        %2269 = vmatprep.subr.mxu0 0.0
        %2270 = vmatpush1.msra.mxu0 0.0
        %2271 = vmatprep.subr.mxu0 0.0
        %2272 = vmatpush1.msra.mxu0 0.0
        %2273 = vmatprep.subr.mxu0 0.0
        %2274 = vmatpush1.msra.mxu0 0.0
        %2275 = vmatprep.subr.mxu0 0.0
        %2276 = vmatpush1.msra.mxu0 0.0
        %2277 = vmatprep.subr.mxu0 0.0
        %2278 = vmatpush1.msra.mxu0 0.0
        %2279 = vmatprep.subr.mxu0 0.0
        %2280 = vmatpush1.msra.mxu0 0.0
        %2281 = vmatprep.subr.mxu0 0.0
        %2282 = vmatpush1.msra.mxu0 0.0
        %2283 = vmatprep.subr.mxu0 0.0
        %2284 = vmatpush1.msra.mxu0 0.0
        %2285 = vmatprep.subr.mxu0 0.0
        %2286 = vmatpush1.msra.mxu0 0.0
        %2287 = vmatprep.mubr.f32.mxu0 0.0
        %2288 = vmatmul.mubr.f32.gmra.mrb[0].mxu0 %v934
        %v2289 = vpop.f32.mrb[0].mxu0
        %v2290 = vadd.f32 0.0, %v2289
        %v2291 = vpop.f32.mrb[0].mxu0
        %2292 = vmatprep.mubr.f32.mxu0 0.0
        %2293 = vmatmul.mubr.f32.gmra.mrb[0].mxu0 %v937
        %v2294 = vpop.f32.mrb[0].mxu0
        %v2295 = vadd.f32 0.0, %v2294
        %v2296 = vpop.f32.mrb[0].mxu0
        %2297 = vdwg.mxu0
        %2298 = vmatprep.subr.mxu0 0.0
        %2299 = vmatpush1.msra.mxu0 %v2290
        %2300 = vmatprep.subr.mxu0 0.0
        %2301 = vmatpush1.msra.mxu0 %v2295
        %2302 = vmatprep.subr.mxu0 0.0
        %2303 = vmatpush1.msra.mxu0 0.0
        %2304 = vmatprep.subr.mxu0 0.0
        %2305 = vmatpush1.msra.mxu0 0.0
        %2306 = vmatprep.subr.mxu0 0.0
        %2307 = vmatpush1.msra.mxu0 0.0
        %2308 = vmatprep.subr.mxu0 0.0
        %2309 = vmatpush1.msra.mxu0 0.0
        %2310 = vmatprep.subr.mxu0 0.0
        %2311 = vmatpush1.msra.mxu0 0.0
        %2312 = vmatprep.subr.mxu0 0.0
        %2313 = vmatpush1.msra.mxu0 0.0
        %2314 = vmatprep.subr.mxu0 0.0
        %2315 = vmatpush1.msra.mxu0 0.0
        %2316 = vmatprep.subr.mxu0 0.0
        %2317 = vmatpush1.msra.mxu0 0.0
        %2318 = vmatprep.subr.mxu0 0.0
        %2319 = vmatpush1.msra.mxu0 0.0
        %2320 = vmatprep.subr.mxu0 0.0
        %2321 = vmatpush1.msra.mxu0 0.0
        %2322 = vmatprep.subr.mxu0 0.0
        %2323 = vmatpush1.msra.mxu0 0.0
        %2324 = vmatprep.subr.mxu0 0.0
        %2325 = vmatpush1.msra.mxu0 0.0
        %2326 = vmatprep.subr.mxu0 0.0
        %2327 = vmatpush1.msra.mxu0 0.0
        %2328 = vmatprep.subr.mxu0 0.0
        %2329 = vmatpush1.msra.mxu0 0.0
        %2330 = vmatprep.subr.mxu0 0.0
        %2331 = vmatpush1.msra.mxu0 0.0
        %2332 = vmatprep.subr.mxu0 0.0
        %2333 = vmatpush1.msra.mxu0 0.0
        %2334 = vmatprep.subr.mxu0 0.0
        %2335 = vmatpush1.msra.mxu0 0.0
        %2336 = vmatprep.subr.mxu0 0.0
        %2337 = vmatpush1.msra.mxu0 0.0
        %2338 = vmatprep.subr.mxu0 0.0
        %2339 = vmatpush1.msra.mxu0 0.0
        %2340 = vmatprep.subr.mxu0 0.0
        %2341 = vmatpush1.msra.mxu0 0.0
        %2342 = vmatprep.subr.mxu0 0.0
        %2343 = vmatpush1.msra.mxu0 0.0
        %2344 = vmatprep.subr.mxu0 0.0
        %2345 = vmatpush1.msra.mxu0 0.0
        %2346 = vmatprep.subr.mxu0 0.0
        %2347 = vmatpush1.msra.mxu0 0.0
        %2348 = vmatprep.subr.mxu0 0.0
        %2349 = vmatpush1.msra.mxu0 0.0
        %2350 = vmatprep.subr.mxu0 0.0
        %2351 = vmatpush1.msra.mxu0 0.0
        %2352 = vmatprep.subr.mxu0 0.0
        %2353 = vmatpush1.msra.mxu0 0.0
        %2354 = vmatprep.subr.mxu0 0.0
        %2355 = vmatpush1.msra.mxu0 0.0
        %2356 = vmatprep.subr.mxu0 0.0
        %2357 = vmatpush1.msra.mxu0 0.0
        %2358 = vmatprep.subr.mxu0 0.0
        %2359 = vmatpush1.msra.mxu0 0.0
        %2360 = vmatprep.subr.mxu0 0.0
        %2361 = vmatpush1.msra.mxu0 0.0
        %2362 = vmatprep.mubr.f32.mxu0 0.0
        %2363 = vmatmul.mubr.f32.gmra.mrb[0].mxu0 %v1981
        %v2364 = vpop.f32.mrb[0].mxu0
        %v2365 = vadd.f32 0.0, %v2364
        %v2366 = vpop.f32.mrb[0].mxu0
        %2367 = vmatprep.mubr.f32.mxu0 0.0
        %2368 = vmatmul.mubr.f32.gmra.mrb[0].mxu0 %v1984
        %v2369 = vpop.f32.mrb[0].mxu0
        %v2370 = vadd.f32 0.0, %v2369
        %v2371 = vpop.f32.mrb[0].mxu0
        %2372 = vdwg.mxu0
        %v2373 = vmul.f32 %v2365, %v2365
        %v2374 = vmul.f32 %v2370, %v2370
        %v2375 = vmul.f32 %v2365, %v2053
        %v2376 = vmul.f32 %v2370, %v2058
        %v2377 = vmul.f32 %v552, %v552
        %v2378 = vmul.f32 %v553, %v553
        %v2380 = vsel %vm576, %v2377, 0
        %v2383 = vsel %vm576, %v2378, 0
        %2385 = vmatprep.subr.mxu0 0.0
        %2386 = vmatpush1.msra.mxu0 %v570
        %2387 = vmatprep.subr.mxu0 0.0
        %2388 = vmatpush1.msra.mxu0 %v571
        %2389 = vmatprep.subr.mxu0 0.0
        %2390 = vmatpush1.msra.mxu0 0.0
        %2391 = vmatprep.subr.mxu0 0.0
        %2392 = vmatpush1.msra.mxu0 0.0
        %2393 = vmatprep.subr.mxu0 0.0
        %2394 = vmatpush1.msra.mxu0 0.0
        %2395 = vmatprep.subr.mxu0 0.0
        %2396 = vmatpush1.msra.mxu0 0.0
        %2397 = vmatprep.subr.mxu0 0.0
        %2398 = vmatpush1.msra.mxu0 0.0
        %2399 = vmatprep.subr.mxu0 0.0
        %2400 = vmatpush1.msra.mxu0 0.0
        %2401 = vmatprep.subr.mxu0 0.0
        %2402 = vmatpush1.msra.mxu0 0.0
        %2403 = vmatprep.subr.mxu0 0.0
        %2404 = vmatpush1.msra.mxu0 0.0
        %2405 = vmatprep.subr.mxu0 0.0
        %2406 = vmatpush1.msra.mxu0 0.0
        %2407 = vmatprep.subr.mxu0 0.0
        %2408 = vmatpush1.msra.mxu0 0.0
        %2409 = vmatprep.subr.mxu0 0.0
        %2410 = vmatpush1.msra.mxu0 0.0
        %2411 = vmatprep.subr.mxu0 0.0
        %2412 = vmatpush1.msra.mxu0 0.0
        %2413 = vmatprep.subr.mxu0 0.0
        %2414 = vmatpush1.msra.mxu0 0.0
        %2415 = vmatprep.subr.mxu0 0.0
        %2416 = vmatpush1.msra.mxu0 0.0
        %2417 = vmatprep.subr.mxu0 0.0
        %2418 = vmatpush1.msra.mxu0 0.0
        %2419 = vmatprep.subr.mxu0 0.0
        %2420 = vmatpush1.msra.mxu0 0.0
        %2421 = vmatprep.subr.mxu0 0.0
        %2422 = vmatpush1.msra.mxu0 0.0
        %2423 = vmatprep.subr.mxu0 0.0
        %2424 = vmatpush1.msra.mxu0 0.0
        %2425 = vmatprep.subr.mxu0 0.0
        %2426 = vmatpush1.msra.mxu0 0.0
        %2427 = vmatprep.subr.mxu0 0.0
        %2428 = vmatpush1.msra.mxu0 0.0
        %2429 = vmatprep.subr.mxu0 0.0
        %2430 = vmatpush1.msra.mxu0 0.0
        %2431 = vmatprep.subr.mxu0 0.0
        %2432 = vmatpush1.msra.mxu0 0.0
        %2433 = vmatprep.subr.mxu0 0.0
        %2434 = vmatpush1.msra.mxu0 0.0
        %2435 = vmatprep.subr.mxu0 0.0
        %2436 = vmatpush1.msra.mxu0 0.0
        %2437 = vmatprep.subr.mxu0 0.0
        %2438 = vmatpush1.msra.mxu0 0.0
        %2439 = vmatprep.subr.mxu0 0.0
        %2440 = vmatpush1.msra.mxu0 0.0
        %2441 = vmatprep.subr.mxu0 0.0
        %2442 = vmatpush1.msra.mxu0 0.0
        %2443 = vmatprep.subr.mxu0 0.0
        %2444 = vmatpush1.msra.mxu0 0.0
        %2445 = vmatprep.subr.mxu0 0.0
        %2446 = vmatpush1.msra.mxu0 0.0
        %2447 = vmatprep.subr.mxu0 0.0
        %2448 = vmatpush1.msra.mxu0 0.0
        %2449 = vmatprep.mubr.f32.mxu0 0.0
        %2450 = vmatmul.mubr.f32.gmra.mrb[0].mxu0 %v2380
        %v2451 = vpop.f32.mrb[0].mxu0
        %v2452 = vadd.f32 0.0, %v2451
        %v2453 = vpop.f32.mrb[0].mxu0
        %2454 = vmatprep.mubr.f32.mxu0 0.0
        %2455 = vmatmul.mubr.f32.gmra.mrb[0].mxu0 %v2383
        %v2456 = vpop.f32.mrb[0].mxu0
        %v2457 = vadd.f32 0.0, %v2456
        %v2458 = vpop.f32.mrb[0].mxu0
        %2459 = vdwg.mxu0
        %2460 = vmatprep.subr.mxu0 0.0
        %2461 = vmatpush1.msra.mxu0 %v2452
        %2462 = vmatprep.subr.mxu0 0.0
        %2463 = vmatpush1.msra.mxu0 %v2457
        %2464 = vmatprep.subr.mxu0 0.0
        %2465 = vmatpush1.msra.mxu0 0.0
        %2466 = vmatprep.subr.mxu0 0.0
        %2467 = vmatpush1.msra.mxu0 0.0
        %2468 = vmatprep.subr.mxu0 0.0
        %2469 = vmatpush1.msra.mxu0 0.0
        %2470 = vmatprep.subr.mxu0 0.0
        %2471 = vmatpush1.msra.mxu0 0.0
        %2472 = vmatprep.subr.mxu0 0.0
        %2473 = vmatpush1.msra.mxu0 0.0
        %2474 = vmatprep.subr.mxu0 0.0
        %2475 = vmatpush1.msra.mxu0 0.0
        %2476 = vmatprep.subr.mxu0 0.0
        %2477 = vmatpush1.msra.mxu0 0.0
        %2478 = vmatprep.subr.mxu0 0.0
        %2479 = vmatpush1.msra.mxu0 0.0
        %2480 = vmatprep.subr.mxu0 0.0
        %2481 = vmatpush1.msra.mxu0 0.0
        %2482 = vmatprep.subr.mxu0 0.0
        %2483 = vmatpush1.msra.mxu0 0.0
        %2484 = vmatprep.subr.mxu0 0.0
        %2485 = vmatpush1.msra.mxu0 0.0
        %2486 = vmatprep.subr.mxu0 0.0
        %2487 = vmatpush1.msra.mxu0 0.0
        %2488 = vmatprep.subr.mxu0 0.0
        %2489 = vmatpush1.msra.mxu0 0.0
        %2490 = vmatprep.subr.mxu0 0.0
        %2491 = vmatpush1.msra.mxu0 0.0
        %2492 = vmatprep.subr.mxu0 0.0
        %2493 = vmatpush1.msra.mxu0 0.0
        %2494 = vmatprep.subr.mxu0 0.0
        %2495 = vmatpush1.msra.mxu0 0.0
        %2496 = vmatprep.subr.mxu0 0.0
        %2497 = vmatpush1.msra.mxu0 0.0
        %2498 = vmatprep.subr.mxu0 0.0
        %2499 = vmatpush1.msra.mxu0 0.0
        %2500 = vmatprep.subr.mxu0 0.0
        %2501 = vmatpush1.msra.mxu0 0.0
        %2502 = vmatprep.subr.mxu0 0.0
        %2503 = vmatpush1.msra.mxu0 0.0
        %2504 = vmatprep.subr.mxu0 0.0
        %2505 = vmatpush1.msra.mxu0 0.0
        %2506 = vmatprep.subr.mxu0 0.0
        %2507 = vmatpush1.msra.mxu0 0.0
        %2508 = vmatprep.subr.mxu0 0.0
        %2509 = vmatpush1.msra.mxu0 0.0
        %2510 = vmatprep.subr.mxu0 0.0
        %2511 = vmatpush1.msra.mxu0 0.0
        %2512 = vmatprep.subr.mxu0 0.0
        %2513 = vmatpush1.msra.mxu0 0.0
        %2514 = vmatprep.subr.mxu0 0.0
        %2515 = vmatpush1.msra.mxu0 0.0
        %2516 = vmatprep.subr.mxu0 0.0
        %2517 = vmatpush1.msra.mxu0 0.0
        %2518 = vmatprep.subr.mxu0 0.0
        %2519 = vmatpush1.msra.mxu0 0.0
        %2520 = vmatprep.subr.mxu0 0.0
        %2521 = vmatpush1.msra.mxu0 0.0
        %2522 = vmatprep.subr.mxu0 0.0
        %2523 = vmatpush1.msra.mxu0 0.0
        %2524 = vmatprep.mubr.f32.mxu0 0.0
        %2525 = vmatmul.mubr.f32.gmra.mrb[0].mxu0 %v1981
        %v2526 = vpop.f32.mrb[0].mxu0
        %v2527 = vadd.f32 0.0, %v2526
        %v2528 = vpop.f32.mrb[0].mxu0
        %2529 = vmatprep.mubr.f32.mxu0 0.0
        %2530 = vmatmul.mubr.f32.gmra.mrb[0].mxu0 %v1984
        %v2531 = vpop.f32.mrb[0].mxu0
        %v2532 = vadd.f32 0.0, %v2531
        %v2533 = vpop.f32.mrb[0].mxu0
        %2534 = vdwg.mxu0
        %v2535 = vsub.f32 %v2527, %v2373
        %v2536 = vsub.f32 %v2532, %v2374
        %v2537 = vmul.f32 %v552, %v558
        %v2538 = vmul.f32 %v553, %v559
        %v2540 = vsel %vm576, %v2537, 0
        %v2543 = vsel %vm576, %v2538, 0
        %2545 = vmatprep.subr.mxu0 0.0
        %2546 = vmatpush1.msra.mxu0 %v570
        %2547 = vmatprep.subr.mxu0 0.0
        %2548 = vmatpush1.msra.mxu0 %v571
        %2549 = vmatprep.subr.mxu0 0.0
        %2550 = vmatpush1.msra.mxu0 0.0
        %2551 = vmatprep.subr.mxu0 0.0
        %2552 = vmatpush1.msra.mxu0 0.0
        %2553 = vmatprep.subr.mxu0 0.0
        %2554 = vmatpush1.msra.mxu0 0.0
        %2555 = vmatprep.subr.mxu0 0.0
        %2556 = vmatpush1.msra.mxu0 0.0
        %2557 = vmatprep.subr.mxu0 0.0
        %2558 = vmatpush1.msra.mxu0 0.0
        %2559 = vmatprep.subr.mxu0 0.0
        %2560 = vmatpush1.msra.mxu0 0.0
        %2561 = vmatprep.subr.mxu0 0.0
        %2562 = vmatpush1.msra.mxu0 0.0
        %2563 = vmatprep.subr.mxu0 0.0
        %2564 = vmatpush1.msra.mxu0 0.0
        %2565 = vmatprep.subr.mxu0 0.0
        %2566 = vmatpush1.msra.mxu0 0.0
        %2567 = vmatprep.subr.mxu0 0.0
        %2568 = vmatpush1.msra.mxu0 0.0
        %2569 = vmatprep.subr.mxu0 0.0
        %2570 = vmatpush1.msra.mxu0 0.0
        %2571 = vmatprep.subr.mxu0 0.0
        %2572 = vmatpush1.msra.mxu0 0.0
        %2573 = vmatprep.subr.mxu0 0.0
        %2574 = vmatpush1.msra.mxu0 0.0
        %2575 = vmatprep.subr.mxu0 0.0
        %2576 = vmatpush1.msra.mxu0 0.0
        %2577 = vmatprep.subr.mxu0 0.0
        %2578 = vmatpush1.msra.mxu0 0.0
        %2579 = vmatprep.subr.mxu0 0.0
        %2580 = vmatpush1.msra.mxu0 0.0
        %2581 = vmatprep.subr.mxu0 0.0
        %2582 = vmatpush1.msra.mxu0 0.0
        %2583 = vmatprep.subr.mxu0 0.0
        %2584 = vmatpush1.msra.mxu0 0.0
        %2585 = vmatprep.subr.mxu0 0.0
        %2586 = vmatpush1.msra.mxu0 0.0
        %2587 = vmatprep.subr.mxu0 0.0
        %2588 = vmatpush1.msra.mxu0 0.0
        %2589 = vmatprep.subr.mxu0 0.0
        %2590 = vmatpush1.msra.mxu0 0.0
        %2591 = vmatprep.subr.mxu0 0.0
        %2592 = vmatpush1.msra.mxu0 0.0
        %2593 = vmatprep.subr.mxu0 0.0
        %2594 = vmatpush1.msra.mxu0 0.0
        %2595 = vmatprep.subr.mxu0 0.0
        %2596 = vmatpush1.msra.mxu0 0.0
        %2597 = vmatprep.subr.mxu0 0.0
        %2598 = vmatpush1.msra.mxu0 0.0
        %2599 = vmatprep.subr.mxu0 0.0
        %2600 = vmatpush1.msra.mxu0 0.0
        %2601 = vmatprep.subr.mxu0 0.0
        %2602 = vmatpush1.msra.mxu0 0.0
        %2603 = vmatprep.subr.mxu0 0.0
        %2604 = vmatpush1.msra.mxu0 0.0
        %2605 = vmatprep.subr.mxu0 0.0
        %2606 = vmatpush1.msra.mxu0 0.0
        %2607 = vmatprep.subr.mxu0 0.0
        %2608 = vmatpush1.msra.mxu0 0.0
        %2609 = vmatprep.mubr.f32.mxu0 0.0
        %2610 = vmatmul.mubr.f32.gmra.mrb[0].mxu0 %v2540
        %v2611 = vpop.f32.mrb[0].mxu0
        %v2612 = vadd.f32 0.0, %v2611
        %v2613 = vpop.f32.mrb[0].mxu0
        %2614 = vmatprep.mubr.f32.mxu0 0.0
        %2615 = vmatmul.mubr.f32.gmra.mrb[0].mxu0 %v2543
        %v2616 = vpop.f32.mrb[0].mxu0
        %v2617 = vadd.f32 0.0, %v2616
        %v2618 = vpop.f32.mrb[0].mxu0
        %2619 = vdwg.mxu0
        %2620 = vmatprep.subr.mxu0 0.0
        %2621 = vmatpush1.msra.mxu0 %v2612
        %2622 = vmatprep.subr.mxu0 0.0
        %2623 = vmatpush1.msra.mxu0 %v2617
        %2624 = vmatprep.subr.mxu0 0.0
        %2625 = vmatpush1.msra.mxu0 0.0
        %2626 = vmatprep.subr.mxu0 0.0
        %2627 = vmatpush1.msra.mxu0 0.0
        %2628 = vmatprep.subr.mxu0 0.0
        %2629 = vmatpush1.msra.mxu0 0.0
        %2630 = vmatprep.subr.mxu0 0.0
        %2631 = vmatpush1.msra.mxu0 0.0
        %2632 = vmatprep.subr.mxu0 0.0
        %2633 = vmatpush1.msra.mxu0 0.0
        %2634 = vmatprep.subr.mxu0 0.0
        %2635 = vmatpush1.msra.mxu0 0.0
        %2636 = vmatprep.subr.mxu0 0.0
        %2637 = vmatpush1.msra.mxu0 0.0
        %2638 = vmatprep.subr.mxu0 0.0
        %2639 = vmatpush1.msra.mxu0 0.0
        %2640 = vmatprep.subr.mxu0 0.0
        %2641 = vmatpush1.msra.mxu0 0.0
        %2642 = vmatprep.subr.mxu0 0.0
        %2643 = vmatpush1.msra.mxu0 0.0
        %2644 = vmatprep.subr.mxu0 0.0
        %2645 = vmatpush1.msra.mxu0 0.0
        %2646 = vmatprep.subr.mxu0 0.0
        %2647 = vmatpush1.msra.mxu0 0.0
        %2648 = vmatprep.subr.mxu0 0.0
        %2649 = vmatpush1.msra.mxu0 0.0
        %2650 = vmatprep.subr.mxu0 0.0
        %2651 = vmatpush1.msra.mxu0 0.0
        %2652 = vmatprep.subr.mxu0 0.0
        %2653 = vmatpush1.msra.mxu0 0.0
        %2654 = vmatprep.subr.mxu0 0.0
        %2655 = vmatpush1.msra.mxu0 0.0
        %2656 = vmatprep.subr.mxu0 0.0
        %2657 = vmatpush1.msra.mxu0 0.0
        %2658 = vmatprep.subr.mxu0 0.0
        %2659 = vmatpush1.msra.mxu0 0.0
        %2660 = vmatprep.subr.mxu0 0.0
        %2661 = vmatpush1.msra.mxu0 0.0
        %2662 = vmatprep.subr.mxu0 0.0
        %2663 = vmatpush1.msra.mxu0 0.0
        %2664 = vmatprep.subr.mxu0 0.0
        %2665 = vmatpush1.msra.mxu0 0.0
        %2666 = vmatprep.subr.mxu0 0.0
        %2667 = vmatpush1.msra.mxu0 0.0
        %2668 = vmatprep.subr.mxu0 0.0
        %2669 = vmatpush1.msra.mxu0 0.0
        %2670 = vmatprep.subr.mxu0 0.0
        %2671 = vmatpush1.msra.mxu0 0.0
        %2672 = vmatprep.subr.mxu0 0.0
        %2673 = vmatpush1.msra.mxu0 0.0
        %2674 = vmatprep.subr.mxu0 0.0
        %2675 = vmatpush1.msra.mxu0 0.0
        %2676 = vmatprep.subr.mxu0 0.0
        %2677 = vmatpush1.msra.mxu0 0.0
        %2678 = vmatprep.subr.mxu0 0.0
        %2679 = vmatpush1.msra.mxu0 0.0
        %2680 = vmatprep.subr.mxu0 0.0
        %2681 = vmatpush1.msra.mxu0 0.0
        %2682 = vmatprep.subr.mxu0 0.0
        %2683 = vmatpush1.msra.mxu0 0.0
        %2684 = vmatprep.mubr.f32.mxu0 0.0
        %2685 = vmatmul.mubr.f32.gmra.mrb[0].mxu0 %v1981
        %v2686 = vpop.f32.mrb[0].mxu0
        %v2687 = vadd.f32 0.0, %v2686
        %v2688 = vpop.f32.mrb[0].mxu0
        %2689 = vmatprep.mubr.f32.mxu0 0.0
        %2690 = vmatmul.mubr.f32.gmra.mrb[0].mxu0 %v1984
        %v2691 = vpop.f32.mrb[0].mxu0
        %v2692 = vadd.f32 0.0, %v2691
        %v2693 = vpop.f32.mrb[0].mxu0
        %2694 = vdwg.mxu0
        %v2695 = vsub.f32 %v2687, %v2375
        %v2696 = vsub.f32 %v2692, %v2376
        %v2697 = vmul.f32 %v2375, 2.0
        %v2698 = vmul.f32 %v2376, 2.0
        %v2699 = vadd.f32 %v2697, 0.0001
        %v2700 = vadd.f32 %v2698, 0.0001
        %v2701 = vmul.f32 %v2695, 2.0
        %v2702 = vmul.f32 %v2696, 2.0
        %v2703 = vadd.f32 %v2701, 0.0009
        %v2704 = vadd.f32 %v2702, 0.0009
        %v2705 = vmul.f32 %v2699, %v2703
        %v2706 = vmul.f32 %v2700, %v2704
        %v2707 = vadd.f32 %v2373, %v2061
        %v2708 = vadd.f32 %v2374, %v2062
        %v2709 = vadd.f32 %v2707, 0.0001
        %v2710 = vadd.f32 %v2708, 0.0001
        %v2711 = vadd.f32 %v2535, %v2221
        %v2712 = vadd.f32 %v2536, %v2222
        %v2713 = vadd.f32 %v2711, 0.0009
        %v2714 = vadd.f32 %v2712, 0.0009
        %v2715 = vmul.f32 %v2709, %v2713
        %v2716 = vmul.f32 %v2710, %v2714
        %v2717 = vrcp.pop %v2715
        %v2718 = vmul.f32 %v2705, %v2717
        %v2719 = vrcp.pop %v2716
        %v2720 = vmul.f32 %v2706, %v2719
        %v2721 = vsel %vm576, %v2718, 0.0
        %v2722 = vsel %vm576, %v2720, 0.0
        %v2723 = vadd.f32 %v2721, %v2722
        %2724 = vadd.xlane.f32.xlu0 %v2723
        %v2725 = vpop.xlane.xlu0 %2724
        %v2726 = vrot.slane %v2725, 4
        %v2727 = vadd.f32 %v2725, %v2726
        %v2728 = vrot.slane %v2727, 2
        %v2729 = vadd.f32 %v2727, %v2728
        %v2730 = vrot.slane %v2729, 1
        %v2731 = vadd.f32 %v2729, %v2730
        %s2732 = vtos %v2731
        %2733 = vmatprep.subr.mxu0 0.0
        %2734 = vmatpush1.msra.mxu0 %v570
        %2735 = vmatprep.subr.mxu0 0.0
        %2736 = vmatpush1.msra.mxu0 %v571
        %2737 = vmatprep.subr.mxu0 0.0
        %2738 = vmatpush1.msra.mxu0 0.0
        %2739 = vmatprep.subr.mxu0 0.0
        %2740 = vmatpush1.msra.mxu0 0.0
        %2741 = vmatprep.subr.mxu0 0.0
        %2742 = vmatpush1.msra.mxu0 0.0
        %2743 = vmatprep.subr.mxu0 0.0
        %2744 = vmatpush1.msra.mxu0 0.0
        %2745 = vmatprep.subr.mxu0 0.0
        %2746 = vmatpush1.msra.mxu0 0.0
        %2747 = vmatprep.subr.mxu0 0.0
        %2748 = vmatpush1.msra.mxu0 0.0
        %2749 = vmatprep.subr.mxu0 0.0
        %2750 = vmatpush1.msra.mxu0 0.0
        %2751 = vmatprep.subr.mxu0 0.0
        %2752 = vmatpush1.msra.mxu0 0.0
        %2753 = vmatprep.subr.mxu0 0.0
        %2754 = vmatpush1.msra.mxu0 0.0
        %2755 = vmatprep.subr.mxu0 0.0
        %2756 = vmatpush1.msra.mxu0 0.0
        %2757 = vmatprep.subr.mxu0 0.0
        %2758 = vmatpush1.msra.mxu0 0.0
        %2759 = vmatprep.subr.mxu0 0.0
        %2760 = vmatpush1.msra.mxu0 0.0
        %2761 = vmatprep.subr.mxu0 0.0
        %2762 = vmatpush1.msra.mxu0 0.0
        %2763 = vmatprep.subr.mxu0 0.0
        %2764 = vmatpush1.msra.mxu0 0.0
        %2765 = vmatprep.subr.mxu0 0.0
        %2766 = vmatpush1.msra.mxu0 0.0
        %2767 = vmatprep.subr.mxu0 0.0
        %2768 = vmatpush1.msra.mxu0 0.0
        %2769 = vmatprep.subr.mxu0 0.0
        %2770 = vmatpush1.msra.mxu0 0.0
        %2771 = vmatprep.subr.mxu0 0.0
        %2772 = vmatpush1.msra.mxu0 0.0
        %2773 = vmatprep.subr.mxu0 0.0
        %2774 = vmatpush1.msra.mxu0 0.0
        %2775 = vmatprep.subr.mxu0 0.0
        %2776 = vmatpush1.msra.mxu0 0.0
        %2777 = vmatprep.subr.mxu0 0.0
        %2778 = vmatpush1.msra.mxu0 0.0
        %2779 = vmatprep.subr.mxu0 0.0
        %2780 = vmatpush1.msra.mxu0 0.0
        %2781 = vmatprep.subr.mxu0 0.0
        %2782 = vmatpush1.msra.mxu0 0.0
        %2783 = vmatprep.subr.mxu0 0.0
        %2784 = vmatpush1.msra.mxu0 0.0
        %2785 = vmatprep.subr.mxu0 0.0
        %2786 = vmatpush1.msra.mxu0 0.0
        %2787 = vmatprep.subr.mxu0 0.0
        %2788 = vmatpush1.msra.mxu0 0.0
        %2789 = vmatprep.subr.mxu0 0.0
        %2790 = vmatpush1.msra.mxu0 0.0
        %2791 = vmatprep.subr.mxu0 0.0
        %2792 = vmatpush1.msra.mxu0 0.0
        %2793 = vmatprep.subr.mxu0 0.0
        %2794 = vmatpush1.msra.mxu0 0.0
        %2795 = vmatprep.subr.mxu0 0.0
        %2796 = vmatpush1.msra.mxu0 0.0
        %2797 = vmatprep.mubr.f32.mxu0 0.0
        %2798 = vmatmul.mubr.f32.gmra.mrb[0].mxu0 %v1258
        %v2799 = vpop.f32.mrb[0].mxu0
        %v2800 = vadd.f32 0.0, %v2799
        %v2801 = vpop.f32.mrb[0].mxu0
        %2802 = vmatprep.mubr.f32.mxu0 0.0
        %2803 = vmatmul.mubr.f32.gmra.mrb[0].mxu0 %v1261
        %v2804 = vpop.f32.mrb[0].mxu0
        %v2805 = vadd.f32 0.0, %v2804
        %v2806 = vpop.f32.mrb[0].mxu0
        %2807 = vdwg.mxu0
        %2808 = vmatprep.subr.mxu0 0.0
        %2809 = vmatpush1.msra.mxu0 %v2800
        %2810 = vmatprep.subr.mxu0 0.0
        %2811 = vmatpush1.msra.mxu0 %v2805
        %2812 = vmatprep.subr.mxu0 0.0
        %2813 = vmatpush1.msra.mxu0 0.0
        %2814 = vmatprep.subr.mxu0 0.0
        %2815 = vmatpush1.msra.mxu0 0.0
        %2816 = vmatprep.subr.mxu0 0.0
        %2817 = vmatpush1.msra.mxu0 0.0
        %2818 = vmatprep.subr.mxu0 0.0
        %2819 = vmatpush1.msra.mxu0 0.0
        %2820 = vmatprep.subr.mxu0 0.0
        %2821 = vmatpush1.msra.mxu0 0.0
        %2822 = vmatprep.subr.mxu0 0.0
        %2823 = vmatpush1.msra.mxu0 0.0
        %2824 = vmatprep.subr.mxu0 0.0
        %2825 = vmatpush1.msra.mxu0 0.0
        %2826 = vmatprep.subr.mxu0 0.0
        %2827 = vmatpush1.msra.mxu0 0.0
        %2828 = vmatprep.subr.mxu0 0.0
        %2829 = vmatpush1.msra.mxu0 0.0
        %2830 = vmatprep.subr.mxu0 0.0
        %2831 = vmatpush1.msra.mxu0 0.0
        %2832 = vmatprep.subr.mxu0 0.0
        %2833 = vmatpush1.msra.mxu0 0.0
        %2834 = vmatprep.subr.mxu0 0.0
        %2835 = vmatpush1.msra.mxu0 0.0
        %2836 = vmatprep.subr.mxu0 0.0
        %2837 = vmatpush1.msra.mxu0 0.0
        %2838 = vmatprep.subr.mxu0 0.0
        %2839 = vmatpush1.msra.mxu0 0.0
        %2840 = vmatprep.subr.mxu0 0.0
        %2841 = vmatpush1.msra.mxu0 0.0
        %2842 = vmatprep.subr.mxu0 0.0
        %2843 = vmatpush1.msra.mxu0 0.0
        %2844 = vmatprep.subr.mxu0 0.0
        %2845 = vmatpush1.msra.mxu0 0.0
        %2846 = vmatprep.subr.mxu0 0.0
        %2847 = vmatpush1.msra.mxu0 0.0
        %2848 = vmatprep.subr.mxu0 0.0
        %2849 = vmatpush1.msra.mxu0 0.0
        %2850 = vmatprep.subr.mxu0 0.0
        %2851 = vmatpush1.msra.mxu0 0.0
        %2852 = vmatprep.subr.mxu0 0.0
        %2853 = vmatpush1.msra.mxu0 0.0
        %2854 = vmatprep.subr.mxu0 0.0
        %2855 = vmatpush1.msra.mxu0 0.0
        %2856 = vmatprep.subr.mxu0 0.0
        %2857 = vmatpush1.msra.mxu0 0.0
        %2858 = vmatprep.subr.mxu0 0.0
        %2859 = vmatpush1.msra.mxu0 0.0
        %2860 = vmatprep.subr.mxu0 0.0
        %2861 = vmatpush1.msra.mxu0 0.0
        %2862 = vmatprep.subr.mxu0 0.0
        %2863 = vmatpush1.msra.mxu0 0.0
        %2864 = vmatprep.subr.mxu0 0.0
        %2865 = vmatpush1.msra.mxu0 0.0
        %2866 = vmatprep.subr.mxu0 0.0
        %2867 = vmatpush1.msra.mxu0 0.0
        %2868 = vmatprep.subr.mxu0 0.0
        %2869 = vmatpush1.msra.mxu0 0.0
        %2870 = vmatprep.subr.mxu0 0.0
        %2871 = vmatpush1.msra.mxu0 0.0
        %2872 = vmatprep.mubr.f32.mxu0 0.0
        %2873 = vmatmul.mubr.f32.gmra.mrb[0].mxu0 %v1981
        %v2874 = vpop.f32.mrb[0].mxu0
        %v2875 = vadd.f32 0.0, %v2874
        %v2876 = vpop.f32.mrb[0].mxu0
        %2877 = vmatprep.mubr.f32.mxu0 0.0
        %2878 = vmatmul.mubr.f32.gmra.mrb[0].mxu0 %v1984
        %v2879 = vpop.f32.mrb[0].mxu0
        %v2880 = vadd.f32 0.0, %v2879
        %v2881 = vpop.f32.mrb[0].mxu0
        %2882 = vdwg.mxu0
        %v2883 = vmul.f32 %v2875, %v2875
        %v2884 = vmul.f32 %v2880, %v2880
        %v2885 = vmul.f32 %v2875, %v2053
        %v2886 = vmul.f32 %v2880, %v2058
        %v2887 = vmul.f32 %v554, %v554
        %v2888 = vmul.f32 %v555, %v555
        %v2890 = vsel %vm576, %v2887, 0
        %v2893 = vsel %vm576, %v2888, 0
        %2895 = vmatprep.subr.mxu0 0.0
        %2896 = vmatpush1.msra.mxu0 %v570
        %2897 = vmatprep.subr.mxu0 0.0
        %2898 = vmatpush1.msra.mxu0 %v571
        %2899 = vmatprep.subr.mxu0 0.0
        %2900 = vmatpush1.msra.mxu0 0.0
        %2901 = vmatprep.subr.mxu0 0.0
        %2902 = vmatpush1.msra.mxu0 0.0
        %2903 = vmatprep.subr.mxu0 0.0
        %2904 = vmatpush1.msra.mxu0 0.0
        %2905 = vmatprep.subr.mxu0 0.0
        %2906 = vmatpush1.msra.mxu0 0.0
        %2907 = vmatprep.subr.mxu0 0.0
        %2908 = vmatpush1.msra.mxu0 0.0
        %2909 = vmatprep.subr.mxu0 0.0
        %2910 = vmatpush1.msra.mxu0 0.0
        %2911 = vmatprep.subr.mxu0 0.0
        %2912 = vmatpush1.msra.mxu0 0.0
        %2913 = vmatprep.subr.mxu0 0.0
        %2914 = vmatpush1.msra.mxu0 0.0
        %2915 = vmatprep.subr.mxu0 0.0
        %2916 = vmatpush1.msra.mxu0 0.0
        %2917 = vmatprep.subr.mxu0 0.0
        %2918 = vmatpush1.msra.mxu0 0.0
        %2919 = vmatprep.subr.mxu0 0.0
        %2920 = vmatpush1.msra.mxu0 0.0
        %2921 = vmatprep.subr.mxu0 0.0
        %2922 = vmatpush1.msra.mxu0 0.0
        %2923 = vmatprep.subr.mxu0 0.0
        %2924 = vmatpush1.msra.mxu0 0.0
        %2925 = vmatprep.subr.mxu0 0.0
        %2926 = vmatpush1.msra.mxu0 0.0
        %2927 = vmatprep.subr.mxu0 0.0
        %2928 = vmatpush1.msra.mxu0 0.0
        %2929 = vmatprep.subr.mxu0 0.0
        %2930 = vmatpush1.msra.mxu0 0.0
        %2931 = vmatprep.subr.mxu0 0.0
        %2932 = vmatpush1.msra.mxu0 0.0
        %2933 = vmatprep.subr.mxu0 0.0
        %2934 = vmatpush1.msra.mxu0 0.0
        %2935 = vmatprep.subr.mxu0 0.0
        %2936 = vmatpush1.msra.mxu0 0.0
        %2937 = vmatprep.subr.mxu0 0.0
        %2938 = vmatpush1.msra.mxu0 0.0
        %2939 = vmatprep.subr.mxu0 0.0
        %2940 = vmatpush1.msra.mxu0 0.0
        %2941 = vmatprep.subr.mxu0 0.0
        %2942 = vmatpush1.msra.mxu0 0.0
        %2943 = vmatprep.subr.mxu0 0.0
        %2944 = vmatpush1.msra.mxu0 0.0
        %2945 = vmatprep.subr.mxu0 0.0
        %2946 = vmatpush1.msra.mxu0 0.0
        %2947 = vmatprep.subr.mxu0 0.0
        %2948 = vmatpush1.msra.mxu0 0.0
        %2949 = vmatprep.subr.mxu0 0.0
        %2950 = vmatpush1.msra.mxu0 0.0
        %2951 = vmatprep.subr.mxu0 0.0
        %2952 = vmatpush1.msra.mxu0 0.0
        %2953 = vmatprep.subr.mxu0 0.0
        %2954 = vmatpush1.msra.mxu0 0.0
        %2955 = vmatprep.subr.mxu0 0.0
        %2956 = vmatpush1.msra.mxu0 0.0
        %2957 = vmatprep.subr.mxu0 0.0
        %2958 = vmatpush1.msra.mxu0 0.0
        %2959 = vmatprep.mubr.f32.mxu0 0.0
        %2960 = vmatmul.mubr.f32.gmra.mrb[0].mxu0 %v2890
        %v2961 = vpop.f32.mrb[0].mxu0
        %v2962 = vadd.f32 0.0, %v2961
        %v2963 = vpop.f32.mrb[0].mxu0
        %2964 = vmatprep.mubr.f32.mxu0 0.0
        %2965 = vmatmul.mubr.f32.gmra.mrb[0].mxu0 %v2893
        %v2966 = vpop.f32.mrb[0].mxu0
        %v2967 = vadd.f32 0.0, %v2966
        %v2968 = vpop.f32.mrb[0].mxu0
        %2969 = vdwg.mxu0
        %2970 = vmatprep.subr.mxu0 0.0
        %2971 = vmatpush1.msra.mxu0 %v2962
        %2972 = vmatprep.subr.mxu0 0.0
        %2973 = vmatpush1.msra.mxu0 %v2967
        %2974 = vmatprep.subr.mxu0 0.0
        %2975 = vmatpush1.msra.mxu0 0.0
        %2976 = vmatprep.subr.mxu0 0.0
        %2977 = vmatpush1.msra.mxu0 0.0
        %2978 = vmatprep.subr.mxu0 0.0
        %2979 = vmatpush1.msra.mxu0 0.0
        %2980 = vmatprep.subr.mxu0 0.0
        %2981 = vmatpush1.msra.mxu0 0.0
        %2982 = vmatprep.subr.mxu0 0.0
        %2983 = vmatpush1.msra.mxu0 0.0
        %2984 = vmatprep.subr.mxu0 0.0
        %2985 = vmatpush1.msra.mxu0 0.0
        %2986 = vmatprep.subr.mxu0 0.0
        %2987 = vmatpush1.msra.mxu0 0.0
        %2988 = vmatprep.subr.mxu0 0.0
        %2989 = vmatpush1.msra.mxu0 0.0
        %2990 = vmatprep.subr.mxu0 0.0
        %2991 = vmatpush1.msra.mxu0 0.0
        %2992 = vmatprep.subr.mxu0 0.0
        %2993 = vmatpush1.msra.mxu0 0.0
        %2994 = vmatprep.subr.mxu0 0.0
        %2995 = vmatpush1.msra.mxu0 0.0
        %2996 = vmatprep.subr.mxu0 0.0
        %2997 = vmatpush1.msra.mxu0 0.0
        %2998 = vmatprep.subr.mxu0 0.0
        %2999 = vmatpush1.msra.mxu0 0.0
        %3000 = vmatprep.subr.mxu0 0.0
        %3001 = vmatpush1.msra.mxu0 0.0
        %3002 = vmatprep.subr.mxu0 0.0
        %3003 = vmatpush1.msra.mxu0 0.0
        %3004 = vmatprep.subr.mxu0 0.0
        %3005 = vmatpush1.msra.mxu0 0.0
        %3006 = vmatprep.subr.mxu0 0.0
        %3007 = vmatpush1.msra.mxu0 0.0
        %3008 = vmatprep.subr.mxu0 0.0
        %3009 = vmatpush1.msra.mxu0 0.0
        %3010 = vmatprep.subr.mxu0 0.0
        %3011 = vmatpush1.msra.mxu0 0.0
        %3012 = vmatprep.subr.mxu0 0.0
        %3013 = vmatpush1.msra.mxu0 0.0
        %3014 = vmatprep.subr.mxu0 0.0
        %3015 = vmatpush1.msra.mxu0 0.0
        %3016 = vmatprep.subr.mxu0 0.0
        %3017 = vmatpush1.msra.mxu0 0.0
        %3018 = vmatprep.subr.mxu0 0.0
        %3019 = vmatpush1.msra.mxu0 0.0
        %3020 = vmatprep.subr.mxu0 0.0
        %3021 = vmatpush1.msra.mxu0 0.0
        %3022 = vmatprep.subr.mxu0 0.0
        %3023 = vmatpush1.msra.mxu0 0.0
        %3024 = vmatprep.subr.mxu0 0.0
        %3025 = vmatpush1.msra.mxu0 0.0
        %3026 = vmatprep.subr.mxu0 0.0
        %3027 = vmatpush1.msra.mxu0 0.0
        %3028 = vmatprep.subr.mxu0 0.0
        %3029 = vmatpush1.msra.mxu0 0.0
        %3030 = vmatprep.subr.mxu0 0.0
        %3031 = vmatpush1.msra.mxu0 0.0
        %3032 = vmatprep.subr.mxu0 0.0
        %3033 = vmatpush1.msra.mxu0 0.0
        %3034 = vmatprep.mubr.f32.mxu0 0.0
        %3035 = vmatmul.mubr.f32.gmra.mrb[0].mxu0 %v1981
        %v3036 = vpop.f32.mrb[0].mxu0
        %v3037 = vadd.f32 0.0, %v3036
        %v3038 = vpop.f32.mrb[0].mxu0
        %3039 = vmatprep.mubr.f32.mxu0 0.0
        %3040 = vmatmul.mubr.f32.gmra.mrb[0].mxu0 %v1984
        %v3041 = vpop.f32.mrb[0].mxu0
        %v3042 = vadd.f32 0.0, %v3041
        %v3043 = vpop.f32.mrb[0].mxu0
        %3044 = vdwg.mxu0
        %v3045 = vsub.f32 %v3037, %v2883
        %v3046 = vsub.f32 %v3042, %v2884
        %v3047 = vmul.f32 %v554, %v558
        %v3048 = vmul.f32 %v555, %v559
        %v3050 = vsel %vm576, %v3047, 0
        %v3053 = vsel %vm576, %v3048, 0
        %3055 = vmatprep.subr.mxu0 0.0
        %3056 = vmatpush1.msra.mxu0 %v570
        %3057 = vmatprep.subr.mxu0 0.0
        %3058 = vmatpush1.msra.mxu0 %v571
        %3059 = vmatprep.subr.mxu0 0.0
        %3060 = vmatpush1.msra.mxu0 0.0
        %3061 = vmatprep.subr.mxu0 0.0
        %3062 = vmatpush1.msra.mxu0 0.0
        %3063 = vmatprep.subr.mxu0 0.0
        %3064 = vmatpush1.msra.mxu0 0.0
        %3065 = vmatprep.subr.mxu0 0.0
        %3066 = vmatpush1.msra.mxu0 0.0
        %3067 = vmatprep.subr.mxu0 0.0
        %3068 = vmatpush1.msra.mxu0 0.0
        %3069 = vmatprep.subr.mxu0 0.0
        %3070 = vmatpush1.msra.mxu0 0.0
        %3071 = vmatprep.subr.mxu0 0.0
        %3072 = vmatpush1.msra.mxu0 0.0
        %3073 = vmatprep.subr.mxu0 0.0
        %3074 = vmatpush1.msra.mxu0 0.0
        %3075 = vmatprep.subr.mxu0 0.0
        %3076 = vmatpush1.msra.mxu0 0.0
        %3077 = vmatprep.subr.mxu0 0.0
        %3078 = vmatpush1.msra.mxu0 0.0
        %3079 = vmatprep.subr.mxu0 0.0
        %3080 = vmatpush1.msra.mxu0 0.0
        %3081 = vmatprep.subr.mxu0 0.0
        %3082 = vmatpush1.msra.mxu0 0.0
        %3083 = vmatprep.subr.mxu0 0.0
        %3084 = vmatpush1.msra.mxu0 0.0
        %3085 = vmatprep.subr.mxu0 0.0
        %3086 = vmatpush1.msra.mxu0 0.0
        %3087 = vmatprep.subr.mxu0 0.0
        %3088 = vmatpush1.msra.mxu0 0.0
        %3089 = vmatprep.subr.mxu0 0.0
        %3090 = vmatpush1.msra.mxu0 0.0
        %3091 = vmatprep.subr.mxu0 0.0
        %3092 = vmatpush1.msra.mxu0 0.0
        %3093 = vmatprep.subr.mxu0 0.0
        %3094 = vmatpush1.msra.mxu0 0.0
        %3095 = vmatprep.subr.mxu0 0.0
        %3096 = vmatpush1.msra.mxu0 0.0
        %3097 = vmatprep.subr.mxu0 0.0
        %3098 = vmatpush1.msra.mxu0 0.0
        %3099 = vmatprep.subr.mxu0 0.0
        %3100 = vmatpush1.msra.mxu0 0.0
        %3101 = vmatprep.subr.mxu0 0.0
        %3102 = vmatpush1.msra.mxu0 0.0
        %3103 = vmatprep.subr.mxu0 0.0
        %3104 = vmatpush1.msra.mxu0 0.0
        %3105 = vmatprep.subr.mxu0 0.0
        %3106 = vmatpush1.msra.mxu0 0.0
        %3107 = vmatprep.subr.mxu0 0.0
        %3108 = vmatpush1.msra.mxu0 0.0
        %3109 = vmatprep.subr.mxu0 0.0
        %3110 = vmatpush1.msra.mxu0 0.0
        %3111 = vmatprep.subr.mxu0 0.0
        %3112 = vmatpush1.msra.mxu0 0.0
        %3113 = vmatprep.subr.mxu0 0.0
        %3114 = vmatpush1.msra.mxu0 0.0
        %3115 = vmatprep.subr.mxu0 0.0
        %3116 = vmatpush1.msra.mxu0 0.0
        %3117 = vmatprep.subr.mxu0 0.0
        %3118 = vmatpush1.msra.mxu0 0.0
        %3119 = vmatprep.mubr.f32.mxu0 0.0
        %3120 = vmatmul.mubr.f32.gmra.mrb[0].mxu0 %v3050
        %v3121 = vpop.f32.mrb[0].mxu0
        %v3122 = vadd.f32 0.0, %v3121
        %v3123 = vpop.f32.mrb[0].mxu0
        %3124 = vmatprep.mubr.f32.mxu0 0.0
        %3125 = vmatmul.mubr.f32.gmra.mrb[0].mxu0 %v3053
        %v3126 = vpop.f32.mrb[0].mxu0
        %v3127 = vadd.f32 0.0, %v3126
        %v3128 = vpop.f32.mrb[0].mxu0
        %3129 = vdwg.mxu0
        %3130 = vmatprep.subr.mxu0 0.0
        %3131 = vmatpush1.msra.mxu0 %v3122
        %3132 = vmatprep.subr.mxu0 0.0
        %3133 = vmatpush1.msra.mxu0 %v3127
        %3134 = vmatprep.subr.mxu0 0.0
        %3135 = vmatpush1.msra.mxu0 0.0
        %3136 = vmatprep.subr.mxu0 0.0
        %3137 = vmatpush1.msra.mxu0 0.0
        %3138 = vmatprep.subr.mxu0 0.0
        %3139 = vmatpush1.msra.mxu0 0.0
        %3140 = vmatprep.subr.mxu0 0.0
        %3141 = vmatpush1.msra.mxu0 0.0
        %3142 = vmatprep.subr.mxu0 0.0
        %3143 = vmatpush1.msra.mxu0 0.0
        %3144 = vmatprep.subr.mxu0 0.0
        %3145 = vmatpush1.msra.mxu0 0.0
        %3146 = vmatprep.subr.mxu0 0.0
        %3147 = vmatpush1.msra.mxu0 0.0
        %3148 = vmatprep.subr.mxu0 0.0
        %3149 = vmatpush1.msra.mxu0 0.0
        %3150 = vmatprep.subr.mxu0 0.0
        %3151 = vmatpush1.msra.mxu0 0.0
        %3152 = vmatprep.subr.mxu0 0.0
        %3153 = vmatpush1.msra.mxu0 0.0
        %3154 = vmatprep.subr.mxu0 0.0
        %3155 = vmatpush1.msra.mxu0 0.0
        %3156 = vmatprep.subr.mxu0 0.0
        %3157 = vmatpush1.msra.mxu0 0.0
        %3158 = vmatprep.subr.mxu0 0.0
        %3159 = vmatpush1.msra.mxu0 0.0
        %3160 = vmatprep.subr.mxu0 0.0
        %3161 = vmatpush1.msra.mxu0 0.0
        %3162 = vmatprep.subr.mxu0 0.0
        %3163 = vmatpush1.msra.mxu0 0.0
        %3164 = vmatprep.subr.mxu0 0.0
        %3165 = vmatpush1.msra.mxu0 0.0
        %3166 = vmatprep.subr.mxu0 0.0
        %3167 = vmatpush1.msra.mxu0 0.0
        %3168 = vmatprep.subr.mxu0 0.0
        %3169 = vmatpush1.msra.mxu0 0.0
        %3170 = vmatprep.subr.mxu0 0.0
        %3171 = vmatpush1.msra.mxu0 0.0
        %3172 = vmatprep.subr.mxu0 0.0
        %3173 = vmatpush1.msra.mxu0 0.0
        %3174 = vmatprep.subr.mxu0 0.0
        %3175 = vmatpush1.msra.mxu0 0.0
        %3176 = vmatprep.subr.mxu0 0.0
        %3177 = vmatpush1.msra.mxu0 0.0
        %3178 = vmatprep.subr.mxu0 0.0
        %3179 = vmatpush1.msra.mxu0 0.0
        %3180 = vmatprep.subr.mxu0 0.0
        %3181 = vmatpush1.msra.mxu0 0.0
        %3182 = vmatprep.subr.mxu0 0.0
        %3183 = vmatpush1.msra.mxu0 0.0
        %3184 = vmatprep.subr.mxu0 0.0
        %3185 = vmatpush1.msra.mxu0 0.0
        %3186 = vmatprep.subr.mxu0 0.0
        %3187 = vmatpush1.msra.mxu0 0.0
        %3188 = vmatprep.subr.mxu0 0.0
        %3189 = vmatpush1.msra.mxu0 0.0
        %3190 = vmatprep.subr.mxu0 0.0
        %3191 = vmatpush1.msra.mxu0 0.0
        %3192 = vmatprep.subr.mxu0 0.0
        %3193 = vmatpush1.msra.mxu0 0.0
        %3194 = vmatprep.mubr.f32.mxu0 0.0
        %3195 = vmatmul.mubr.f32.gmra.mrb[0].mxu0 %v1981
        %v3196 = vpop.f32.mrb[0].mxu0
        %v3197 = vadd.f32 0.0, %v3196
        %v3198 = vpop.f32.mrb[0].mxu0
        %3199 = vmatprep.mubr.f32.mxu0 0.0
        %3200 = vmatmul.mubr.f32.gmra.mrb[0].mxu0 %v1984
        %v3201 = vpop.f32.mrb[0].mxu0
        %v3202 = vadd.f32 0.0, %v3201
        %v3203 = vpop.f32.mrb[0].mxu0
        %3204 = vdwg.mxu0
        %v3205 = vsub.f32 %v3197, %v2885
        %v3206 = vsub.f32 %v3202, %v2886
        %v3207 = vmul.f32 %v2885, 2.0
        %v3208 = vmul.f32 %v2886, 2.0
        %v3209 = vadd.f32 %v3207, 0.0001
        %v3210 = vadd.f32 %v3208, 0.0001
        %v3211 = vmul.f32 %v3205, 2.0
        %v3212 = vmul.f32 %v3206, 2.0
        %v3213 = vadd.f32 %v3211, 0.0009
        %v3214 = vadd.f32 %v3212, 0.0009
        %v3215 = vmul.f32 %v3209, %v3213
        %v3216 = vmul.f32 %v3210, %v3214
        %v3217 = vadd.f32 %v2883, %v2061
        %v3218 = vadd.f32 %v2884, %v2062
        %v3219 = vadd.f32 %v3217, 0.0001
        %v3220 = vadd.f32 %v3218, 0.0001
        %v3221 = vadd.f32 %v3045, %v2221
        %v3222 = vadd.f32 %v3046, %v2222
        %v3223 = vadd.f32 %v3221, 0.0009
        %v3224 = vadd.f32 %v3222, 0.0009
        %v3225 = vmul.f32 %v3219, %v3223
        %v3226 = vmul.f32 %v3220, %v3224
        %v3227 = vrcp.pop %v3225
        %v3228 = vmul.f32 %v3215, %v3227
        %v3229 = vrcp.pop %v3226
        %v3230 = vmul.f32 %v3216, %v3229
        %v3231 = vsel %vm576, %v3228, 0.0
        %v3232 = vsel %vm576, %v3230, 0.0
        %v3233 = vadd.f32 %v3231, %v3232
        %3234 = vadd.xlane.f32.xlu0 %v3233
        %v3235 = vpop.xlane.xlu0 %3234
        %v3236 = vrot.slane %v3235, 4
        %v3237 = vadd.f32 %v3235, %v3236
        %v3238 = vrot.slane %v3237, 2
        %v3239 = vadd.f32 %v3237, %v3238
        %v3240 = vrot.slane %v3239, 1
        %v3241 = vadd.f32 %v3239, %v3240
        %s3242 = vtos %v3241
        %3243 = vmatprep.subr.mxu0 0.0
        %3244 = vmatpush1.msra.mxu0 %v570
        %3245 = vmatprep.subr.mxu0 0.0
        %3246 = vmatpush1.msra.mxu0 %v571
        %3247 = vmatprep.subr.mxu0 0.0
        %3248 = vmatpush1.msra.mxu0 0.0
        %3249 = vmatprep.subr.mxu0 0.0
        %3250 = vmatpush1.msra.mxu0 0.0
        %3251 = vmatprep.subr.mxu0 0.0
        %3252 = vmatpush1.msra.mxu0 0.0
        %3253 = vmatprep.subr.mxu0 0.0
        %3254 = vmatpush1.msra.mxu0 0.0
        %3255 = vmatprep.subr.mxu0 0.0
        %3256 = vmatpush1.msra.mxu0 0.0
        %3257 = vmatprep.subr.mxu0 0.0
        %3258 = vmatpush1.msra.mxu0 0.0
        %3259 = vmatprep.subr.mxu0 0.0
        %3260 = vmatpush1.msra.mxu0 0.0
        %3261 = vmatprep.subr.mxu0 0.0
        %3262 = vmatpush1.msra.mxu0 0.0
        %3263 = vmatprep.subr.mxu0 0.0
        %3264 = vmatpush1.msra.mxu0 0.0
        %3265 = vmatprep.subr.mxu0 0.0
        %3266 = vmatpush1.msra.mxu0 0.0
        %3267 = vmatprep.subr.mxu0 0.0
        %3268 = vmatpush1.msra.mxu0 0.0
        %3269 = vmatprep.subr.mxu0 0.0
        %3270 = vmatpush1.msra.mxu0 0.0
        %3271 = vmatprep.subr.mxu0 0.0
        %3272 = vmatpush1.msra.mxu0 0.0
        %3273 = vmatprep.subr.mxu0 0.0
        %3274 = vmatpush1.msra.mxu0 0.0
        %3275 = vmatprep.subr.mxu0 0.0
        %3276 = vmatpush1.msra.mxu0 0.0
        %3277 = vmatprep.subr.mxu0 0.0
        %3278 = vmatpush1.msra.mxu0 0.0
        %3279 = vmatprep.subr.mxu0 0.0
        %3280 = vmatpush1.msra.mxu0 0.0
        %3281 = vmatprep.subr.mxu0 0.0
        %3282 = vmatpush1.msra.mxu0 0.0
        %3283 = vmatprep.subr.mxu0 0.0
        %3284 = vmatpush1.msra.mxu0 0.0
        %3285 = vmatprep.subr.mxu0 0.0
        %3286 = vmatpush1.msra.mxu0 0.0
        %3287 = vmatprep.subr.mxu0 0.0
        %3288 = vmatpush1.msra.mxu0 0.0
        %3289 = vmatprep.subr.mxu0 0.0
        %3290 = vmatpush1.msra.mxu0 0.0
        %3291 = vmatprep.subr.mxu0 0.0
        %3292 = vmatpush1.msra.mxu0 0.0
        %3293 = vmatprep.subr.mxu0 0.0
        %3294 = vmatpush1.msra.mxu0 0.0
        %3295 = vmatprep.subr.mxu0 0.0
        %3296 = vmatpush1.msra.mxu0 0.0
        %3297 = vmatprep.subr.mxu0 0.0
        %3298 = vmatpush1.msra.mxu0 0.0
        %3299 = vmatprep.subr.mxu0 0.0
        %3300 = vmatpush1.msra.mxu0 0.0
        %3301 = vmatprep.subr.mxu0 0.0
        %3302 = vmatpush1.msra.mxu0 0.0
        %3303 = vmatprep.subr.mxu0 0.0
        %3304 = vmatpush1.msra.mxu0 0.0
        %3305 = vmatprep.subr.mxu0 0.0
        %3306 = vmatpush1.msra.mxu0 0.0
        %3307 = vmatprep.mubr.f32.mxu0 0.0
        %3308 = vmatmul.mubr.f32.gmra.mrb[0].mxu0 %v1582
        %v3309 = vpop.f32.mrb[0].mxu0
        %v3310 = vadd.f32 0.0, %v3309
        %v3311 = vpop.f32.mrb[0].mxu0
        %3312 = vmatprep.mubr.f32.mxu0 0.0
        %3313 = vmatmul.mubr.f32.gmra.mrb[0].mxu0 %v1585
        %v3314 = vpop.f32.mrb[0].mxu0
        %v3315 = vadd.f32 0.0, %v3314
        %v3316 = vpop.f32.mrb[0].mxu0
        %3317 = vdwg.mxu0
        %3318 = vmatprep.subr.mxu0 0.0
        %3319 = vmatpush1.msra.mxu0 %v3310
        %3320 = vmatprep.subr.mxu0 0.0
        %3321 = vmatpush1.msra.mxu0 %v3315
        %3322 = vmatprep.subr.mxu0 0.0
        %3323 = vmatpush1.msra.mxu0 0.0
        %3324 = vmatprep.subr.mxu0 0.0
        %3325 = vmatpush1.msra.mxu0 0.0
        %3326 = vmatprep.subr.mxu0 0.0
        %3327 = vmatpush1.msra.mxu0 0.0
        %3328 = vmatprep.subr.mxu0 0.0
        %3329 = vmatpush1.msra.mxu0 0.0
        %3330 = vmatprep.subr.mxu0 0.0
        %3331 = vmatpush1.msra.mxu0 0.0
        %3332 = vmatprep.subr.mxu0 0.0
        %3333 = vmatpush1.msra.mxu0 0.0
        %3334 = vmatprep.subr.mxu0 0.0
        %3335 = vmatpush1.msra.mxu0 0.0
        %3336 = vmatprep.subr.mxu0 0.0
        %3337 = vmatpush1.msra.mxu0 0.0
        %3338 = vmatprep.subr.mxu0 0.0
        %3339 = vmatpush1.msra.mxu0 0.0
        %3340 = vmatprep.subr.mxu0 0.0
        %3341 = vmatpush1.msra.mxu0 0.0
        %3342 = vmatprep.subr.mxu0 0.0
        %3343 = vmatpush1.msra.mxu0 0.0
        %3344 = vmatprep.subr.mxu0 0.0
        %3345 = vmatpush1.msra.mxu0 0.0
        %3346 = vmatprep.subr.mxu0 0.0
        %3347 = vmatpush1.msra.mxu0 0.0
        %3348 = vmatprep.subr.mxu0 0.0
        %3349 = vmatpush1.msra.mxu0 0.0
        %3350 = vmatprep.subr.mxu0 0.0
        %3351 = vmatpush1.msra.mxu0 0.0
        %3352 = vmatprep.subr.mxu0 0.0
        %3353 = vmatpush1.msra.mxu0 0.0
        %3354 = vmatprep.subr.mxu0 0.0
        %3355 = vmatpush1.msra.mxu0 0.0
        %3356 = vmatprep.subr.mxu0 0.0
        %3357 = vmatpush1.msra.mxu0 0.0
        %3358 = vmatprep.subr.mxu0 0.0
        %3359 = vmatpush1.msra.mxu0 0.0
        %3360 = vmatprep.subr.mxu0 0.0
        %3361 = vmatpush1.msra.mxu0 0.0
        %3362 = vmatprep.subr.mxu0 0.0
        %3363 = vmatpush1.msra.mxu0 0.0
        %3364 = vmatprep.subr.mxu0 0.0
        %3365 = vmatpush1.msra.mxu0 0.0
        %3366 = vmatprep.subr.mxu0 0.0
        %3367 = vmatpush1.msra.mxu0 0.0
        %3368 = vmatprep.subr.mxu0 0.0
        %3369 = vmatpush1.msra.mxu0 0.0
        %3370 = vmatprep.subr.mxu0 0.0
        %3371 = vmatpush1.msra.mxu0 0.0
        %3372 = vmatprep.subr.mxu0 0.0
        %3373 = vmatpush1.msra.mxu0 0.0
        %3374 = vmatprep.subr.mxu0 0.0
        %3375 = vmatpush1.msra.mxu0 0.0
        %3376 = vmatprep.subr.mxu0 0.0
        %3377 = vmatpush1.msra.mxu0 0.0
        %3378 = vmatprep.subr.mxu0 0.0
        %3379 = vmatpush1.msra.mxu0 0.0
        %3380 = vmatprep.subr.mxu0 0.0
        %3381 = vmatpush1.msra.mxu0 0.0
        %3382 = vmatprep.mubr.f32.mxu0 0.0
        %3383 = vmatmul.mubr.f32.gmra.mrb[0].mxu0 %v1981
        %v3384 = vpop.f32.mrb[0].mxu0
        %v3385 = vadd.f32 0.0, %v3384
        %v3386 = vpop.f32.mrb[0].mxu0
        %3387 = vmatprep.mubr.f32.mxu0 0.0
        %3388 = vmatmul.mubr.f32.gmra.mrb[0].mxu0 %v1984
        %v3389 = vpop.f32.mrb[0].mxu0
        %v3390 = vadd.f32 0.0, %v3389
        %v3391 = vpop.f32.mrb[0].mxu0
        %3392 = vdwg.mxu0
        %v3393 = vmul.f32 %v3385, %v3385
        %v3394 = vmul.f32 %v3390, %v3390
        %v3395 = vmul.f32 %v3385, %v2053
        %v3396 = vmul.f32 %v3390, %v2058
        %v3397 = vmul.f32 %v556, %v556
        %v3398 = vmul.f32 %v557, %v557
        %v3400 = vsel %vm576, %v3397, 0
        %v3403 = vsel %vm576, %v3398, 0
        %3405 = vmatprep.subr.mxu0 0.0
        %3406 = vmatpush1.msra.mxu0 %v570
        %3407 = vmatprep.subr.mxu0 0.0
        %3408 = vmatpush1.msra.mxu0 %v571
        %3409 = vmatprep.subr.mxu0 0.0
        %3410 = vmatpush1.msra.mxu0 0.0
        %3411 = vmatprep.subr.mxu0 0.0
        %3412 = vmatpush1.msra.mxu0 0.0
        %3413 = vmatprep.subr.mxu0 0.0
        %3414 = vmatpush1.msra.mxu0 0.0
        %3415 = vmatprep.subr.mxu0 0.0
        %3416 = vmatpush1.msra.mxu0 0.0
        %3417 = vmatprep.subr.mxu0 0.0
        %3418 = vmatpush1.msra.mxu0 0.0
        %3419 = vmatprep.subr.mxu0 0.0
        %3420 = vmatpush1.msra.mxu0 0.0
        %3421 = vmatprep.subr.mxu0 0.0
        %3422 = vmatpush1.msra.mxu0 0.0
        %3423 = vmatprep.subr.mxu0 0.0
        %3424 = vmatpush1.msra.mxu0 0.0
        %3425 = vmatprep.subr.mxu0 0.0
        %3426 = vmatpush1.msra.mxu0 0.0
        %3427 = vmatprep.subr.mxu0 0.0
        %3428 = vmatpush1.msra.mxu0 0.0
        %3429 = vmatprep.subr.mxu0 0.0
        %3430 = vmatpush1.msra.mxu0 0.0
        %3431 = vmatprep.subr.mxu0 0.0
        %3432 = vmatpush1.msra.mxu0 0.0
        %3433 = vmatprep.subr.mxu0 0.0
        %3434 = vmatpush1.msra.mxu0 0.0
        %3435 = vmatprep.subr.mxu0 0.0
        %3436 = vmatpush1.msra.mxu0 0.0
        %3437 = vmatprep.subr.mxu0 0.0
        %3438 = vmatpush1.msra.mxu0 0.0
        %3439 = vmatprep.subr.mxu0 0.0
        %3440 = vmatpush1.msra.mxu0 0.0
        %3441 = vmatprep.subr.mxu0 0.0
        %3442 = vmatpush1.msra.mxu0 0.0
        %3443 = vmatprep.subr.mxu0 0.0
        %3444 = vmatpush1.msra.mxu0 0.0
        %3445 = vmatprep.subr.mxu0 0.0
        %3446 = vmatpush1.msra.mxu0 0.0
        %3447 = vmatprep.subr.mxu0 0.0
        %3448 = vmatpush1.msra.mxu0 0.0
        %3449 = vmatprep.subr.mxu0 0.0
        %3450 = vmatpush1.msra.mxu0 0.0
        %3451 = vmatprep.subr.mxu0 0.0
        %3452 = vmatpush1.msra.mxu0 0.0
        %3453 = vmatprep.subr.mxu0 0.0
        %3454 = vmatpush1.msra.mxu0 0.0
        %3455 = vmatprep.subr.mxu0 0.0
        %3456 = vmatpush1.msra.mxu0 0.0
        %3457 = vmatprep.subr.mxu0 0.0
        %3458 = vmatpush1.msra.mxu0 0.0
        %3459 = vmatprep.subr.mxu0 0.0
        %3460 = vmatpush1.msra.mxu0 0.0
        %3461 = vmatprep.subr.mxu0 0.0
        %3462 = vmatpush1.msra.mxu0 0.0
        %3463 = vmatprep.subr.mxu0 0.0
        %3464 = vmatpush1.msra.mxu0 0.0
        %3465 = vmatprep.subr.mxu0 0.0
        %3466 = vmatpush1.msra.mxu0 0.0
        %3467 = vmatprep.subr.mxu0 0.0
        %3468 = vmatpush1.msra.mxu0 0.0
        %3469 = vmatprep.mubr.f32.mxu0 0.0
        %3470 = vmatmul.mubr.f32.gmra.mrb[0].mxu0 %v3400
        %v3471 = vpop.f32.mrb[0].mxu0
        %v3472 = vadd.f32 0.0, %v3471
        %v3473 = vpop.f32.mrb[0].mxu0
        %3474 = vmatprep.mubr.f32.mxu0 0.0
        %3475 = vmatmul.mubr.f32.gmra.mrb[0].mxu0 %v3403
        %v3476 = vpop.f32.mrb[0].mxu0
        %v3477 = vadd.f32 0.0, %v3476
        %v3478 = vpop.f32.mrb[0].mxu0
        %3479 = vdwg.mxu0
        %3480 = vmatprep.subr.mxu0 0.0
        %3481 = vmatpush1.msra.mxu0 %v3472
        %3482 = vmatprep.subr.mxu0 0.0
        %3483 = vmatpush1.msra.mxu0 %v3477
        %3484 = vmatprep.subr.mxu0 0.0
        %3485 = vmatpush1.msra.mxu0 0.0
        %3486 = vmatprep.subr.mxu0 0.0
        %3487 = vmatpush1.msra.mxu0 0.0
        %3488 = vmatprep.subr.mxu0 0.0
        %3489 = vmatpush1.msra.mxu0 0.0
        %3490 = vmatprep.subr.mxu0 0.0
        %3491 = vmatpush1.msra.mxu0 0.0
        %3492 = vmatprep.subr.mxu0 0.0
        %3493 = vmatpush1.msra.mxu0 0.0
        %3494 = vmatprep.subr.mxu0 0.0
        %3495 = vmatpush1.msra.mxu0 0.0
        %3496 = vmatprep.subr.mxu0 0.0
        %3497 = vmatpush1.msra.mxu0 0.0
        %3498 = vmatprep.subr.mxu0 0.0
        %3499 = vmatpush1.msra.mxu0 0.0
        %3500 = vmatprep.subr.mxu0 0.0
        %3501 = vmatpush1.msra.mxu0 0.0
        %3502 = vmatprep.subr.mxu0 0.0
        %3503 = vmatpush1.msra.mxu0 0.0
        %3504 = vmatprep.subr.mxu0 0.0
        %3505 = vmatpush1.msra.mxu0 0.0
        %3506 = vmatprep.subr.mxu0 0.0
        %3507 = vmatpush1.msra.mxu0 0.0
        %3508 = vmatprep.subr.mxu0 0.0
        %3509 = vmatpush1.msra.mxu0 0.0
        %3510 = vmatprep.subr.mxu0 0.0
        %3511 = vmatpush1.msra.mxu0 0.0
        %3512 = vmatprep.subr.mxu0 0.0
        %3513 = vmatpush1.msra.mxu0 0.0
        %3514 = vmatprep.subr.mxu0 0.0
        %3515 = vmatpush1.msra.mxu0 0.0
        %3516 = vmatprep.subr.mxu0 0.0
        %3517 = vmatpush1.msra.mxu0 0.0
        %3518 = vmatprep.subr.mxu0 0.0
        %3519 = vmatpush1.msra.mxu0 0.0
        %3520 = vmatprep.subr.mxu0 0.0
        %3521 = vmatpush1.msra.mxu0 0.0
        %3522 = vmatprep.subr.mxu0 0.0
        %3523 = vmatpush1.msra.mxu0 0.0
        %3524 = vmatprep.subr.mxu0 0.0
        %3525 = vmatpush1.msra.mxu0 0.0
        %3526 = vmatprep.subr.mxu0 0.0
        %3527 = vmatpush1.msra.mxu0 0.0
        %3528 = vmatprep.subr.mxu0 0.0
        %3529 = vmatpush1.msra.mxu0 0.0
        %3530 = vmatprep.subr.mxu0 0.0
        %3531 = vmatpush1.msra.mxu0 0.0
        %3532 = vmatprep.subr.mxu0 0.0
        %3533 = vmatpush1.msra.mxu0 0.0
        %3534 = vmatprep.subr.mxu0 0.0
        %3535 = vmatpush1.msra.mxu0 0.0
        %3536 = vmatprep.subr.mxu0 0.0
        %3537 = vmatpush1.msra.mxu0 0.0
        %3538 = vmatprep.subr.mxu0 0.0
        %3539 = vmatpush1.msra.mxu0 0.0
        %3540 = vmatprep.subr.mxu0 0.0
        %3541 = vmatpush1.msra.mxu0 0.0
        %3542 = vmatprep.subr.mxu0 0.0
        %3543 = vmatpush1.msra.mxu0 0.0
        %3544 = vmatprep.mubr.f32.mxu0 0.0
        %3545 = vmatmul.mubr.f32.gmra.mrb[0].mxu0 %v1981
        %v3546 = vpop.f32.mrb[0].mxu0
        %v3547 = vadd.f32 0.0, %v3546
        %v3548 = vpop.f32.mrb[0].mxu0
        %3549 = vmatprep.mubr.f32.mxu0 0.0
        %3550 = vmatmul.mubr.f32.gmra.mrb[0].mxu0 %v1984
        %v3551 = vpop.f32.mrb[0].mxu0
        %v3552 = vadd.f32 0.0, %v3551
        %v3553 = vpop.f32.mrb[0].mxu0
        %3554 = vdwg.mxu0
        %v3555 = vsub.f32 %v3547, %v3393
        %v3556 = vsub.f32 %v3552, %v3394
        %v3557 = vmul.f32 %v556, %v558
        %v3558 = vmul.f32 %v557, %v559
        %v3560 = vsel %vm576, %v3557, 0
        %v3563 = vsel %vm576, %v3558, 0
        %3565 = vmatprep.subr.mxu0 0.0
        %3566 = vmatpush1.msra.mxu0 %v570
        %3567 = vmatprep.subr.mxu0 0.0
        %3568 = vmatpush1.msra.mxu0 %v571
        %3569 = vmatprep.subr.mxu0 0.0
        %3570 = vmatpush1.msra.mxu0 0.0
        %3571 = vmatprep.subr.mxu0 0.0
        %3572 = vmatpush1.msra.mxu0 0.0
        %3573 = vmatprep.subr.mxu0 0.0
        %3574 = vmatpush1.msra.mxu0 0.0
        %3575 = vmatprep.subr.mxu0 0.0
        %3576 = vmatpush1.msra.mxu0 0.0
        %3577 = vmatprep.subr.mxu0 0.0
        %3578 = vmatpush1.msra.mxu0 0.0
        %3579 = vmatprep.subr.mxu0 0.0
        %3580 = vmatpush1.msra.mxu0 0.0
        %3581 = vmatprep.subr.mxu0 0.0
        %3582 = vmatpush1.msra.mxu0 0.0
        %3583 = vmatprep.subr.mxu0 0.0
        %3584 = vmatpush1.msra.mxu0 0.0
        %3585 = vmatprep.subr.mxu0 0.0
        %3586 = vmatpush1.msra.mxu0 0.0
        %3587 = vmatprep.subr.mxu0 0.0
        %3588 = vmatpush1.msra.mxu0 0.0
        %3589 = vmatprep.subr.mxu0 0.0
        %3590 = vmatpush1.msra.mxu0 0.0
        %3591 = vmatprep.subr.mxu0 0.0
        %3592 = vmatpush1.msra.mxu0 0.0
        %3593 = vmatprep.subr.mxu0 0.0
        %3594 = vmatpush1.msra.mxu0 0.0
        %3595 = vmatprep.subr.mxu0 0.0
        %3596 = vmatpush1.msra.mxu0 0.0
        %3597 = vmatprep.subr.mxu0 0.0
        %3598 = vmatpush1.msra.mxu0 0.0
        %3599 = vmatprep.subr.mxu0 0.0
        %3600 = vmatpush1.msra.mxu0 0.0
        %3601 = vmatprep.subr.mxu0 0.0
        %3602 = vmatpush1.msra.mxu0 0.0
        %3603 = vmatprep.subr.mxu0 0.0
        %3604 = vmatpush1.msra.mxu0 0.0
        %3605 = vmatprep.subr.mxu0 0.0
        %3606 = vmatpush1.msra.mxu0 0.0
        %3607 = vmatprep.subr.mxu0 0.0
        %3608 = vmatpush1.msra.mxu0 0.0
        %3609 = vmatprep.subr.mxu0 0.0
        %3610 = vmatpush1.msra.mxu0 0.0
        %3611 = vmatprep.subr.mxu0 0.0
        %3612 = vmatpush1.msra.mxu0 0.0
        %3613 = vmatprep.subr.mxu0 0.0
        %3614 = vmatpush1.msra.mxu0 0.0
        %3615 = vmatprep.subr.mxu0 0.0
        %3616 = vmatpush1.msra.mxu0 0.0
        %3617 = vmatprep.subr.mxu0 0.0
        %3618 = vmatpush1.msra.mxu0 0.0
        %3619 = vmatprep.subr.mxu0 0.0
        %3620 = vmatpush1.msra.mxu0 0.0
        %3621 = vmatprep.subr.mxu0 0.0
        %3622 = vmatpush1.msra.mxu0 0.0
        %3623 = vmatprep.subr.mxu0 0.0
        %3624 = vmatpush1.msra.mxu0 0.0
        %3625 = vmatprep.subr.mxu0 0.0
        %3626 = vmatpush1.msra.mxu0 0.0
        %3627 = vmatprep.subr.mxu0 0.0
        %3628 = vmatpush1.msra.mxu0 0.0
        %3629 = vmatprep.mubr.f32.mxu0 0.0
        %3630 = vmatmul.mubr.f32.gmra.mrb[0].mxu0 %v3560
        %v3631 = vpop.f32.mrb[0].mxu0
        %v3632 = vadd.f32 0.0, %v3631
        %v3633 = vpop.f32.mrb[0].mxu0
        %3634 = vmatprep.mubr.f32.mxu0 0.0
        %3635 = vmatmul.mubr.f32.gmra.mrb[0].mxu0 %v3563
        %v3636 = vpop.f32.mrb[0].mxu0
        %v3637 = vadd.f32 0.0, %v3636
        %v3638 = vpop.f32.mrb[0].mxu0
        %3639 = vdwg.mxu0
        %3640 = vmatprep.subr.mxu0 0.0
        %3641 = vmatpush1.msra.mxu0 %v3632
        %3642 = vmatprep.subr.mxu0 0.0
        %3643 = vmatpush1.msra.mxu0 %v3637
        %3644 = vmatprep.subr.mxu0 0.0
        %3645 = vmatpush1.msra.mxu0 0.0
        %3646 = vmatprep.subr.mxu0 0.0
        %3647 = vmatpush1.msra.mxu0 0.0
        %3648 = vmatprep.subr.mxu0 0.0
        %3649 = vmatpush1.msra.mxu0 0.0
        %3650 = vmatprep.subr.mxu0 0.0
        %3651 = vmatpush1.msra.mxu0 0.0
        %3652 = vmatprep.subr.mxu0 0.0
        %3653 = vmatpush1.msra.mxu0 0.0
        %3654 = vmatprep.subr.mxu0 0.0
        %3655 = vmatpush1.msra.mxu0 0.0
        %3656 = vmatprep.subr.mxu0 0.0
        %3657 = vmatpush1.msra.mxu0 0.0
        %3658 = vmatprep.subr.mxu0 0.0
        %3659 = vmatpush1.msra.mxu0 0.0
        %3660 = vmatprep.subr.mxu0 0.0
        %3661 = vmatpush1.msra.mxu0 0.0
        %3662 = vmatprep.subr.mxu0 0.0
        %3663 = vmatpush1.msra.mxu0 0.0
        %3664 = vmatprep.subr.mxu0 0.0
        %3665 = vmatpush1.msra.mxu0 0.0
        %3666 = vmatprep.subr.mxu0 0.0
        %3667 = vmatpush1.msra.mxu0 0.0
        %3668 = vmatprep.subr.mxu0 0.0
        %3669 = vmatpush1.msra.mxu0 0.0
        %3670 = vmatprep.subr.mxu0 0.0
        %3671 = vmatpush1.msra.mxu0 0.0
        %3672 = vmatprep.subr.mxu0 0.0
        %3673 = vmatpush1.msra.mxu0 0.0
        %3674 = vmatprep.subr.mxu0 0.0
        %3675 = vmatpush1.msra.mxu0 0.0
        %3676 = vmatprep.subr.mxu0 0.0
        %3677 = vmatpush1.msra.mxu0 0.0
        %3678 = vmatprep.subr.mxu0 0.0
        %3679 = vmatpush1.msra.mxu0 0.0
        %3680 = vmatprep.subr.mxu0 0.0
        %3681 = vmatpush1.msra.mxu0 0.0
        %3682 = vmatprep.subr.mxu0 0.0
        %3683 = vmatpush1.msra.mxu0 0.0
        %3684 = vmatprep.subr.mxu0 0.0
        %3685 = vmatpush1.msra.mxu0 0.0
        %3686 = vmatprep.subr.mxu0 0.0
        %3687 = vmatpush1.msra.mxu0 0.0
        %3688 = vmatprep.subr.mxu0 0.0
        %3689 = vmatpush1.msra.mxu0 0.0
        %3690 = vmatprep.subr.mxu0 0.0
        %3691 = vmatpush1.msra.mxu0 0.0
        %3692 = vmatprep.subr.mxu0 0.0
        %3693 = vmatpush1.msra.mxu0 0.0
        %3694 = vmatprep.subr.mxu0 0.0
        %3695 = vmatpush1.msra.mxu0 0.0
        %3696 = vmatprep.subr.mxu0 0.0
        %3697 = vmatpush1.msra.mxu0 0.0
        %3698 = vmatprep.subr.mxu0 0.0
        %3699 = vmatpush1.msra.mxu0 0.0
        %3700 = vmatprep.subr.mxu0 0.0
        %3701 = vmatpush1.msra.mxu0 0.0
        %3702 = vmatprep.subr.mxu0 0.0
        %3703 = vmatpush1.msra.mxu0 0.0
        %3704 = vmatprep.mubr.f32.mxu0 0.0
        %3705 = vmatmul.mubr.f32.gmra.mrb[0].mxu0 %v1981
        %v3706 = vpop.f32.mrb[0].mxu0
        %v3707 = vadd.f32 0.0, %v3706
        %v3708 = vpop.f32.mrb[0].mxu0
        %3709 = vmatprep.mubr.f32.mxu0 0.0
        %3710 = vmatmul.mubr.f32.gmra.mrb[0].mxu0 %v1984
        %v3711 = vpop.f32.mrb[0].mxu0
        %v3712 = vadd.f32 0.0, %v3711
        %v3713 = vpop.f32.mrb[0].mxu0
        %3714 = vdwg.mxu0
        %v3715 = vsub.f32 %v3707, %v3395
        %v3716 = vsub.f32 %v3712, %v3396
        %v3717 = vmul.f32 %v3395, 2.0
        %v3718 = vmul.f32 %v3396, 2.0
        %v3719 = vadd.f32 %v3717, 0.0001
        %v3720 = vadd.f32 %v3718, 0.0001
        %v3721 = vmul.f32 %v3715, 2.0
        %v3722 = vmul.f32 %v3716, 2.0
        %v3723 = vadd.f32 %v3721, 0.0009
        %v3724 = vadd.f32 %v3722, 0.0009
        %v3725 = vmul.f32 %v3719, %v3723
        %v3726 = vmul.f32 %v3720, %v3724
        %v3727 = vadd.f32 %v3393, %v2061
        %v3728 = vadd.f32 %v3394, %v2062
        %v3729 = vadd.f32 %v3727, 0.0001
        %v3730 = vadd.f32 %v3728, 0.0001
        %v3731 = vadd.f32 %v3555, %v2221
        %v3732 = vadd.f32 %v3556, %v2222
        %v3733 = vadd.f32 %v3731, 0.0009
        %v3734 = vadd.f32 %v3732, 0.0009
        %v3735 = vmul.f32 %v3729, %v3733
        %v3736 = vmul.f32 %v3730, %v3734
        %v3737 = vrcp.pop %v3735
        %v3738 = vmul.f32 %v3725, %v3737
        %v3739 = vrcp.pop %v3736
        %v3740 = vmul.f32 %v3726, %v3739
        %v3741 = vsel %vm576, %v3738, 0.0
        %v3742 = vsel %vm576, %v3740, 0.0
        %v3743 = vadd.f32 %v3741, %v3742
        %3744 = vadd.xlane.f32.xlu0 %v3743
        %v3745 = vpop.xlane.xlu0 %3744
        %v3746 = vrot.slane %v3745, 4
        %v3747 = vadd.f32 %v3745, %v3746
        %v3748 = vrot.slane %v3747, 2
        %v3749 = vadd.f32 %v3747, %v3748
        %v3750 = vrot.slane %v3749, 1
        %v3751 = vadd.f32 %v3749, %v3750
        %s3752 = vtos %v3751
        %v3753 = vlaneseq
        %v3754 = vand.u32 %v3753, 127
        %vm3755 = vcmp.eq.s32.totalorder %v3754, 0
        %v3756 = vstv %s916
        %v3757 = vsel %vm3755, %v3756, 0.0
        %v3758 = vadd.f32 %v3757, 0.0
        %vm3759 = vcmp.eq.s32.totalorder %v3754, 1
        %v3760 = vstv %s932
        %v3761 = vsel %vm3759, %v3760, 0.0
        %v3762 = vadd.f32 %v3758, %v3761
        %vm3763 = vcmp.eq.s32.totalorder %v3754, 2
        %v3764 = vstv %s1256
        %v3765 = vsel %vm3763, %v3764, 0.0
        %v3766 = vadd.f32 %v3762, %v3765
        %vm3767 = vcmp.eq.s32.totalorder %v3754, 3
        %v3768 = vstv %s1580
        %v3769 = vsel %vm3767, %v3768, 0.0
        %v3770 = vadd.f32 %v3766, %v3769
        %vm3771 = vcmp.eq.s32.totalorder %v3754, 4
        %v3772 = vstv %s1904
        %v3773 = vsel %vm3771, %v3772, 0.0
        %v3774 = vadd.f32 %v3770, %v3773
        %vm3775 = vcmp.eq.s32.totalorder %v3754, 5
        %v3776 = vstv %s2732
        %v3777 = vsel %vm3775, %v3776, 0.0
        %v3778 = vadd.f32 %v3774, %v3777
        %vm3779 = vcmp.eq.s32.totalorder %v3754, 6
        %v3780 = vstv %s3242
        %v3781 = vsel %vm3779, %v3780, 0.0
        %v3782 = vadd.f32 %v3778, %v3781
        %vm3783 = vcmp.eq.s32.totalorder %v3754, 7
        %v3784 = vstv %s3752
        %v3785 = vsel %vm3783, %v3784, 0.0
        %v3786 = vadd.f32 %v3782, %v3785
        %vm3787 = vcmask 57344
        %3788 = vst.msk [vmem:[%s551] sm:$0x1] %vm3787, %v3786
        %s3789 = sand.u32 %s273, 1
        %s3790 = scalar_lea.sflag [#allocation4], %s3789
        %s3791 = sand.u32 %s273, 1
        %s3792 = scalar_lea.vmem [#allocation16], %s3791
        // Predicated region
        $region93: #{tpu_custom_call.1} parent=59 // pred_check
          %p3793 = pneg %p283
        $region94: #{tpu_custom_call.1} parent=59 // pred_check_branch
          %3795 = sbr.rel (%p3793) target = $region96
        $region95: #{tpu_custom_call.1} parent=59 // pred_region
          %s3797 = ssub.s32 16, 16
          %3798 = vsyncadd %s3790, %s3797
          %s3799 = smul.addr %s35, 16
          %s3800 = scalar_lea.hbm %s10, %s3799
          %s3802 = sshll.u32 %s3792, 4
          %s3803 = int_to_ptr.vmem [resolvable:$true] %s3802
          %3805 = dma.vmem_to_hbm [thread:$0]  %s3803, 16, %s3800, %s3790
        $region96: #{tpu_custom_call.1} parent=59 // pred_fallthru
          _
      $region60: #{tpu_custom_call.1} parent=5 // pred_fallthru
        _
      %p3806 = scmp.le.s32.totalorder 2, %s30
      // Predicated region
      $region97: #{tpu_custom_call.1} parent=5 // pred_check
        %p3807 = pneg %p3806
      $region98: #{tpu_custom_call.1} parent=5 // pred_check_branch
        %3809 = sbr.rel (%p3807) target = $region100
      $region99: #{tpu_custom_call.1} parent=5 // pred_region
        %s3810 = ssub.s32 %s30, 2
        // Predicated region
        $region101: #{tpu_custom_call.1} parent=99 // pred_check
          %p3811 = pneg %p289
        $region102: #{tpu_custom_call.1} parent=99 // pred_check_branch
          %3813 = sbr.rel (%p3811) target = $region104
        $region103: #{tpu_custom_call.1} parent=99 // pred_region
          %s3814 = sand.u32 %s274, 1
          %s3815 = scalar_lea.sflag [#allocation4], %s3814
          %s3816 = sand.u32 %s274, 1
          %s3817 = scalar_lea.vmem [#allocation16], %s3816
          %3818 = dma.done %s3815, 16
        $region104: #{tpu_custom_call.1} parent=99 // pred_fallthru
          _
      $region100: #{tpu_custom_call.1} parent=5 // pred_fallthru
        _
    $region6: #{tpu_custom_call.1} parent=1 // loop_footer
      %s34 = sadd.s32 1, %s30
    $region7: #{tpu_custom_call.1} parent=1 // loop_footer_branch
      %29 = sbr.rel target = $region3
    $region8: #{tpu_custom_call.1} parent=1 // loop_exit
      _
    %3819 = vsyncpa [#allocation3], 1
    %s3820 = scalar_lea.sflag [#allocation3], 1
    %3821 = vsyncpa %s3820, 1
    %3822 = vsyncpa [#allocation6], 1
    %s3823 = scalar_lea.sflag [#allocation6], 1
    %3824 = vsyncpa %s3823, 1
    %3825 = vsyncpa [#allocation9], 1
    %s3826 = scalar_lea.sflag [#allocation9], 1
    %3827 = vsyncpa %s3826, 1
    %3828 = vsyncpa [#allocation12], 1
    %3829 = vsyncpa [#allocation15], 1
    %3830 = vsyncpa [#allocation4], 1
    %s3831 = scalar_lea.sflag [#allocation4], 1
    %3832 = vsyncpa %s3831, 1

</llo_original>
